<compile_context>
chip_gen: v6e
topology: v6e:2x2x1
jax: 0.10.0
libtpu: 0.0.40
codegen_flags: <defaults>
</compile_context>

<pallas_src>
import functools

import jax
import jax.numpy as jnp
import numpy as np
from jax.experimental import pallas as pl
from jax.experimental.pallas import tpu as pltpu


def _round_up(x, m):
    return ((x + m - 1) // m) * m


def _gcod_kernel(logits_ref, side_ref, out_ref, acc_ref, *,
                 alpha_train, batch, num_classes, tb, nbh):
    p = pl.program_id(0)          # core-split index ("parallel")
    i = pl.program_id(1)          # batch-tile index within the split ("arbitrary")

    @pl.when(i == 0)
    def _init():
        acc_ref[...] = jnp.zeros_like(acc_ref)

    logits = logits_ref[...].astype(jnp.float32)                 # (tb, C)

    # Lane-dense side block: row0 = target (f32-encoded int), row1 = u.
    # Pad to 8 sublanes, then one small lane<->sublane transpose (XLU) gives
    # the per-row columns; cost is O(tb), independent of C.
    side = side_ref[...]                                          # (2, tb)
    side8 = jnp.concatenate([side, jnp.zeros((6, tb), jnp.float32)], axis=0)
    side_cols = jnp.transpose(side8, (1, 0))                      # (tb, 8)
    tgt = side_cols[:, 0:1].astype(jnp.int32)                     # (tb, 1)
    u = side_cols[:, 1:2]                                         # (tb, 1)

    # mask for rows beyond the true batch size (padding)
    row_off = (p * nbh + i) * tb
    row = jax.lax.broadcasted_iota(jnp.int32, (tb, 1), 0) + row_off
    valid = (row < batch).astype(jnp.float32)                     # (tb, 1)

    col = jax.lax.broadcasted_iota(jnp.int32, (tb, num_classes), 1)
    onehot = col == tgt                                           # (tb, C) bool (built once, reused)

    # ---- class-axis reductions on the (otherwise idle) MXU ----
    ones_c = jnp.ones((num_classes, 1), jnp.float32)
    hi = jax.lax.Precision.HIGHEST

    m = jnp.max(logits, axis=1, keepdims=True)                    # (tb, 1)
    ex = jnp.exp(logits - m)                                      # (tb, C), <= 1
    se = jnp.dot(ex, ones_c,
                 preferred_element_type=jnp.float32, precision=hi)          # sum exp
    logit_true = jnp.dot(jnp.where(onehot, logits, 0.0), ones_c,
                         preferred_element_type=jnp.float32, precision=hi)  # target logit
    ex_off = jnp.where(onehot, 0.0, ex)
    off_sq = jnp.dot(ex_off * ex_off, ones_c,
                     preferred_element_type=jnp.float32, precision=hi)      # off-target sum exp^2

    inv_se = pl.reciprocal(se, approx=False)
    lse = m + jnp.log(se)
    ce = lse - logit_true                                         # per-sample CE
    p_true = jnp.exp(logit_true - m) * inv_se                     # softmax at target

    # L1 rows: CE + alpha * u * <y_onehot, softmax>
    l1_row = ce + alpha_train * u * p_true

    # L2 rows: off-target softmax^2 summed directly (no cancellation) + diag term
    d = p_true + u - 1.0
    l2_row = off_sq * (inv_se * inv_se) + d * d

    # L3 (KL) rows: t*(log t - logsigmoid(logit_true)), t = sigmoid(-log(u+1e-8)) = 1/(1+u+1e-8)
    one_plus_u = 1.0 + u + 1e-8
    t = pl.reciprocal(one_plus_u, approx=False)
    kl_row = t * (-jnp.log(one_plus_u) - jax.nn.log_sigmoid(logit_true))

    # single merged accumulator + single cross-sublane reduce per step
    stacked = jnp.concatenate([l1_row, l2_row, kl_row], axis=1) * valid     # (tb, 3)
    acc_ref[...] += jnp.sum(stacked, axis=0, keepdims=True)                 # (1, 3)

    @pl.when(i == nbh - 1)
    def _finalize():
        s1 = acc_ref[0:1, 0:1]
        s2 = acc_ref[0:1, 1:2]
        s3 = acc_ref[0:1, 2:3]
        lane = jax.lax.broadcasted_iota(jnp.int32, (8, 128), 1)
        out_ref[...] = (jnp.where(lane == 0, s1, 0.0)
                        + jnp.where(lane == 1, s2, 0.0)
                        + jnp.where(lane == 2, s3, 0.0))


def gcod_loss_d(logits, targets, u_params, training_accuracy, *,
                num_classes, alpha_train=2.0, block_b=None):
    B, C = logits.shape
    assert C == num_classes, "logits last dim must equal num_classes"
    assert B > 0
    itemsize = jnp.dtype(logits.dtype).itemsize
    lanes = _round_up(C, 128)                      # VMEM lane padding of a (*, C) block

    # per-chip VMEM capacity: 64 MiB on v7x, 128 MiB on v5e/v6e
    try:
        vmem_cap = int(pltpu.get_tpu_info().vmem_capacity_bytes)
    except Exception:
        vmem_cap = 64 << 20

    if block_b is None:
        # VMEM bytes per batch row: double-buffered logits tile (lane-padded)
        # + ~6 f32 working copies + lane-dense side block (2 buffers) + misc.
        per_row = 2 * lanes * itemsize + 6 * lanes * 4 + 2 * 32 + 640
        budget = max(4 << 20, vmem_cap // 2)       # leave half of VMEM as headroom
        tb = budget // per_row
        tb = min(tb, (16 << 20) // max(1, C * itemsize))          # ~16 MiB HBM per step
        tb = min(tb, _round_up(max(1, -(-B // 2)), 128))          # never bigger than needed
        tb = max(128, (tb // 128) * 128)
    else:
        tb = max(128, (int(block_b) // 128) * 128)

    nb_total = -(-B // tb)
    n_split = 2 if nb_total >= 2 else 1            # two TensorCores on v7x; serial elsewhere
    nbh = -(-nb_total // n_split)
    b_pad = n_split * nbh * tb

    logits_p = jnp.pad(logits, ((0, b_pad - B), (0, 0))) if b_pad != B else logits
    tgt_f = jnp.pad(targets.reshape(B).astype(jnp.float32), (0, b_pad - B))
    u_f = jnp.pad(u_params.reshape(B).astype(jnp.float32), (0, b_pad - B),
                  constant_values=1.0)             # benign padding (masked in-kernel)
    side = jnp.stack([tgt_f, u_f], axis=0)         # (2, b_pad): lane-dense, one contiguous DMA/tile

    vmem_limit = int(vmem_cap - (2 << 20))

    cost = pl.CostEstimate(
        flops=int(16 * B * C),
        transcendentals=int(B * C + 6 * B),
        bytes_accessed=int(b_pad * C * itemsize + 2 * b_pad * 4 + n_split * 8 * 128 * 4),
    )

    kernel = functools.partial(_gcod_kernel, alpha_train=float(alpha_train),
                               batch=B, num_classes=C, tb=tb, nbh=nbh)

    out = pl.pallas_call(
        kernel,
        out_shape=jax.ShapeDtypeStruct((8 * n_split, 128), jnp.float32),
        grid_spec=pltpu.PrefetchScalarGridSpec(
            num_scalar_prefetch=0,
            grid=(n_split, nbh),
            in_specs=[
                pl.BlockSpec((tb, C), lambda p, i: (p * nbh + i, 0)),   # logits tile (native dtype)
                pl.BlockSpec((2, tb), lambda p, i: (0, p * nbh + i)),   # [targets; u], lane-dense
            ],
            out_specs=pl.BlockSpec((8, 128), lambda p, i: (p, 0)),
            scratch_shapes=[pltpu.VMEM((1, 3), jnp.float32)],
        ),
        compiler_params=pltpu.CompilerParams(
            dimension_semantics=("parallel", "arbitrary"),
            vmem_limit_bytes=vmem_limit,
        ),
        cost_estimate=cost,
    )(logits_p, side)

    # per-split raw sums -> final (linear) scaling in the wrapper
    parts = out.reshape(n_split, 8, 128)[:, 0, :3]
    sums = jnp.sum(parts, axis=0)
    acc = jnp.asarray(training_accuracy, jnp.float32)
    L1 = sums[0] / B
    L2 = sums[1] / num_classes
    L3 = (1.0 - acc) * sums[2] / B
    return L1 + L3, L1, L2, L3


def _reference(logits, targets, u, acc, num_classes, alpha):
    """Plain-JAX reference matching the PyTorch module."""
    logits = logits.astype(jnp.float32)
    y1h = jax.nn.one_hot(targets, num_classes, dtype=jnp.float32)
    y_soft = jax.nn.softmax(logits, axis=1)
    ce = -jnp.sum(jax.nn.log_softmax(logits, axis=1) * y1h, axis=1)
    fb = alpha * u * jnp.sum(y1h * y_soft, axis=1)
    L1 = jnp.mean(ce + fb)
    term = y_soft + u[:, None] * y1h - y1h
    L2 = jnp.sum(term ** 2) / num_classes
    diag = jnp.sum(logits * y1h, axis=1)
    Lp = jax.nn.log_sigmoid(diag)
    t = jax.nn.sigmoid(-jnp.log(u + 1e-8))
    kl = jnp.mean(t * (jnp.log(t) - Lp))
    L3 = (1.0 - acc) * kl
    return L1 + L3, L1, L2, L3


if __name__ == "__main__":
    key = jax.random.PRNGKey(0)
    C = 16
    training_accuracy = 0.7

    configs = [
        (12, jnp.float32, None),     # single tile, heavy padding + masking
        (300, jnp.float32, 128),     # (2 splits) x (2 tiles) grid, partially masked tiles
        (300, jnp.bfloat16, 128),    # native low-precision logits path
    ]
    for B, dt, bb in configs:
        k1, k2, k3 = jax.random.split(jax.random.fold_in(key, B), 3)
        logits = jax.random.normal(k1, (B, C), dtype=jnp.float32).astype(dt)
        targets = jax.random.randint(k2, (B,), 0, C, dtype=jnp.int32)
        u_params = jax.random.uniform(k3, (B,), dtype=jnp.float32,
                                      minval=0.01, maxval=1.0)

        got = gcod_loss_d(logits, targets, u_params, training_accuracy,
                          num_classes=C, alpha_train=2.0, block_b=bb)
        jax.block_until_ready(got[0])

        ref = _reference(logits, targets, u_params, training_accuracy, C, 2.0)
        for g, r in zip(got, ref):
            np.testing.assert_allclose(np.asarray(g), np.asarray(r),
                                       rtol=1e-4, atol=1e-5)

    print("KERNEL_OK")
</pallas_src>

<mosaic_0001>
module attributes {stable_mosaic.version = 11 : i64} {
  func.func @_gcod_kernel(%arg0: i32, %arg1: i32, %arg2: memref<128x16xf32, #tpu.memory_space<vmem>>, %arg3: memref<2x128xf32, #tpu.memory_space<vmem>>, %arg4: memref<8x128xf32, #tpu.memory_space<vmem>>, %arg5: memref<1x3xf32, #tpu.memory_space<vmem>>) attributes {dimension_semantics = [#tpu.dimension_semantics<parallel>, #tpu.dimension_semantics<arbitrary>], iteration_bounds = array<i64: 1, 1>, scalar_prefetch = 0 : i64, scratch_operands = 1 : i64, tpu.core_type = #tpu.core_type<tc>, window_params = [{transform_indices = @transform_0, window_bounds = array<i64: 128, 16>}, {transform_indices = @transform_1, window_bounds = array<i64: 2, 128>}, {transform_indices = @transform_2, window_bounds = array<i64: 8, 128>}]} {
    %c0_i32 = arith.constant 0 : i32
    %0 = arith.cmpi eq, %arg1, %c0_i32 : i32
    %1 = arith.extui %0 : i1 to i32
    %c0_i32_0 = arith.constant 0 : i32
    %2 = arith.cmpi ne, %1, %c0_i32_0 : i32
    scf.if %2 {
      %cst_27 = arith.constant 0.000000e+00 : f32
      %95 = vector.broadcast %cst_27 : f32 to vector<1x3xf32>
      %c0_28 = arith.constant 0 : index
      %c0_29 = arith.constant 0 : index
      %96 = vector.load %arg5[%c0_28, %c0_29] : memref<1x3xf32, #tpu.memory_space<vmem>>, vector<1x3xf32>
      tpu.vector_store %arg5[%c0_28, %c0_29], %95 {strides = array<i32>} : memref<1x3xf32, #tpu.memory_space<vmem>>, vector<1x3xf32>,
    } else {
    }
    %c0 = arith.constant 0 : index
    %c0_1 = arith.constant 0 : index
    %3 = vector.load %arg2[%c0, %c0_1] : memref<128x16xf32, #tpu.memory_space<vmem>>, vector<128x16xf32>
    %c0_2 = arith.constant 0 : index
    %c0_3 = arith.constant 0 : index
    %4 = vector.load %arg3[%c0_2, %c0_3] : memref<2x128xf32, #tpu.memory_space<vmem>>, vector<2x128xf32>
    %cst = arith.constant 0.000000e+00 : f32
    %5 = vector.broadcast %cst : f32 to vector<6x128xf32>
    %6 = tpu.concatenate %4, %5 in 0 : vector<2x128xf32>, vector<6x128xf32> -> vector<8x128xf32>
    %7 = tpu.transpose %6, [1, 0] : vector<8x128xf32> -> vector<128x8xf32>
    %8 = vector.extract_strided_slice %7 {offsets = [0, 0], sizes = [128, 1], strides = [1, 1]} : vector<128x8xf32> to vector<128x1xf32>
    %9 = arith.fptosi %8 : vector<128x1xf32> to vector<128x1xi32>
    %10 = vector.extract_strided_slice %7 {offsets = [0, 1], sizes = [128, 1], strides = [1, 1]} : vector<128x8xf32> to vector<128x1xf32>
    %c1_i32 = arith.constant 1 : i32
    %11 = arith.muli %arg0, %c1_i32 : i32
    %12 = arith.addi %11, %arg1 : i32
    %c128_i32 = arith.constant 128 : i32
    %13 = arith.muli %12, %c128_i32 : i32
    %14 = tpu.iota {dimensions = array<i32: 0>} : vector<128x1xi32>
    %15 = vector.broadcast %13 : i32 to vector<128x1xi32>
    %16 = arith.addi %14, %15 : vector<128x1xi32>
    %c12_i32 = arith.constant 12 : i32
    %17 = vector.broadcast %c12_i32 : i32 to vector<128x1xi32>
    %18 = arith.cmpi slt, %16, %17 : vector<128x1xi32>
    %19 = arith.extui %18 : vector<128x1xi1> to vector<128x1xi32>
    %20 = arith.sitofp %19 : vector<128x1xi32> to vector<128x1xf32>
    %21 = tpu.iota {dimensions = array<i32: 1>} : vector<128x16xi32>
    %22 = vector.broadcast %9 : vector<128x1xi32> to vector<128x16xi32>
    %23 = arith.cmpi eq, %21, %22 : vector<128x16xi32>
    %cst_4 = arith.constant 1.000000e+00 : f32
    %24 = vector.broadcast %cst_4 : f32 to vector<16x1xf32>
    %cst_5 = arith.constant dense<0xFF800000> : vector<128xf32>
    %25 = vector.multi_reduction <maximumf>, %3, %cst_5 [1] : vector<128x16xf32> to vector<128xf32>
    %26 = vector.shape_cast %25 : vector<128xf32> to vector<128x1xf32>
    %27 = vector.broadcast %26 : vector<128x1xf32> to vector<128x16xf32>
    %28 = arith.subf %3, %27 : vector<128x16xf32>
    %29 = math.exp %28 : vector<128x16xf32>
    %cst_6 = arith.constant dense<0.000000e+00> : vector<128x1xf32>
    %30 = tpu.matmul %29, %24, %cst_6 {dimension_numbers = #tpu.dot_dimension_numbers<[1], [0], [0], [1], [0, 0, 1, 1], [], []>, precision = #tpu.contract_precision<fp32>} : vector<128x16xf32>, vector<16x1xf32>, vector<128x1xf32> -> vector<128x1xf32>
    %cst_7 = arith.constant 0.000000e+00 : f32
    %31 = vector.broadcast %cst_7 : f32 to vector<128x16xf32>
    %32 = arith.select %23, %3, %31 : vector<128x16xi1>, vector<128x16xf32>
    %cst_8 = arith.constant dense<0.000000e+00> : vector<128x1xf32>
    %33 = tpu.matmul %32, %24, %cst_8 {dimension_numbers = #tpu.dot_dimension_numbers<[1], [0], [0], [1], [0, 0, 1, 1], [], []>, precision = #tpu.contract_precision<fp32>} : vector<128x16xf32>, vector<16x1xf32>, vector<128x1xf32> -> vector<128x1xf32>
    %cst_9 = arith.constant 0.000000e+00 : f32
    %34 = vector.broadcast %cst_9 : f32 to vector<128x16xf32>
    %35 = arith.select %23, %34, %29 : vector<128x16xi1>, vector<128x16xf32>
    %36 = arith.mulf %35, %35 : vector<128x16xf32>
    %cst_10 = arith.constant dense<0.000000e+00> : vector<128x1xf32>
    %37 = tpu.matmul %36, %24, %cst_10 {dimension_numbers = #tpu.dot_dimension_numbers<[1], [0], [0], [1], [0, 0, 1, 1], [], []>, precision = #tpu.contract_precision<fp32>} : vector<128x16xf32>, vector<16x1xf32>, vector<128x1xf32> -> vector<128x1xf32>
    %38 = tpu.reciprocal %30 : vector<128x1xf32> -> vector<128x1xf32>
    %39 = math.log %30 : vector<128x1xf32>
    %40 = arith.addf %26, %39 : vector<128x1xf32>
    %41 = arith.subf %40, %33 : vector<128x1xf32>
    %42 = arith.subf %33, %26 : vector<128x1xf32>
    %43 = math.exp %42 : vector<128x1xf32>
    %44 = arith.mulf %43, %38 : vector<128x1xf32>
    %cst_11 = arith.constant 2.000000e+00 : f32
    %45 = vector.broadcast %cst_11 : f32 to vector<128x1xf32>
    %46 = arith.mulf %45, %10 : vector<128x1xf32>
    %47 = arith.mulf %46, %44 : vector<128x1xf32>
    %48 = arith.addf %41, %47 : vector<128x1xf32>
    %49 = arith.addf %44, %10 : vector<128x1xf32>
    %cst_12 = arith.constant 1.000000e+00 : f32
    %50 = vector.broadcast %cst_12 : f32 to vector<128x1xf32>
    %51 = arith.subf %49, %50 : vector<128x1xf32>
    %52 = arith.mulf %38, %38 : vector<128x1xf32>
    %53 = arith.mulf %37, %52 : vector<128x1xf32>
    %54 = arith.mulf %51, %51 : vector<128x1xf32>
    %55 = arith.addf %53, %54 : vector<128x1xf32>
    %cst_13 = arith.constant 1.000000e+00 : f32
    %56 = vector.broadcast %cst_13 : f32 to vector<128x1xf32>
    %57 = arith.addf %56, %10 : vector<128x1xf32>
    %cst_14 = arith.constant 9.99999993E-9 : f32
    %58 = vector.broadcast %cst_14 : f32 to vector<128x1xf32>
    %59 = arith.addf %57, %58 : vector<128x1xf32>
    %60 = tpu.reciprocal %59 : vector<128x1xf32> -> vector<128x1xf32>
    %61 = math.log %59 : vector<128x1xf32>
    %cst_15 = arith.constant 0.000000e+00 : f32
    %62 = vector.broadcast %cst_15 : f32 to vector<128x1xf32>
    %63 = arith.subf %62, %61 : vector<128x1xf32>
    %cst_16 = arith.constant 0.000000e+00 : f32
    %64 = vector.broadcast %cst_16 : f32 to vector<128x1xf32>
    %65 = arith.subf %64, %33 : vector<128x1xf32>
    %cst_17 = arith.constant 0.000000e+00 : f32
    %66 = vector.broadcast %cst_17 : f32 to vector<128x1xf32>
    %67 = arith.maximumf %65, %66 : vector<128x1xf32>
    %68 = vector.broadcast %cst_17 : f32 to vector<128x1xf32>
    %69 = arith.subf %65, %68 : vector<128x1xf32>
    %70 = arith.cmpf one, %69, %69 : vector<128x1xf32>
    %71 = vector.broadcast %cst_17 : f32 to vector<128x1xf32>
    %72 = arith.addf %65, %71 : vector<128x1xf32>
    %73 = math.absf %69 : vector<128x1xf32>
    %cst_18 = arith.constant 0.000000e+00 : f32
    %74 = vector.broadcast %cst_18 : f32 to vector<128x1xf32>
    %75 = arith.subf %74, %73 : vector<128x1xf32>
    %76 = math.exp %75 : vector<128x1xf32>
    %77 = math.log1p %76 : vector<128x1xf32>
    %78 = arith.addf %67, %77 : vector<128x1xf32>
    %79 = arith.select %70, %72, %78 : vector<128x1xi1>, vector<128x1xf32>
    %cst_19 = arith.constant 0.000000e+00 : f32
    %80 = vector.broadcast %cst_19 : f32 to vector<128x1xf32>
    %81 = arith.subf %80, %79 : vector<128x1xf32>
    %82 = arith.subf %63, %81 : vector<128x1xf32>
    %83 = arith.mulf %60, %82 : vector<128x1xf32>
    %84 = tpu.concatenate %48, %55, %83 in 1 : vector<128x1xf32>, vector<128x1xf32>, vector<128x1xf32> -> vector<128x3xf32>
    %85 = vector.broadcast %20 : vector<128x1xf32> to vector<128x3xf32>
    %86 = arith.mulf %84, %85 : vector<128x3xf32>
    %c0_20 = arith.constant 0 : index
    %c0_21 = arith.constant 0 : index
    %87 = vector.load %arg5[%c0_20, %c0_21] : memref<1x3xf32, #tpu.memory_space<vmem>>, vector<1x3xf32>
    %cst_22 = arith.constant dense<0.000000e+00> : vector<3xf32>
    %88 = vector.multi_reduction <add>, %86, %cst_22 [0] : vector<128x3xf32> to vector<3xf32>
    %89 = vector.shape_cast %88 : vector<3xf32> to vector<1x3xf32>
    %90 = arith.addf %87, %89 : vector<1x3xf32>
    %c0_23 = arith.constant 0 : index
    %c0_24 = arith.constant 0 : index
    %91 = vector.load %arg5[%c0_23, %c0_24] : memref<1x3xf32, #tpu.memory_space<vmem>>, vector<1x3xf32>
    tpu.vector_store %arg5[%c0_23, %c0_24], %90 {strides = array<i32>} : memref<1x3xf32, #tpu.memory_space<vmem>>, vector<1x3xf32>,
    %c0_i32_25 = arith.constant 0 : i32
    %92 = arith.cmpi eq, %arg1, %c0_i32_25 : i32
    %93 = arith.extui %92 : i1 to i32
    %c0_i32_26 = arith.constant 0 : i32
    %94 = arith.cmpi ne, %93, %c0_i32_26 : i32
    scf.if %94 {
      %c0_27 = arith.constant 0 : index
      %c0_28 = arith.constant 0 : index
      %95 = vector.load %arg5[%c0_27, %c0_28] : memref<1x3xf32, #tpu.memory_space<vmem>>, vector<1x1xf32>
      %c0_29 = arith.constant 0 : index
      %c1 = arith.constant 1 : index
      %96 = vector.load %arg5[%c0_29, %c1] : memref<1x3xf32, #tpu.memory_space<vmem>>, vector<1x1xf32>
      %c0_30 = arith.constant 0 : index
      %c2 = arith.constant 2 : index
      %97 = vector.load %arg5[%c0_30, %c2] : memref<1x3xf32, #tpu.memory_space<vmem>>, vector<1x1xf32>
      %98 = tpu.iota {dimensions = array<i32: 1>} : vector<8x128xi32>
      %c0_i32_31 = arith.constant 0 : i32
      %99 = vector.broadcast %c0_i32_31 : i32 to vector<8x128xi32>
      %100 = arith.cmpi eq, %98, %99 : vector<8x128xi32>
      %cst_32 = arith.constant 0.000000e+00 : f32
      %101 = vector.shape_cast %95 : vector<1x1xf32> to vector<1x1xf32>
      %102 = vector.broadcast %101 : vector<1x1xf32> to vector<8x128xf32>
      %103 = vector.broadcast %cst_32 : f32 to vector<8x128xf32>
      %104 = arith.select %100, %102, %103 : vector<8x128xi1>, vector<8x128xf32>
      %c1_i32_33 = arith.constant 1 : i32
      %105 = vector.broadcast %c1_i32_33 : i32 to vector<8x128xi32>
      %106 = arith.cmpi eq, %98, %105 : vector<8x128xi32>
      %cst_34 = arith.constant 0.000000e+00 : f32
      %107 = vector.shape_cast %96 : vector<1x1xf32> to vector<1x1xf32>
      %108 = vector.broadcast %107 : vector<1x1xf32> to vector<8x128xf32>
      %109 = vector.broadcast %cst_34 : f32 to vector<8x128xf32>
      %110 = arith.select %106, %108, %109 : vector<8x128xi1>, vector<8x128xf32>
      %111 = arith.addf %104, %110 : vector<8x128xf32>
      %c2_i32 = arith.constant 2 : i32
      %112 = vector.broadcast %c2_i32 : i32 to vector<8x128xi32>
      %113 = arith.cmpi eq, %98, %112 : vector<8x128xi32>
      %cst_35 = arith.constant 0.000000e+00 : f32
      %114 = vector.shape_cast %97 : vector<1x1xf32> to vector<1x1xf32>
      %115 = vector.broadcast %114 : vector<1x1xf32> to vector<8x128xf32>
      %116 = vector.broadcast %cst_35 : f32 to vector<8x128xf32>
      %117 = arith.select %113, %115, %116 : vector<8x128xi1>, vector<8x128xf32>
      %118 = arith.addf %111, %117 : vector<8x128xf32>
      %c0_36 = arith.constant 0 : index
      %c0_37 = arith.constant 0 : index
      %119 = vector.load %arg4[%c0_36, %c0_37] : memref<8x128xf32, #tpu.memory_space<vmem>>, vector<8x128xf32>
      tpu.vector_store %arg4[%c0_36, %c0_37], %118 {strides = array<i32>} : memref<8x128xf32, #tpu.memory_space<vmem>>, vector<8x128xf32>,
    } else {
    }
    return
  }
  func.func @transform_0(%arg0: i32, %arg1: i32) -> (i32, i32) {
    %c1_i32 = arith.constant 1 : i32
    %0 = arith.muli %arg0, %c1_i32 : i32
    %1 = arith.addi %0, %arg1 : i32
    %c0_i32 = arith.constant 0 : i32
    %c0_i32_0 = arith.constant 0 : i32
    return %1, %c0_i32 : i32, i32
  }
  func.func @transform_1(%arg0: i32, %arg1: i32) -> (i32, i32) {
    %c1_i32 = arith.constant 1 : i32
    %0 = arith.muli %arg0, %c1_i32 : i32
    %1 = arith.addi %0, %arg1 : i32
    %c0_i32 = arith.constant 0 : i32
    %c0_i32_0 = arith.constant 0 : i32
    return %c0_i32, %1 : i32, i32
  }
  func.func @transform_2(%arg0: i32, %arg1: i32) -> (i32, i32) {
    %c0_i32 = arith.constant 0 : i32
    %c0_i32_0 = arith.constant 0 : i32
    return %arg0, %c0_i32 : i32, i32
  }
}

</mosaic_0001>

<llo_original>
// kernel: tpu_custom_call.1
$region0: #{tpu_custom_call.1}
  #allocation0 [shape = 'u32[]', space=smem, size = 0x4, offset = 0x4, fixed_abs, tag = 'smem constant byte address 0x4 - core index']
  #allocation1 [shape = 'u32[144,128]{1,0:T(1,128)}', space=vmem, size = 0x12000, scoped, tag = 'internal scratch']
  #allocation2 [shape = 'f32[1,3]{1,0:T(1,128)}', space=vmem, size = 0x200, scoped, tag = 'scratch operand']
  %s0 = inlined_call_operand.vmem [shape: f32[128,16], index: 0, kind: input, shape index: {}]
  %s1 = inlined_call_operand.vmem [shape: f32[2,128], index: 1, kind: input, shape index: {}]
  %s2 = inlined_call_operand.hbm [shape: f32[8,128], index: 2, kind: output, shape index: {}]
  %s3 = sld [smem:[#allocation0]]
  $region26: #{tpu_custom_call.1} parent=0
    _
  %s5 = ssub.s32 1, %s3
  %s6 = scalar_select 0, %s5, %s3
  $region1: #{tpu_custom_call.1} parent=0
    #allocation3 [shape = 'u8[4096]{0}', space=vmem, size = 0x1000, scoped, tag = 'output window, operand 0, single buffered']
    #allocation4 [shape = 's32[1]{0}', space=sflag, size = 0x4, scoped, tag = 'scoped memory for tpu_custom_call.1']
    %7 = vsyncpa [#allocation4], 0
    // Predicated region
    $region2: #{tpu_custom_call.1} parent=1 // pred_check
      _
    $region3: #{tpu_custom_call.1} parent=1 // pred_check_branch
      %9 = sbr.rel (0) target = $region5
    $region4: #{tpu_custom_call.1} parent=1 // pred_region
      %s10 = sadd.s32 0, 0
      %s11 = smul.u32 16, %s10
      %p12 = scmp.lt.s32.totalorder %s11, 15
      %s13 = scalar_select %p12, %s11, 15
      %s14 = smul.addr %s13, 8
      %s15 = scalar_lea.vmem %s0, %s14
      %s16 = sadd.s32 0, 0
      %s17 = smul.u32 16, %s16
    $region5: #{tpu_custom_call.1} parent=1 // pred_fallthru
      _
    // Predicated region
    $region6: #{tpu_custom_call.1} parent=1 // pred_check
      _
    $region7: #{tpu_custom_call.1} parent=1 // pred_check_branch
      %19 = sbr.rel (0) target = $region9
    $region8: #{tpu_custom_call.1} parent=1 // pred_region
      %s20 = sadd.s32 0, 0
      %p21 = scmp.lt.s32.totalorder %s20, 0
      %s22 = scalar_select %p21, %s20, 0
      %s23 = smul.addr %s22, 2
      %s24 = scalar_lea.vmem %s1, %s23
      %s25 = sadd.s32 0, 0
    $region9: #{tpu_custom_call.1} parent=1 // pred_fallthru
      _
    %s26 = sadd.s32 0, 0
    %s27 = smul.u32 16, %s26
    %p28 = scmp.lt.s32.totalorder %s27, 15
    %s29 = scalar_select %p28, %s27, 15
    %s30 = smul.addr %s29, 8
    %s31 = scalar_lea.vmem %s0, %s30
    %s32 = sadd.s32 0, 0
    %p33 = scmp.lt.s32.totalorder %s32, 0
    %s34 = scalar_select %p33, %s32, 0
    %s35 = smul.addr %s34, 2
    %s36 = scalar_lea.vmem %s1, %s35
    %s37 = sadd.s32 0, 0
    %s38 = smul.u32 16, %s37
    %p39 = scmp.lt.s32.totalorder %s38, 15
    %s40 = scalar_select %p39, %s38, 15
    %s41 = smul.addr %s40, 8
    %s42 = scalar_lea.vmem %s0, %s41
    %s43 = sadd.s32 0, 0
    %s44 = smul.u32 16, %s43
    %s45 = sadd.s32 0, 0
    %p46 = scmp.lt.s32.totalorder %s45, 0
    %s47 = scalar_select %p46, %s45, 0
    %s48 = smul.addr %s47, 2
    %s49 = scalar_lea.vmem %s1, %s48
    %s50 = sadd.s32 0, 0
    %p51 = scmp.eq.s32.totalorder 0, 0
    // Predicated region
    $region10: #{tpu_custom_call.1} parent=1 // pred_check
      %p52 = pneg %p51
    $region11: #{tpu_custom_call.1} parent=1 // pred_check_branch
      %54 = sbr.rel (%p52) target = $region13
    $region12: #{tpu_custom_call.1} parent=1 // pred_region
      %vm55 = vcmask 16384
      %56 = vst.msk [vmem:[#allocation2] sm:$0x1] %vm55, 0.0
    $region13: #{tpu_custom_call.1} parent=1 // pred_fallthru
      _
    %v57 = vld [vmem:[%s42] sm:$0xff]
    %v58 = vld [vmem:[%s42 + $0x8] sm:$0xff]
    %v59 = vld [vmem:[%s42 + $0x10] sm:$0xff]
    %v60 = vld [vmem:[%s42 + $0x18] sm:$0xff]
    %v61 = vld [vmem:[%s42 + $0x20] sm:$0xff]
    %v62 = vld [vmem:[%s42 + $0x28] sm:$0xff]
    %v63 = vld [vmem:[%s42 + $0x30] sm:$0xff]
    %v64 = vld [vmem:[%s42 + $0x38] sm:$0xff]
    %v65 = vld [vmem:[%s42 + $0x40] sm:$0xff]
    %v66 = vld [vmem:[%s42 + $0x48] sm:$0xff]
    %v67 = vld [vmem:[%s42 + $0x50] sm:$0xff]
    %v68 = vld [vmem:[%s42 + $0x58] sm:$0xff]
    %v69 = vld [vmem:[%s42 + $0x60] sm:$0xff]
    %v70 = vld [vmem:[%s42 + $0x68] sm:$0xff]
    %v71 = vld [vmem:[%s42 + $0x70] sm:$0xff]
    %v72 = vld [vmem:[%s42 + $0x78] sm:$0xff]
    %v73 = vld [vmem:[%s49] sm:$0x3]
    %vm74 = vcmask 1041408
    %v75 = vsel %vm74, %v73, 0.0
    %76 = vxpose.xlu0.b32.start [1/16] %v75, 128
    %77 = vxpose.xlu0.b32.cont [2/16] 0.0, 128
    %78 = vxpose.xlu0.b32.cont [3/16] 0.0, 128
    %79 = vxpose.xlu0.b32.cont [4/16] 0.0, 128
    %80 = vxpose.xlu0.b32.cont [5/16] 0.0, 128
    %81 = vxpose.xlu0.b32.cont [6/16] 0.0, 128
    %82 = vxpose.xlu0.b32.cont [7/16] 0.0, 128
    %83 = vxpose.xlu0.b32.cont [8/16] 0.0, 128
    %84 = vxpose.xlu0.b32.cont [9/16] 0.0, 128
    %85 = vxpose.xlu0.b32.cont [10/16] 0.0, 128
    %86 = vxpose.xlu0.b32.cont [11/16] 0.0, 128
    %87 = vxpose.xlu0.b32.cont [12/16] 0.0, 128
    %88 = vxpose.xlu0.b32.cont [13/16] 0.0, 128
    %89 = vxpose.xlu0.b32.cont [14/16] 0.0, 128
    %90 = vxpose.xlu0.b32.cont [15/16] 0.0, 128
    %91 = vxpose.xlu0.b32.end [16/16] 0.0, 128
    %v92 = vpop.trf.xlu0
    %v93 = vpop.trf.xlu0
    %v94 = vpop.trf.xlu0
    %v95 = vpop.trf.xlu0
    %v96 = vpop.trf.xlu0
    %v97 = vpop.trf.xlu0
    %v98 = vpop.trf.xlu0
    %v99 = vpop.trf.xlu0
    %v100 = vpop.trf.xlu0
    %v101 = vpop.trf.xlu0
    %v102 = vpop.trf.xlu0
    %v103 = vpop.trf.xlu0
    %v104 = vpop.trf.xlu0
    %v105 = vpop.trf.xlu0
    %v106 = vpop.trf.xlu0
    %v107 = vpop.trf.xlu0
    %v108 = vcvt.f32.s32.to.zero.pseudo %v92
    %v109 = vcvt.f32.s32.to.zero.pseudo %v93
    %v110 = vcvt.f32.s32.to.zero.pseudo %v94
    %v111 = vcvt.f32.s32.to.zero.pseudo %v95
    %v112 = vcvt.f32.s32.to.zero.pseudo %v96
    %v113 = vcvt.f32.s32.to.zero.pseudo %v97
    %v114 = vcvt.f32.s32.to.zero.pseudo %v98
    %v115 = vcvt.f32.s32.to.zero.pseudo %v99
    %v116 = vcvt.f32.s32.to.zero.pseudo %v100
    %v117 = vcvt.f32.s32.to.zero.pseudo %v101
    %v118 = vcvt.f32.s32.to.zero.pseudo %v102
    %v119 = vcvt.f32.s32.to.zero.pseudo %v103
    %v120 = vcvt.f32.s32.to.zero.pseudo %v104
    %v121 = vcvt.f32.s32.to.zero.pseudo %v105
    %v122 = vcvt.f32.s32.to.zero.pseudo %v106
    %v123 = vcvt.f32.s32.to.zero.pseudo %v107
    %s124 = sadd.s32 0, 0
    %s125 = smul.u32 %s124, 128
    %v126 = vlaneseq
    %v127 = vshrl.u32 %v126, 7
    %v128 = vadd.s32 %v127, 8
    %v129 = vadd.s32 %v127, 16
    %v130 = vadd.s32 %v127, 24
    %v131 = vadd.s32 %v127, 32
    %v132 = vadd.s32 %v127, 40
    %v133 = vadd.s32 %v127, 48
    %v134 = vadd.s32 %v127, 56
    %v135 = vadd.s32 %v127, 64
    %v136 = vadd.s32 %v127, 72
    %v137 = vadd.s32 %v127, 80
    %v138 = vadd.s32 %v127, 88
    %v139 = vadd.s32 %v127, 96
    %v140 = vadd.s32 %v127, 104
    %v141 = vadd.s32 %v127, 112
    %v142 = vadd.s32 %v127, 120
    %v143 = vstv %s125
    %v144 = vadd.s32 %v127, %v143
    %v145 = vadd.s32 %v128, %v143
    %v146 = vadd.s32 %v129, %v143
    %v147 = vadd.s32 %v130, %v143
    %v148 = vadd.s32 %v131, %v143
    %v149 = vadd.s32 %v132, %v143
    %v150 = vadd.s32 %v133, %v143
    %v151 = vadd.s32 %v134, %v143
    %v152 = vadd.s32 %v135, %v143
    %v153 = vadd.s32 %v136, %v143
    %v154 = vadd.s32 %v137, %v143
    %v155 = vadd.s32 %v138, %v143
    %v156 = vadd.s32 %v139, %v143
    %v157 = vadd.s32 %v140, %v143
    %v158 = vadd.s32 %v141, %v143
    %v159 = vadd.s32 %v142, %v143
    %vm160 = vcmp.lt.s32.totalorder %v144, 12
    %vm161 = vcmp.lt.s32.totalorder %v145, 12
    %vm162 = vcmp.lt.s32.totalorder %v146, 12
    %vm163 = vcmp.lt.s32.totalorder %v147, 12
    %vm164 = vcmp.lt.s32.totalorder %v148, 12
    %vm165 = vcmp.lt.s32.totalorder %v149, 12
    %vm166 = vcmp.lt.s32.totalorder %v150, 12
    %vm167 = vcmp.lt.s32.totalorder %v151, 12
    %vm168 = vcmp.lt.s32.totalorder %v152, 12
    %vm169 = vcmp.lt.s32.totalorder %v153, 12
    %vm170 = vcmp.lt.s32.totalorder %v154, 12
    %vm171 = vcmp.lt.s32.totalorder %v155, 12
    %vm172 = vcmp.lt.s32.totalorder %v156, 12
    %vm173 = vcmp.lt.s32.totalorder %v157, 12
    %vm174 = vcmp.lt.s32.totalorder %v158, 12
    %vm175 = vcmp.lt.s32.totalorder %v159, 12
    %v176 = vsel %vm160, 1, 0
    %v177 = vsel %vm161, 1, 0
    %v178 = vsel %vm162, 1, 0
    %v179 = vsel %vm163, 1, 0
    %v180 = vsel %vm164, 1, 0
    %v181 = vsel %vm165, 1, 0
    %v182 = vsel %vm166, 1, 0
    %v183 = vsel %vm167, 1, 0
    %v184 = vsel %vm168, 1, 0
    %v185 = vsel %vm169, 1, 0
    %v186 = vsel %vm170, 1, 0
    %v187 = vsel %vm171, 1, 0
    %v188 = vsel %vm172, 1, 0
    %v189 = vsel %vm173, 1, 0
    %v190 = vsel %vm174, 1, 0
    %v191 = vsel %vm175, 1, 0
    %v192 = vcvt.s32.f32 %v176
    %v193 = vcvt.s32.f32 %v177
    %v194 = vcvt.s32.f32 %v178
    %v195 = vcvt.s32.f32 %v179
    %v196 = vcvt.s32.f32 %v180
    %v197 = vcvt.s32.f32 %v181
    %v198 = vcvt.s32.f32 %v182
    %v199 = vcvt.s32.f32 %v183
    %v200 = vcvt.s32.f32 %v184
    %v201 = vcvt.s32.f32 %v185
    %v202 = vcvt.s32.f32 %v186
    %v203 = vcvt.s32.f32 %v187
    %v204 = vcvt.s32.f32 %v188
    %v205 = vcvt.s32.f32 %v189
    %v206 = vcvt.s32.f32 %v190
    %v207 = vcvt.s32.f32 %v191
    %v208 = vlaneseq
    %v209 = vand.u32 %v208, 127
    %210 = vset.pattern.permute.xlu0 0
    %211 = vperm.xlu0 %210, %v108
    %v212 = vpop.permute.xlu0 %211
    %213 = vset.pattern.permute.xlu0 0
    %214 = vperm.xlu0 %213, %v109
    %v215 = vpop.permute.xlu0 %214
    %216 = vset.pattern.permute.xlu0 0
    %217 = vperm.xlu0 %216, %v110
    %v218 = vpop.permute.xlu0 %217
    %219 = vset.pattern.permute.xlu0 0
    %220 = vperm.xlu0 %219, %v111
    %v221 = vpop.permute.xlu0 %220
    %222 = vset.pattern.permute.xlu0 0
    %223 = vperm.xlu0 %222, %v112
    %v224 = vpop.permute.xlu0 %223
    %225 = vset.pattern.permute.xlu0 0
    %226 = vperm.xlu0 %225, %v113
    %v227 = vpop.permute.xlu0 %226
    %228 = vset.pattern.permute.xlu0 0
    %229 = vperm.xlu0 %228, %v114
    %v230 = vpop.permute.xlu0 %229
    %231 = vset.pattern.permute.xlu0 0
    %232 = vperm.xlu0 %231, %v115
    %v233 = vpop.permute.xlu0 %232
    %234 = vset.pattern.permute.xlu0 0
    %235 = vperm.xlu0 %234, %v116
    %v236 = vpop.permute.xlu0 %235
    %237 = vset.pattern.permute.xlu0 0
    %238 = vperm.xlu0 %237, %v117
    %v239 = vpop.permute.xlu0 %238
    %240 = vset.pattern.permute.xlu0 0
    %241 = vperm.xlu0 %240, %v118
    %v242 = vpop.permute.xlu0 %241
    %243 = vset.pattern.permute.xlu0 0
    %244 = vperm.xlu0 %243, %v119
    %v245 = vpop.permute.xlu0 %244
    %246 = vset.pattern.permute.xlu0 0
    %247 = vperm.xlu0 %246, %v120
    %v248 = vpop.permute.xlu0 %247
    %249 = vset.pattern.permute.xlu0 0
    %250 = vperm.xlu0 %249, %v121
    %v251 = vpop.permute.xlu0 %250
    %252 = vset.pattern.permute.xlu0 0
    %253 = vperm.xlu0 %252, %v122
    %v254 = vpop.permute.xlu0 %253
    %255 = vset.pattern.permute.xlu0 0
    %256 = vperm.xlu0 %255, %v123
    %v257 = vpop.permute.xlu0 %256
    %vm258 = vcmp.eq.s32.totalorder %v209, %v212
    %vm259 = vcmp.eq.s32.totalorder %v209, %v215
    %vm260 = vcmp.eq.s32.totalorder %v209, %v218
    %vm261 = vcmp.eq.s32.totalorder %v209, %v221
    %vm262 = vcmp.eq.s32.totalorder %v209, %v224
    %vm263 = vcmp.eq.s32.totalorder %v209, %v227
    %vm264 = vcmp.eq.s32.totalorder %v209, %v230
    %vm265 = vcmp.eq.s32.totalorder %v209, %v233
    %vm266 = vcmp.eq.s32.totalorder %v209, %v236
    %vm267 = vcmp.eq.s32.totalorder %v209, %v239
    %vm268 = vcmp.eq.s32.totalorder %v209, %v242
    %vm269 = vcmp.eq.s32.totalorder %v209, %v245
    %vm270 = vcmp.eq.s32.totalorder %v209, %v248
    %vm271 = vcmp.eq.s32.totalorder %v209, %v251
    %vm272 = vcmp.eq.s32.totalorder %v209, %v254
    %vm273 = vcmp.eq.s32.totalorder %v209, %v257
    %vm274 = vcmask 130048
    %v275 = vsel %vm274, %v57, -inf
    %276 = vmax.xlane.f32.xlu0 %v275
    %v277 = vpop.xlane.xlu0 %276
    %v278 = vsel %vm274, %v58, -inf
    %279 = vmax.xlane.f32.xlu0 %v278
    %v280 = vpop.xlane.xlu0 %279
    %v281 = vsel %vm274, %v59, -inf
    %282 = vmax.xlane.f32.xlu0 %v281
    %v283 = vpop.xlane.xlu0 %282
    %v284 = vsel %vm274, %v60, -inf
    %285 = vmax.xlane.f32.xlu0 %v284
    %v286 = vpop.xlane.xlu0 %285
    %v287 = vsel %vm274, %v61, -inf
    %288 = vmax.xlane.f32.xlu0 %v287
    %v289 = vpop.xlane.xlu0 %288
    %v290 = vsel %vm274, %v62, -inf
    %291 = vmax.xlane.f32.xlu0 %v290
    %v292 = vpop.xlane.xlu0 %291
    %v293 = vsel %vm274, %v63, -inf
    %294 = vmax.xlane.f32.xlu0 %v293
    %v295 = vpop.xlane.xlu0 %294
    %v296 = vsel %vm274, %v64, -inf
    %297 = vmax.xlane.f32.xlu0 %v296
    %v298 = vpop.xlane.xlu0 %297
    %v299 = vsel %vm274, %v65, -inf
    %300 = vmax.xlane.f32.xlu0 %v299
    %v301 = vpop.xlane.xlu0 %300
    %v302 = vsel %vm274, %v66, -inf
    %303 = vmax.xlane.f32.xlu0 %v302
    %v304 = vpop.xlane.xlu0 %303
    %v305 = vsel %vm274, %v67, -inf
    %306 = vmax.xlane.f32.xlu0 %v305
    %v307 = vpop.xlane.xlu0 %306
    %v308 = vsel %vm274, %v68, -inf
    %309 = vmax.xlane.f32.xlu0 %v308
    %v310 = vpop.xlane.xlu0 %309
    %v311 = vsel %vm274, %v69, -inf
    %312 = vmax.xlane.f32.xlu0 %v311
    %v313 = vpop.xlane.xlu0 %312
    %v314 = vsel %vm274, %v70, -inf
    %315 = vmax.xlane.f32.xlu0 %v314
    %v316 = vpop.xlane.xlu0 %315
    %v317 = vsel %vm274, %v71, -inf
    %318 = vmax.xlane.f32.xlu0 %v317
    %v319 = vpop.xlane.xlu0 %318
    %v320 = vsel %vm274, %v72, -inf
    %321 = vmax.xlane.f32.xlu0 %v320
    %v322 = vpop.xlane.xlu0 %321
    %v323 = vsub.f32 %v57, %v277
    %v324 = vsub.f32 %v58, %v280
    %v325 = vsub.f32 %v59, %v283
    %v326 = vsub.f32 %v60, %v286
    %v327 = vsub.f32 %v61, %v289
    %v328 = vsub.f32 %v62, %v292
    %v329 = vsub.f32 %v63, %v295
    %v330 = vsub.f32 %v64, %v298
    %v331 = vsub.f32 %v65, %v301
    %v332 = vsub.f32 %v66, %v304
    %v333 = vsub.f32 %v67, %v307
    %v334 = vsub.f32 %v68, %v310
    %v335 = vsub.f32 %v69, %v313
    %v336 = vsub.f32 %v70, %v316
    %v337 = vsub.f32 %v71, %v319
    %v338 = vsub.f32 %v72, %v322
    %v339 = vmul.f32 %v323, 1.442695
    %v340 = vpow.pop %v339
    %v341 = vmul.f32 %v324, 1.442695
    %v342 = vpow.pop %v341
    %v343 = vmul.f32 %v325, 1.442695
    %v344 = vpow.pop %v343
    %v345 = vmul.f32 %v326, 1.442695
    %v346 = vpow.pop %v345
    %v347 = vmul.f32 %v327, 1.442695
    %v348 = vpow.pop %v347
    %v349 = vmul.f32 %v328, 1.442695
    %v350 = vpow.pop %v349
    %v351 = vmul.f32 %v329, 1.442695
    %v352 = vpow.pop %v351
    %v353 = vmul.f32 %v330, 1.442695
    %v354 = vpow.pop %v353
    %v355 = vmul.f32 %v331, 1.442695
    %v356 = vpow.pop %v355
    %v357 = vmul.f32 %v332, 1.442695
    %v358 = vpow.pop %v357
    %v359 = vmul.f32 %v333, 1.442695
    %v360 = vpow.pop %v359
    %v361 = vmul.f32 %v334, 1.442695
    %v362 = vpow.pop %v361
    %v363 = vmul.f32 %v335, 1.442695
    %v364 = vpow.pop %v363
    %v365 = vmul.f32 %v336, 1.442695
    %v366 = vpow.pop %v365
    %v367 = vmul.f32 %v337, 1.442695
    %v368 = vpow.pop %v367
    %v369 = vmul.f32 %v338, 1.442695
    %v370 = vpow.pop %v369
    %v372 = vsel %vm274, %v340, 0
    %v375 = vsel %vm274, %v342, 0
    %v378 = vsel %vm274, %v344, 0
    %v381 = vsel %vm274, %v346, 0
    %v384 = vsel %vm274, %v348, 0
    %v387 = vsel %vm274, %v350, 0
    %v390 = vsel %vm274, %v352, 0
    %v393 = vsel %vm274, %v354, 0
    %v396 = vsel %vm274, %v356, 0
    %v399 = vsel %vm274, %v358, 0
    %v402 = vsel %vm274, %v360, 0
    %v405 = vsel %vm274, %v362, 0
    %v408 = vsel %vm274, %v364, 0
    %v411 = vsel %vm274, %v366, 0
    %v414 = vsel %vm274, %v368, 0
    %v417 = vsel %vm274, %v370, 0
    %419 = vmatprep.subr.mxu0 0.0
    %420 = vmatpush1.msra.mxu0 0.0
    %421 = vmatprep.subr.mxu0 0.0
    %422 = vmatpush1.msra.mxu0 0.0
    %423 = vmatprep.subr.mxu0 0.0
    %424 = vmatpush1.msra.mxu0 0.0
    %425 = vmatprep.subr.mxu0 0.0
    %426 = vmatpush1.msra.mxu0 0.0
    %427 = vmatprep.subr.mxu0 0.0
    %428 = vmatpush1.msra.mxu0 0.0
    %429 = vmatprep.subr.mxu0 0.0
    %430 = vmatpush1.msra.mxu0 0.0
    %431 = vmatprep.subr.mxu0 0.0
    %432 = vmatpush1.msra.mxu0 0.0
    %433 = vmatprep.subr.mxu0 0.0
    %434 = vmatpush1.msra.mxu0 0.0
    %435 = vmatprep.subr.mxu0 0.0
    %436 = vmatpush1.msra.mxu0 0.0
    %437 = vmatprep.subr.mxu0 0.0
    %438 = vmatpush1.msra.mxu0 0.0
    %439 = vmatprep.subr.mxu0 0.0
    %440 = vmatpush1.msra.mxu0 0.0
    %441 = vmatprep.subr.mxu0 0.0
    %442 = vmatpush1.msra.mxu0 0.0
    %443 = vmatprep.subr.mxu0 0.0
    %444 = vmatpush1.msra.mxu0 0.0
    %445 = vmatprep.subr.mxu0 0.0
    %446 = vmatpush1.msra.mxu0 0.0
    %447 = vmatprep.subr.mxu0 0.0
    %448 = vmatpush1.msra.mxu0 1.0
    %449 = vmatprep.subr.mxu0 0.0
    %450 = vmatpush1.msra.mxu0 1.0
    %451 = vmatprep.subr.mxu0 0.0
    %452 = vmatpush2.msra.mxu0 0.0
    %453 = vmatprep.subr.mxu0 0.0
    %454 = vmatpush2.msra.mxu0 0.0
    %455 = vmatprep.subr.mxu0 0.0
    %456 = vmatpush2.msra.mxu0 0.0
    %457 = vmatprep.subr.mxu0 0.0
    %458 = vmatpush2.msra.mxu0 0.0
    %459 = vmatprep.subr.mxu0 0.0
    %460 = vmatpush2.msra.mxu0 0.0
    %461 = vmatprep.subr.mxu0 0.0
    %462 = vmatpush2.msra.mxu0 0.0
    %463 = vmatprep.subr.mxu0 0.0
    %464 = vmatpush2.msra.mxu0 0.0
    %465 = vmatprep.subr.mxu0 0.0
    %466 = vmatpush2.msra.mxu0 0.0
    %467 = vmatprep.subr.mxu0 0.0
    %468 = vmatpush2.msra.mxu0 0.0
    %469 = vmatprep.subr.mxu0 0.0
    %470 = vmatpush2.msra.mxu0 0.0
    %471 = vmatprep.subr.mxu0 0.0
    %472 = vmatpush2.msra.mxu0 0.0
    %473 = vmatprep.subr.mxu0 0.0
    %474 = vmatpush2.msra.mxu0 0.0
    %475 = vmatprep.subr.mxu0 0.0
    %476 = vmatpush2.msra.mxu0 0.0
    %477 = vmatprep.subr.mxu0 0.0
    %478 = vmatpush2.msra.mxu0 0.0
    %479 = vmatprep.subr.mxu0 0.0
    %480 = vmatpush2.msra.mxu0 0.0
    %481 = vmatprep.subr.mxu0 0.0
    %482 = vmatpush2.msra.mxu0 0.0
    %483 = vmatprep.mubr.f32.mxu0 0.0
    %v484 = vand.u32 %v372, 4294901760
    %v485 = vsub.f32 %v372, %v484
    %v486 = vand.u32 %v485, 4294901760
    %v487 = vsub.f32 %v485, %v486
    %v488 = vand.u32 %v487, 4294901760
    %489 = vmatmul.mubr.f32.gmra.mxu0 %v488
    %v490 = vpop.f32.mrf.mxu0
    %v491 = vadd.f32 0.0, %v490
    %v492 = vpop.f32.mrf.mxu0
    %493 = vmatprep.mubr.f32.mxu0 0.0
    %v494 = vand.u32 %v375, 4294901760
    %v495 = vsub.f32 %v375, %v494
    %v496 = vand.u32 %v495, 4294901760
    %v497 = vsub.f32 %v495, %v496
    %v498 = vand.u32 %v497, 4294901760
    %499 = vmatmul.mubr.f32.gmra.mxu0 %v498
    %v500 = vpop.f32.mrf.mxu0
    %v501 = vadd.f32 0.0, %v500
    %v502 = vpop.f32.mrf.mxu0
    %503 = vmatprep.mubr.f32.mxu0 0.0
    %v504 = vand.u32 %v378, 4294901760
    %v505 = vsub.f32 %v378, %v504
    %v506 = vand.u32 %v505, 4294901760
    %v507 = vsub.f32 %v505, %v506
    %v508 = vand.u32 %v507, 4294901760
    %509 = vmatmul.mubr.f32.gmra.mxu0 %v508
    %v510 = vpop.f32.mrf.mxu0
    %v511 = vadd.f32 0.0, %v510
    %v512 = vpop.f32.mrf.mxu0
    %513 = vmatprep.mubr.f32.mxu0 0.0
    %v514 = vand.u32 %v381, 4294901760
    %v515 = vsub.f32 %v381, %v514
    %v516 = vand.u32 %v515, 4294901760
    %v517 = vsub.f32 %v515, %v516
    %v518 = vand.u32 %v517, 4294901760
    %519 = vmatmul.mubr.f32.gmra.mxu0 %v518
    %v520 = vpop.f32.mrf.mxu0
    %v521 = vadd.f32 0.0, %v520
    %v522 = vpop.f32.mrf.mxu0
    %523 = vmatprep.mubr.f32.mxu0 0.0
    %v524 = vand.u32 %v384, 4294901760
    %v525 = vsub.f32 %v384, %v524
    %v526 = vand.u32 %v525, 4294901760
    %v527 = vsub.f32 %v525, %v526
    %v528 = vand.u32 %v527, 4294901760
    %529 = vmatmul.mubr.f32.gmra.mxu0 %v528
    %v530 = vpop.f32.mrf.mxu0
    %v531 = vadd.f32 0.0, %v530
    %v532 = vpop.f32.mrf.mxu0
    %533 = vmatprep.mubr.f32.mxu0 0.0
    %v534 = vand.u32 %v387, 4294901760
    %v535 = vsub.f32 %v387, %v534
    %v536 = vand.u32 %v535, 4294901760
    %v537 = vsub.f32 %v535, %v536
    %v538 = vand.u32 %v537, 4294901760
    %539 = vmatmul.mubr.f32.gmra.mxu0 %v538
    %v540 = vpop.f32.mrf.mxu0
    %v541 = vadd.f32 0.0, %v540
    %v542 = vpop.f32.mrf.mxu0
    %543 = vmatprep.mubr.f32.mxu0 0.0
    %v544 = vand.u32 %v390, 4294901760
    %v545 = vsub.f32 %v390, %v544
    %v546 = vand.u32 %v545, 4294901760
    %v547 = vsub.f32 %v545, %v546
    %v548 = vand.u32 %v547, 4294901760
    %549 = vmatmul.mubr.f32.gmra.mxu0 %v548
    %v550 = vpop.f32.mrf.mxu0
    %v551 = vadd.f32 0.0, %v550
    %v552 = vpop.f32.mrf.mxu0
    %553 = vmatprep.mubr.f32.mxu0 0.0
    %v554 = vand.u32 %v393, 4294901760
    %v555 = vsub.f32 %v393, %v554
    %v556 = vand.u32 %v555, 4294901760
    %v557 = vsub.f32 %v555, %v556
    %v558 = vand.u32 %v557, 4294901760
    %559 = vmatmul.mubr.f32.gmra.mxu0 %v558
    %v560 = vpop.f32.mrf.mxu0
    %v561 = vadd.f32 0.0, %v560
    %v562 = vpop.f32.mrf.mxu0
    %563 = vmatprep.mubr.f32.mxu0 0.0
    %v564 = vand.u32 %v396, 4294901760
    %v565 = vsub.f32 %v396, %v564
    %v566 = vand.u32 %v565, 4294901760
    %v567 = vsub.f32 %v565, %v566
    %v568 = vand.u32 %v567, 4294901760
    %569 = vmatmul.mubr.f32.gmra.mxu0 %v568
    %v570 = vpop.f32.mrf.mxu0
    %v571 = vadd.f32 0.0, %v570
    %v572 = vpop.f32.mrf.mxu0
    %573 = vmatprep.mubr.f32.mxu0 0.0
    %v574 = vand.u32 %v399, 4294901760
    %v575 = vsub.f32 %v399, %v574
    %v576 = vand.u32 %v575, 4294901760
    %v577 = vsub.f32 %v575, %v576
    %v578 = vand.u32 %v577, 4294901760
    %579 = vmatmul.mubr.f32.gmra.mxu0 %v578
    %v580 = vpop.f32.mrf.mxu0
    %v581 = vadd.f32 0.0, %v580
    %v582 = vpop.f32.mrf.mxu0
    %583 = vmatprep.mubr.f32.mxu0 0.0
    %v584 = vand.u32 %v402, 4294901760
    %v585 = vsub.f32 %v402, %v584
    %v586 = vand.u32 %v585, 4294901760
    %v587 = vsub.f32 %v585, %v586
    %v588 = vand.u32 %v587, 4294901760
    %589 = vmatmul.mubr.f32.gmra.mxu0 %v588
    %v590 = vpop.f32.mrf.mxu0
    %v591 = vadd.f32 0.0, %v590
    %v592 = vpop.f32.mrf.mxu0
    %593 = vmatprep.mubr.f32.mxu0 0.0
    %v594 = vand.u32 %v405, 4294901760
    %v595 = vsub.f32 %v405, %v594
    %v596 = vand.u32 %v595, 4294901760
    %v597 = vsub.f32 %v595, %v596
    %v598 = vand.u32 %v597, 4294901760
    %599 = vmatmul.mubr.f32.gmra.mxu0 %v598
    %v600 = vpop.f32.mrf.mxu0
    %v601 = vadd.f32 0.0, %v600
    %v602 = vpop.f32.mrf.mxu0
    %603 = vmatprep.mubr.f32.mxu0 0.0
    %v604 = vand.u32 %v408, 4294901760
    %v605 = vsub.f32 %v408, %v604
    %v606 = vand.u32 %v605, 4294901760
    %v607 = vsub.f32 %v605, %v606
    %v608 = vand.u32 %v607, 4294901760
    %609 = vmatmul.mubr.f32.gmra.mxu0 %v608
    %v610 = vpop.f32.mrf.mxu0
    %v611 = vadd.f32 0.0, %v610
    %v612 = vpop.f32.mrf.mxu0
    %613 = vmatprep.mubr.f32.mxu0 0.0
    %v614 = vand.u32 %v411, 4294901760
    %v615 = vsub.f32 %v411, %v614
    %v616 = vand.u32 %v615, 4294901760
    %v617 = vsub.f32 %v615, %v616
    %v618 = vand.u32 %v617, 4294901760
    %619 = vmatmul.mubr.f32.gmra.mxu0 %v618
    %v620 = vpop.f32.mrf.mxu0
    %v621 = vadd.f32 0.0, %v620
    %v622 = vpop.f32.mrf.mxu0
    %623 = vmatprep.mubr.f32.mxu0 0.0
    %v624 = vand.u32 %v414, 4294901760
    %v625 = vsub.f32 %v414, %v624
    %v626 = vand.u32 %v625, 4294901760
    %v627 = vsub.f32 %v625, %v626
    %v628 = vand.u32 %v627, 4294901760
    %629 = vmatmul.mubr.f32.gmra.mxu0 %v628
    %v630 = vpop.f32.mrf.mxu0
    %v631 = vadd.f32 0.0, %v630
    %v632 = vpop.f32.mrf.mxu0
    %633 = vmatprep.mubr.f32.mxu0 0.0
    %v634 = vand.u32 %v417, 4294901760
    %v635 = vsub.f32 %v417, %v634
    %v636 = vand.u32 %v635, 4294901760
    %v637 = vsub.f32 %v635, %v636
    %v638 = vand.u32 %v637, 4294901760
    %639 = vmatmul.mubr.f32.gmra.mxu0 %v638
    %v640 = vpop.f32.mrf.mxu0
    %v641 = vadd.f32 0.0, %v640
    %v642 = vpop.f32.mrf.mxu0
    %643 = vdwg.mxu0
    %644 = vmatprep.subr.mxu0 0.0
    %645 = vmatpush1.msra.mxu0 0.0
    %646 = vmatprep.subr.mxu0 0.0
    %647 = vmatpush1.msra.mxu0 0.0
    %648 = vmatprep.subr.mxu0 0.0
    %649 = vmatpush1.msra.mxu0 0.0
    %650 = vmatprep.subr.mxu0 0.0
    %651 = vmatpush1.msra.mxu0 0.0
    %652 = vmatprep.subr.mxu0 0.0
    %653 = vmatpush1.msra.mxu0 0.0
    %654 = vmatprep.subr.mxu0 0.0
    %655 = vmatpush1.msra.mxu0 0.0
    %656 = vmatprep.subr.mxu0 0.0
    %657 = vmatpush1.msra.mxu0 0.0
    %658 = vmatprep.subr.mxu0 0.0
    %659 = vmatpush1.msra.mxu0 0.0
    %660 = vmatprep.subr.mxu0 0.0
    %661 = vmatpush1.msra.mxu0 0.0
    %662 = vmatprep.subr.mxu0 0.0
    %663 = vmatpush1.msra.mxu0 0.0
    %664 = vmatprep.subr.mxu0 0.0
    %665 = vmatpush1.msra.mxu0 0.0
    %666 = vmatprep.subr.mxu0 0.0
    %667 = vmatpush1.msra.mxu0 0.0
    %668 = vmatprep.subr.mxu0 0.0
    %669 = vmatpush1.msra.mxu0 0.0
    %670 = vmatprep.subr.mxu0 0.0
    %671 = vmatpush1.msra.mxu0 0.0
    %672 = vmatprep.subr.mxu0 0.0
    %673 = vmatpush1.msra.mxu0 0.0
    %674 = vmatprep.subr.mxu0 0.0
    %675 = vmatpush1.msra.mxu0 0.0
    %676 = vmatprep.subr.mxu0 0.0
    %677 = vmatpush2.msra.mxu0 0.0
    %678 = vmatprep.subr.mxu0 0.0
    %679 = vmatpush2.msra.mxu0 0.0
    %680 = vmatprep.subr.mxu0 0.0
    %681 = vmatpush2.msra.mxu0 0.0
    %682 = vmatprep.subr.mxu0 0.0
    %683 = vmatpush2.msra.mxu0 0.0
    %684 = vmatprep.subr.mxu0 0.0
    %685 = vmatpush2.msra.mxu0 0.0
    %686 = vmatprep.subr.mxu0 0.0
    %687 = vmatpush2.msra.mxu0 0.0
    %688 = vmatprep.subr.mxu0 0.0
    %689 = vmatpush2.msra.mxu0 0.0
    %690 = vmatprep.subr.mxu0 0.0
    %691 = vmatpush2.msra.mxu0 0.0
    %692 = vmatprep.subr.mxu0 0.0
    %693 = vmatpush2.msra.mxu0 0.0
    %694 = vmatprep.subr.mxu0 0.0
    %695 = vmatpush2.msra.mxu0 0.0
    %696 = vmatprep.subr.mxu0 0.0
    %697 = vmatpush2.msra.mxu0 0.0
    %698 = vmatprep.subr.mxu0 0.0
    %699 = vmatpush2.msra.mxu0 0.0
    %700 = vmatprep.subr.mxu0 0.0
    %701 = vmatpush2.msra.mxu0 0.0
    %702 = vmatprep.subr.mxu0 0.0
    %703 = vmatpush2.msra.mxu0 0.0
    %704 = vmatprep.subr.mxu0 0.0
    %705 = vmatpush2.msra.mxu0 0.0
    %706 = vmatprep.subr.mxu0 0.0
    %707 = vmatpush2.msra.mxu0 0.0
    %708 = vmatprep.mubr.f32.mxu0 0.0
    %v709 = vand.u32 %v372, 4294901760
    %710 = vmatmul.mubr.f32.gmra.mxu0 %v709
    %v711 = vpop.f32.mrf.mxu0
    %v712 = vadd.f32 %v491, %v711
    %v713 = vpop.f32.mrf.mxu0
    %714 = vmatprep.mubr.f32.mxu0 0.0
    %v715 = vand.u32 %v375, 4294901760
    %716 = vmatmul.mubr.f32.gmra.mxu0 %v715
    %v717 = vpop.f32.mrf.mxu0
    %v718 = vadd.f32 %v501, %v717
    %v719 = vpop.f32.mrf.mxu0
    %720 = vmatprep.mubr.f32.mxu0 0.0
    %v721 = vand.u32 %v378, 4294901760
    %722 = vmatmul.mubr.f32.gmra.mxu0 %v721
    %v723 = vpop.f32.mrf.mxu0
    %v724 = vadd.f32 %v511, %v723
    %v725 = vpop.f32.mrf.mxu0
    %726 = vmatprep.mubr.f32.mxu0 0.0
    %v727 = vand.u32 %v381, 4294901760
    %728 = vmatmul.mubr.f32.gmra.mxu0 %v727
    %v729 = vpop.f32.mrf.mxu0
    %v730 = vadd.f32 %v521, %v729
    %v731 = vpop.f32.mrf.mxu0
    %732 = vmatprep.mubr.f32.mxu0 0.0
    %v733 = vand.u32 %v384, 4294901760
    %734 = vmatmul.mubr.f32.gmra.mxu0 %v733
    %v735 = vpop.f32.mrf.mxu0
    %v736 = vadd.f32 %v531, %v735
    %v737 = vpop.f32.mrf.mxu0
    %738 = vmatprep.mubr.f32.mxu0 0.0
    %v739 = vand.u32 %v387, 4294901760
    %740 = vmatmul.mubr.f32.gmra.mxu0 %v739
    %v741 = vpop.f32.mrf.mxu0
    %v742 = vadd.f32 %v541, %v741
    %v743 = vpop.f32.mrf.mxu0
    %744 = vmatprep.mubr.f32.mxu0 0.0
    %v745 = vand.u32 %v390, 4294901760
    %746 = vmatmul.mubr.f32.gmra.mxu0 %v745
    %v747 = vpop.f32.mrf.mxu0
    %v748 = vadd.f32 %v551, %v747
    %v749 = vpop.f32.mrf.mxu0
    %750 = vmatprep.mubr.f32.mxu0 0.0
    %v751 = vand.u32 %v393, 4294901760
    %752 = vmatmul.mubr.f32.gmra.mxu0 %v751
    %v753 = vpop.f32.mrf.mxu0
    %v754 = vadd.f32 %v561, %v753
    %v755 = vpop.f32.mrf.mxu0
    %756 = vmatprep.mubr.f32.mxu0 0.0
    %v757 = vand.u32 %v396, 4294901760
    %758 = vmatmul.mubr.f32.gmra.mxu0 %v757
    %v759 = vpop.f32.mrf.mxu0
    %v760 = vadd.f32 %v571, %v759
    %v761 = vpop.f32.mrf.mxu0
    %762 = vmatprep.mubr.f32.mxu0 0.0
    %v763 = vand.u32 %v399, 4294901760
    %764 = vmatmul.mubr.f32.gmra.mxu0 %v763
    %v765 = vpop.f32.mrf.mxu0
    %v766 = vadd.f32 %v581, %v765
    %v767 = vpop.f32.mrf.mxu0
    %768 = vmatprep.mubr.f32.mxu0 0.0
    %v769 = vand.u32 %v402, 4294901760
    %770 = vmatmul.mubr.f32.gmra.mxu0 %v769
    %v771 = vpop.f32.mrf.mxu0
    %v772 = vadd.f32 %v591, %v771
    %v773 = vpop.f32.mrf.mxu0
    %774 = vmatprep.mubr.f32.mxu0 0.0
    %v775 = vand.u32 %v405, 4294901760
    %776 = vmatmul.mubr.f32.gmra.mxu0 %v775
    %v777 = vpop.f32.mrf.mxu0
    %v778 = vadd.f32 %v601, %v777
    %v779 = vpop.f32.mrf.mxu0
    %780 = vmatprep.mubr.f32.mxu0 0.0
    %v781 = vand.u32 %v408, 4294901760
    %782 = vmatmul.mubr.f32.gmra.mxu0 %v781
    %v783 = vpop.f32.mrf.mxu0
    %v784 = vadd.f32 %v611, %v783
    %v785 = vpop.f32.mrf.mxu0
    %786 = vmatprep.mubr.f32.mxu0 0.0
    %v787 = vand.u32 %v411, 4294901760
    %788 = vmatmul.mubr.f32.gmra.mxu0 %v787
    %v789 = vpop.f32.mrf.mxu0
    %v790 = vadd.f32 %v621, %v789
    %v791 = vpop.f32.mrf.mxu0
    %792 = vmatprep.mubr.f32.mxu0 0.0
    %v793 = vand.u32 %v414, 4294901760
    %794 = vmatmul.mubr.f32.gmra.mxu0 %v793
    %v795 = vpop.f32.mrf.mxu0
    %v796 = vadd.f32 %v631, %v795
    %v797 = vpop.f32.mrf.mxu0
    %798 = vmatprep.mubr.f32.mxu0 0.0
    %v799 = vand.u32 %v417, 4294901760
    %800 = vmatmul.mubr.f32.gmra.mxu0 %v799
    %v801 = vpop.f32.mrf.mxu0
    %v802 = vadd.f32 %v641, %v801
    %v803 = vpop.f32.mrf.mxu0
    %804 = vdwg.mxu0
    %805 = vmatprep.subr.mxu0 0.0
    %806 = vmatpush1.msra.mxu0 0.0
    %807 = vmatprep.subr.mxu0 0.0
    %808 = vmatpush1.msra.mxu0 0.0
    %809 = vmatprep.subr.mxu0 0.0
    %810 = vmatpush1.msra.mxu0 0.0
    %811 = vmatprep.subr.mxu0 0.0
    %812 = vmatpush1.msra.mxu0 0.0
    %813 = vmatprep.subr.mxu0 0.0
    %814 = vmatpush1.msra.mxu0 0.0
    %815 = vmatprep.subr.mxu0 0.0
    %816 = vmatpush1.msra.mxu0 0.0
    %817 = vmatprep.subr.mxu0 0.0
    %818 = vmatpush1.msra.mxu0 0.0
    %819 = vmatprep.subr.mxu0 0.0
    %820 = vmatpush1.msra.mxu0 0.0
    %821 = vmatprep.subr.mxu0 0.0
    %822 = vmatpush1.msra.mxu0 0.0
    %823 = vmatprep.subr.mxu0 0.0
    %824 = vmatpush1.msra.mxu0 0.0
    %825 = vmatprep.subr.mxu0 0.0
    %826 = vmatpush1.msra.mxu0 0.0
    %827 = vmatprep.subr.mxu0 0.0
    %828 = vmatpush1.msra.mxu0 0.0
    %829 = vmatprep.subr.mxu0 0.0
    %830 = vmatpush1.msra.mxu0 0.0
    %831 = vmatprep.subr.mxu0 0.0
    %832 = vmatpush1.msra.mxu0 0.0
    %833 = vmatprep.subr.mxu0 0.0
    %834 = vmatpush1.msra.mxu0 0.0
    %835 = vmatprep.subr.mxu0 0.0
    %836 = vmatpush1.msra.mxu0 0.0
    %837 = vmatprep.subr.mxu0 0.0
    %838 = vmatpush2.msra.mxu0 0.0
    %839 = vmatprep.subr.mxu0 0.0
    %840 = vmatpush2.msra.mxu0 0.0
    %841 = vmatprep.subr.mxu0 0.0
    %842 = vmatpush2.msra.mxu0 0.0
    %843 = vmatprep.subr.mxu0 0.0
    %844 = vmatpush2.msra.mxu0 0.0
    %845 = vmatprep.subr.mxu0 0.0
    %846 = vmatpush2.msra.mxu0 0.0
    %847 = vmatprep.subr.mxu0 0.0
    %848 = vmatpush2.msra.mxu0 0.0
    %849 = vmatprep.subr.mxu0 0.0
    %850 = vmatpush2.msra.mxu0 0.0
    %851 = vmatprep.subr.mxu0 0.0
    %852 = vmatpush2.msra.mxu0 0.0
    %853 = vmatprep.subr.mxu0 0.0
    %854 = vmatpush2.msra.mxu0 0.0
    %855 = vmatprep.subr.mxu0 0.0
    %856 = vmatpush2.msra.mxu0 0.0
    %857 = vmatprep.subr.mxu0 0.0
    %858 = vmatpush2.msra.mxu0 0.0
    %859 = vmatprep.subr.mxu0 0.0
    %860 = vmatpush2.msra.mxu0 0.0
    %861 = vmatprep.subr.mxu0 0.0
    %862 = vmatpush2.msra.mxu0 0.0
    %863 = vmatprep.subr.mxu0 0.0
    %864 = vmatpush2.msra.mxu0 0.0
    %865 = vmatprep.subr.mxu0 0.0
    %866 = vmatpush2.msra.mxu0 0.0
    %867 = vmatprep.subr.mxu0 0.0
    %868 = vmatpush2.msra.mxu0 0.0
    %869 = vmatprep.mubr.f32.mxu0 0.0
    %v870 = vand.u32 %v372, 4294901760
    %v871 = vsub.f32 %v372, %v870
    %872 = vmatmul.mubr.f32.gmra.mxu0 %v871
    %v873 = vpop.f32.mrf.mxu0
    %v874 = vadd.f32 %v712, %v873
    %v875 = vpop.f32.mrf.mxu0
    %876 = vmatprep.mubr.f32.mxu0 0.0
    %v877 = vand.u32 %v375, 4294901760
    %v878 = vsub.f32 %v375, %v877
    %879 = vmatmul.mubr.f32.gmra.mxu0 %v878
    %v880 = vpop.f32.mrf.mxu0
    %v881 = vadd.f32 %v718, %v880
    %v882 = vpop.f32.mrf.mxu0
    %883 = vmatprep.mubr.f32.mxu0 0.0
    %v884 = vand.u32 %v378, 4294901760
    %v885 = vsub.f32 %v378, %v884
    %886 = vmatmul.mubr.f32.gmra.mxu0 %v885
    %v887 = vpop.f32.mrf.mxu0
    %v888 = vadd.f32 %v724, %v887
    %v889 = vpop.f32.mrf.mxu0
    %890 = vmatprep.mubr.f32.mxu0 0.0
    %v891 = vand.u32 %v381, 4294901760
    %v892 = vsub.f32 %v381, %v891
    %893 = vmatmul.mubr.f32.gmra.mxu0 %v892
    %v894 = vpop.f32.mrf.mxu0
    %v895 = vadd.f32 %v730, %v894
    %v896 = vpop.f32.mrf.mxu0
    %897 = vmatprep.mubr.f32.mxu0 0.0
    %v898 = vand.u32 %v384, 4294901760
    %v899 = vsub.f32 %v384, %v898
    %900 = vmatmul.mubr.f32.gmra.mxu0 %v899
    %v901 = vpop.f32.mrf.mxu0
    %v902 = vadd.f32 %v736, %v901
    %v903 = vpop.f32.mrf.mxu0
    %904 = vmatprep.mubr.f32.mxu0 0.0
    %v905 = vand.u32 %v387, 4294901760
    %v906 = vsub.f32 %v387, %v905
    %907 = vmatmul.mubr.f32.gmra.mxu0 %v906
    %v908 = vpop.f32.mrf.mxu0
    %v909 = vadd.f32 %v742, %v908
    %v910 = vpop.f32.mrf.mxu0
    %911 = vmatprep.mubr.f32.mxu0 0.0
    %v912 = vand.u32 %v390, 4294901760
    %v913 = vsub.f32 %v390, %v912
    %914 = vmatmul.mubr.f32.gmra.mxu0 %v913
    %v915 = vpop.f32.mrf.mxu0
    %v916 = vadd.f32 %v748, %v915
    %v917 = vpop.f32.mrf.mxu0
    %918 = vmatprep.mubr.f32.mxu0 0.0
    %v919 = vand.u32 %v393, 4294901760
    %v920 = vsub.f32 %v393, %v919
    %921 = vmatmul.mubr.f32.gmra.mxu0 %v920
    %v922 = vpop.f32.mrf.mxu0
    %v923 = vadd.f32 %v754, %v922
    %v924 = vpop.f32.mrf.mxu0
    %925 = vmatprep.mubr.f32.mxu0 0.0
    %v926 = vand.u32 %v396, 4294901760
    %v927 = vsub.f32 %v396, %v926
    %928 = vmatmul.mubr.f32.gmra.mxu0 %v927
    %v929 = vpop.f32.mrf.mxu0
    %v930 = vadd.f32 %v760, %v929
    %v931 = vpop.f32.mrf.mxu0
    %932 = vmatprep.mubr.f32.mxu0 0.0
    %v933 = vand.u32 %v399, 4294901760
    %v934 = vsub.f32 %v399, %v933
    %935 = vmatmul.mubr.f32.gmra.mxu0 %v934
    %v936 = vpop.f32.mrf.mxu0
    %v937 = vadd.f32 %v766, %v936
    %v938 = vpop.f32.mrf.mxu0
    %939 = vmatprep.mubr.f32.mxu0 0.0
    %v940 = vand.u32 %v402, 4294901760
    %v941 = vsub.f32 %v402, %v940
    %942 = vmatmul.mubr.f32.gmra.mxu0 %v941
    %v943 = vpop.f32.mrf.mxu0
    %v944 = vadd.f32 %v772, %v943
    %v945 = vpop.f32.mrf.mxu0
    %946 = vmatprep.mubr.f32.mxu0 0.0
    %v947 = vand.u32 %v405, 4294901760
    %v948 = vsub.f32 %v405, %v947
    %949 = vmatmul.mubr.f32.gmra.mxu0 %v948
    %v950 = vpop.f32.mrf.mxu0
    %v951 = vadd.f32 %v778, %v950
    %v952 = vpop.f32.mrf.mxu0
    %953 = vmatprep.mubr.f32.mxu0 0.0
    %v954 = vand.u32 %v408, 4294901760
    %v955 = vsub.f32 %v408, %v954
    %956 = vmatmul.mubr.f32.gmra.mxu0 %v955
    %v957 = vpop.f32.mrf.mxu0
    %v958 = vadd.f32 %v784, %v957
    %v959 = vpop.f32.mrf.mxu0
    %960 = vmatprep.mubr.f32.mxu0 0.0
    %v961 = vand.u32 %v411, 4294901760
    %v962 = vsub.f32 %v411, %v961
    %963 = vmatmul.mubr.f32.gmra.mxu0 %v962
    %v964 = vpop.f32.mrf.mxu0
    %v965 = vadd.f32 %v790, %v964
    %v966 = vpop.f32.mrf.mxu0
    %967 = vmatprep.mubr.f32.mxu0 0.0
    %v968 = vand.u32 %v414, 4294901760
    %v969 = vsub.f32 %v414, %v968
    %970 = vmatmul.mubr.f32.gmra.mxu0 %v969
    %v971 = vpop.f32.mrf.mxu0
    %v972 = vadd.f32 %v796, %v971
    %v973 = vpop.f32.mrf.mxu0
    %974 = vmatprep.mubr.f32.mxu0 0.0
    %v975 = vand.u32 %v417, 4294901760
    %v976 = vsub.f32 %v417, %v975
    %977 = vmatmul.mubr.f32.gmra.mxu0 %v976
    %v978 = vpop.f32.mrf.mxu0
    %v979 = vadd.f32 %v802, %v978
    %v980 = vpop.f32.mrf.mxu0
    %981 = vdwg.mxu0
    %982 = vmatprep.subr.mxu0 0.0
    %983 = vmatpush1.msra.mxu0 0.0
    %984 = vmatprep.subr.mxu0 0.0
    %985 = vmatpush1.msra.mxu0 0.0
    %986 = vmatprep.subr.mxu0 0.0
    %987 = vmatpush1.msra.mxu0 0.0
    %988 = vmatprep.subr.mxu0 0.0
    %989 = vmatpush1.msra.mxu0 0.0
    %990 = vmatprep.subr.mxu0 0.0
    %991 = vmatpush1.msra.mxu0 0.0
    %992 = vmatprep.subr.mxu0 0.0
    %993 = vmatpush1.msra.mxu0 0.0
    %994 = vmatprep.subr.mxu0 0.0
    %995 = vmatpush1.msra.mxu0 0.0
    %996 = vmatprep.subr.mxu0 0.0
    %997 = vmatpush1.msra.mxu0 0.0
    %998 = vmatprep.subr.mxu0 0.0
    %999 = vmatpush1.msra.mxu0 0.0
    %1000 = vmatprep.subr.mxu0 0.0
    %1001 = vmatpush1.msra.mxu0 0.0
    %1002 = vmatprep.subr.mxu0 0.0
    %1003 = vmatpush1.msra.mxu0 0.0
    %1004 = vmatprep.subr.mxu0 0.0
    %1005 = vmatpush1.msra.mxu0 0.0
    %1006 = vmatprep.subr.mxu0 0.0
    %1007 = vmatpush1.msra.mxu0 0.0
    %1008 = vmatprep.subr.mxu0 0.0
    %1009 = vmatpush1.msra.mxu0 0.0
    %1010 = vmatprep.subr.mxu0 0.0
    %1011 = vmatpush1.msra.mxu0 1.0
    %1012 = vmatprep.subr.mxu0 0.0
    %1013 = vmatpush1.msra.mxu0 1.0
    %1014 = vmatprep.subr.mxu0 0.0
    %1015 = vmatpush2.msra.mxu0 0.0
    %1016 = vmatprep.subr.mxu0 0.0
    %1017 = vmatpush2.msra.mxu0 0.0
    %1018 = vmatprep.subr.mxu0 0.0
    %1019 = vmatpush2.msra.mxu0 0.0
    %1020 = vmatprep.subr.mxu0 0.0
    %1021 = vmatpush2.msra.mxu0 0.0
    %1022 = vmatprep.subr.mxu0 0.0
    %1023 = vmatpush2.msra.mxu0 0.0
    %1024 = vmatprep.subr.mxu0 0.0
    %1025 = vmatpush2.msra.mxu0 0.0
    %1026 = vmatprep.subr.mxu0 0.0
    %1027 = vmatpush2.msra.mxu0 0.0
    %1028 = vmatprep.subr.mxu0 0.0
    %1029 = vmatpush2.msra.mxu0 0.0
    %1030 = vmatprep.subr.mxu0 0.0
    %1031 = vmatpush2.msra.mxu0 0.0
    %1032 = vmatprep.subr.mxu0 0.0
    %1033 = vmatpush2.msra.mxu0 0.0
    %1034 = vmatprep.subr.mxu0 0.0
    %1035 = vmatpush2.msra.mxu0 0.0
    %1036 = vmatprep.subr.mxu0 0.0
    %1037 = vmatpush2.msra.mxu0 0.0
    %1038 = vmatprep.subr.mxu0 0.0
    %1039 = vmatpush2.msra.mxu0 0.0
    %1040 = vmatprep.subr.mxu0 0.0
    %1041 = vmatpush2.msra.mxu0 0.0
    %1042 = vmatprep.subr.mxu0 0.0
    %1043 = vmatpush2.msra.mxu0 0.0
    %1044 = vmatprep.subr.mxu0 0.0
    %1045 = vmatpush2.msra.mxu0 0.0
    %1046 = vmatprep.mubr.f32.mxu0 0.0
    %v1047 = vand.u32 %v372, 4294901760
    %v1048 = vsub.f32 %v372, %v1047
    %v1049 = vand.u32 %v1048, 4294901760
    %1050 = vmatmul.mubr.f32.gmra.mxu0 %v1049
    %v1051 = vpop.f32.mrf.mxu0
    %v1052 = vadd.f32 %v874, %v1051
    %v1053 = vpop.f32.mrf.mxu0
    %1054 = vmatprep.mubr.f32.mxu0 0.0
    %v1055 = vand.u32 %v375, 4294901760
    %v1056 = vsub.f32 %v375, %v1055
    %v1057 = vand.u32 %v1056, 4294901760
    %1058 = vmatmul.mubr.f32.gmra.mxu0 %v1057
    %v1059 = vpop.f32.mrf.mxu0
    %v1060 = vadd.f32 %v881, %v1059
    %v1061 = vpop.f32.mrf.mxu0
    %1062 = vmatprep.mubr.f32.mxu0 0.0
    %v1063 = vand.u32 %v378, 4294901760
    %v1064 = vsub.f32 %v378, %v1063
    %v1065 = vand.u32 %v1064, 4294901760
    %1066 = vmatmul.mubr.f32.gmra.mxu0 %v1065
    %v1067 = vpop.f32.mrf.mxu0
    %v1068 = vadd.f32 %v888, %v1067
    %v1069 = vpop.f32.mrf.mxu0
    %1070 = vmatprep.mubr.f32.mxu0 0.0
    %v1071 = vand.u32 %v381, 4294901760
    %v1072 = vsub.f32 %v381, %v1071
    %v1073 = vand.u32 %v1072, 4294901760
    %1074 = vmatmul.mubr.f32.gmra.mxu0 %v1073
    %v1075 = vpop.f32.mrf.mxu0
    %v1076 = vadd.f32 %v895, %v1075
    %v1077 = vpop.f32.mrf.mxu0
    %1078 = vmatprep.mubr.f32.mxu0 0.0
    %v1079 = vand.u32 %v384, 4294901760
    %v1080 = vsub.f32 %v384, %v1079
    %v1081 = vand.u32 %v1080, 4294901760
    %1082 = vmatmul.mubr.f32.gmra.mxu0 %v1081
    %v1083 = vpop.f32.mrf.mxu0
    %v1084 = vadd.f32 %v902, %v1083
    %v1085 = vpop.f32.mrf.mxu0
    %1086 = vmatprep.mubr.f32.mxu0 0.0
    %v1087 = vand.u32 %v387, 4294901760
    %v1088 = vsub.f32 %v387, %v1087
    %v1089 = vand.u32 %v1088, 4294901760
    %1090 = vmatmul.mubr.f32.gmra.mxu0 %v1089
    %v1091 = vpop.f32.mrf.mxu0
    %v1092 = vadd.f32 %v909, %v1091
    %v1093 = vpop.f32.mrf.mxu0
    %1094 = vmatprep.mubr.f32.mxu0 0.0
    %v1095 = vand.u32 %v390, 4294901760
    %v1096 = vsub.f32 %v390, %v1095
    %v1097 = vand.u32 %v1096, 4294901760
    %1098 = vmatmul.mubr.f32.gmra.mxu0 %v1097
    %v1099 = vpop.f32.mrf.mxu0
    %v1100 = vadd.f32 %v916, %v1099
    %v1101 = vpop.f32.mrf.mxu0
    %1102 = vmatprep.mubr.f32.mxu0 0.0
    %v1103 = vand.u32 %v393, 4294901760
    %v1104 = vsub.f32 %v393, %v1103
    %v1105 = vand.u32 %v1104, 4294901760
    %1106 = vmatmul.mubr.f32.gmra.mxu0 %v1105
    %v1107 = vpop.f32.mrf.mxu0
    %v1108 = vadd.f32 %v923, %v1107
    %v1109 = vpop.f32.mrf.mxu0
    %1110 = vmatprep.mubr.f32.mxu0 0.0
    %v1111 = vand.u32 %v396, 4294901760
    %v1112 = vsub.f32 %v396, %v1111
    %v1113 = vand.u32 %v1112, 4294901760
    %1114 = vmatmul.mubr.f32.gmra.mxu0 %v1113
    %v1115 = vpop.f32.mrf.mxu0
    %v1116 = vadd.f32 %v930, %v1115
    %v1117 = vpop.f32.mrf.mxu0
    %1118 = vmatprep.mubr.f32.mxu0 0.0
    %v1119 = vand.u32 %v399, 4294901760
    %v1120 = vsub.f32 %v399, %v1119
    %v1121 = vand.u32 %v1120, 4294901760
    %1122 = vmatmul.mubr.f32.gmra.mxu0 %v1121
    %v1123 = vpop.f32.mrf.mxu0
    %v1124 = vadd.f32 %v937, %v1123
    %v1125 = vpop.f32.mrf.mxu0
    %1126 = vmatprep.mubr.f32.mxu0 0.0
    %v1127 = vand.u32 %v402, 4294901760
    %v1128 = vsub.f32 %v402, %v1127
    %v1129 = vand.u32 %v1128, 4294901760
    %1130 = vmatmul.mubr.f32.gmra.mxu0 %v1129
    %v1131 = vpop.f32.mrf.mxu0
    %v1132 = vadd.f32 %v944, %v1131
    %v1133 = vpop.f32.mrf.mxu0
    %1134 = vmatprep.mubr.f32.mxu0 0.0
    %v1135 = vand.u32 %v405, 4294901760
    %v1136 = vsub.f32 %v405, %v1135
    %v1137 = vand.u32 %v1136, 4294901760
    %1138 = vmatmul.mubr.f32.gmra.mxu0 %v1137
    %v1139 = vpop.f32.mrf.mxu0
    %v1140 = vadd.f32 %v951, %v1139
    %v1141 = vpop.f32.mrf.mxu0
    %1142 = vmatprep.mubr.f32.mxu0 0.0
    %v1143 = vand.u32 %v408, 4294901760
    %v1144 = vsub.f32 %v408, %v1143
    %v1145 = vand.u32 %v1144, 4294901760
    %1146 = vmatmul.mubr.f32.gmra.mxu0 %v1145
    %v1147 = vpop.f32.mrf.mxu0
    %v1148 = vadd.f32 %v958, %v1147
    %v1149 = vpop.f32.mrf.mxu0
    %1150 = vmatprep.mubr.f32.mxu0 0.0
    %v1151 = vand.u32 %v411, 4294901760
    %v1152 = vsub.f32 %v411, %v1151
    %v1153 = vand.u32 %v1152, 4294901760
    %1154 = vmatmul.mubr.f32.gmra.mxu0 %v1153
    %v1155 = vpop.f32.mrf.mxu0
    %v1156 = vadd.f32 %v965, %v1155
    %v1157 = vpop.f32.mrf.mxu0
    %1158 = vmatprep.mubr.f32.mxu0 0.0
    %v1159 = vand.u32 %v414, 4294901760
    %v1160 = vsub.f32 %v414, %v1159
    %v1161 = vand.u32 %v1160, 4294901760
    %1162 = vmatmul.mubr.f32.gmra.mxu0 %v1161
    %v1163 = vpop.f32.mrf.mxu0
    %v1164 = vadd.f32 %v972, %v1163
    %v1165 = vpop.f32.mrf.mxu0
    %1166 = vmatprep.mubr.f32.mxu0 0.0
    %v1167 = vand.u32 %v417, 4294901760
    %v1168 = vsub.f32 %v417, %v1167
    %v1169 = vand.u32 %v1168, 4294901760
    %1170 = vmatmul.mubr.f32.gmra.mxu0 %v1169
    %v1171 = vpop.f32.mrf.mxu0
    %v1172 = vadd.f32 %v979, %v1171
    %v1173 = vpop.f32.mrf.mxu0
    %1174 = vdwg.mxu0
    %1175 = vmatprep.subr.mxu0 0.0
    %1176 = vmatpush1.msra.mxu0 0.0
    %1177 = vmatprep.subr.mxu0 0.0
    %1178 = vmatpush1.msra.mxu0 0.0
    %1179 = vmatprep.subr.mxu0 0.0
    %1180 = vmatpush1.msra.mxu0 0.0
    %1181 = vmatprep.subr.mxu0 0.0
    %1182 = vmatpush1.msra.mxu0 0.0
    %1183 = vmatprep.subr.mxu0 0.0
    %1184 = vmatpush1.msra.mxu0 0.0
    %1185 = vmatprep.subr.mxu0 0.0
    %1186 = vmatpush1.msra.mxu0 0.0
    %1187 = vmatprep.subr.mxu0 0.0
    %1188 = vmatpush1.msra.mxu0 0.0
    %1189 = vmatprep.subr.mxu0 0.0
    %1190 = vmatpush1.msra.mxu0 0.0
    %1191 = vmatprep.subr.mxu0 0.0
    %1192 = vmatpush1.msra.mxu0 0.0
    %1193 = vmatprep.subr.mxu0 0.0
    %1194 = vmatpush1.msra.mxu0 0.0
    %1195 = vmatprep.subr.mxu0 0.0
    %1196 = vmatpush1.msra.mxu0 0.0
    %1197 = vmatprep.subr.mxu0 0.0
    %1198 = vmatpush1.msra.mxu0 0.0
    %1199 = vmatprep.subr.mxu0 0.0
    %1200 = vmatpush1.msra.mxu0 0.0
    %1201 = vmatprep.subr.mxu0 0.0
    %1202 = vmatpush1.msra.mxu0 0.0
    %1203 = vmatprep.subr.mxu0 0.0
    %1204 = vmatpush1.msra.mxu0 0.0
    %1205 = vmatprep.subr.mxu0 0.0
    %1206 = vmatpush1.msra.mxu0 0.0
    %1207 = vmatprep.subr.mxu0 0.0
    %1208 = vmatpush2.msra.mxu0 0.0
    %1209 = vmatprep.subr.mxu0 0.0
    %1210 = vmatpush2.msra.mxu0 0.0
    %1211 = vmatprep.subr.mxu0 0.0
    %1212 = vmatpush2.msra.mxu0 0.0
    %1213 = vmatprep.subr.mxu0 0.0
    %1214 = vmatpush2.msra.mxu0 0.0
    %1215 = vmatprep.subr.mxu0 0.0
    %1216 = vmatpush2.msra.mxu0 0.0
    %1217 = vmatprep.subr.mxu0 0.0
    %1218 = vmatpush2.msra.mxu0 0.0
    %1219 = vmatprep.subr.mxu0 0.0
    %1220 = vmatpush2.msra.mxu0 0.0
    %1221 = vmatprep.subr.mxu0 0.0
    %1222 = vmatpush2.msra.mxu0 0.0
    %1223 = vmatprep.subr.mxu0 0.0
    %1224 = vmatpush2.msra.mxu0 0.0
    %1225 = vmatprep.subr.mxu0 0.0
    %1226 = vmatpush2.msra.mxu0 0.0
    %1227 = vmatprep.subr.mxu0 0.0
    %1228 = vmatpush2.msra.mxu0 0.0
    %1229 = vmatprep.subr.mxu0 0.0
    %1230 = vmatpush2.msra.mxu0 0.0
    %1231 = vmatprep.subr.mxu0 0.0
    %1232 = vmatpush2.msra.mxu0 0.0
    %1233 = vmatprep.subr.mxu0 0.0
    %1234 = vmatpush2.msra.mxu0 0.0
    %1235 = vmatprep.subr.mxu0 0.0
    %1236 = vmatpush2.msra.mxu0 0.0
    %1237 = vmatprep.subr.mxu0 0.0
    %1238 = vmatpush2.msra.mxu0 0.0
    %1239 = vmatprep.mubr.f32.mxu0 0.0
    %v1240 = vand.u32 %v372, 4294901760
    %1241 = vmatmul.mubr.f32.gmra.mxu0 %v1240
    %v1242 = vpop.f32.mrf.mxu0
    %v1243 = vadd.f32 %v1052, %v1242
    %v1244 = vpop.f32.mrf.mxu0
    %1245 = vmatprep.mubr.f32.mxu0 0.0
    %v1246 = vand.u32 %v375, 4294901760
    %1247 = vmatmul.mubr.f32.gmra.mxu0 %v1246
    %v1248 = vpop.f32.mrf.mxu0
    %v1249 = vadd.f32 %v1060, %v1248
    %v1250 = vpop.f32.mrf.mxu0
    %1251 = vmatprep.mubr.f32.mxu0 0.0
    %v1252 = vand.u32 %v378, 4294901760
    %1253 = vmatmul.mubr.f32.gmra.mxu0 %v1252
    %v1254 = vpop.f32.mrf.mxu0
    %v1255 = vadd.f32 %v1068, %v1254
    %v1256 = vpop.f32.mrf.mxu0
    %1257 = vmatprep.mubr.f32.mxu0 0.0
    %v1258 = vand.u32 %v381, 4294901760
    %1259 = vmatmul.mubr.f32.gmra.mxu0 %v1258
    %v1260 = vpop.f32.mrf.mxu0
    %v1261 = vadd.f32 %v1076, %v1260
    %v1262 = vpop.f32.mrf.mxu0
    %1263 = vmatprep.mubr.f32.mxu0 0.0
    %v1264 = vand.u32 %v384, 4294901760
    %1265 = vmatmul.mubr.f32.gmra.mxu0 %v1264
    %v1266 = vpop.f32.mrf.mxu0
    %v1267 = vadd.f32 %v1084, %v1266
    %v1268 = vpop.f32.mrf.mxu0
    %1269 = vmatprep.mubr.f32.mxu0 0.0
    %v1270 = vand.u32 %v387, 4294901760
    %1271 = vmatmul.mubr.f32.gmra.mxu0 %v1270
    %v1272 = vpop.f32.mrf.mxu0
    %v1273 = vadd.f32 %v1092, %v1272
    %v1274 = vpop.f32.mrf.mxu0
    %1275 = vmatprep.mubr.f32.mxu0 0.0
    %v1276 = vand.u32 %v390, 4294901760
    %1277 = vmatmul.mubr.f32.gmra.mxu0 %v1276
    %v1278 = vpop.f32.mrf.mxu0
    %v1279 = vadd.f32 %v1100, %v1278
    %v1280 = vpop.f32.mrf.mxu0
    %1281 = vmatprep.mubr.f32.mxu0 0.0
    %v1282 = vand.u32 %v393, 4294901760
    %1283 = vmatmul.mubr.f32.gmra.mxu0 %v1282
    %v1284 = vpop.f32.mrf.mxu0
    %v1285 = vadd.f32 %v1108, %v1284
    %v1286 = vpop.f32.mrf.mxu0
    %1287 = vmatprep.mubr.f32.mxu0 0.0
    %v1288 = vand.u32 %v396, 4294901760
    %1289 = vmatmul.mubr.f32.gmra.mxu0 %v1288
    %v1290 = vpop.f32.mrf.mxu0
    %v1291 = vadd.f32 %v1116, %v1290
    %v1292 = vpop.f32.mrf.mxu0
    %1293 = vmatprep.mubr.f32.mxu0 0.0
    %v1294 = vand.u32 %v399, 4294901760
    %1295 = vmatmul.mubr.f32.gmra.mxu0 %v1294
    %v1296 = vpop.f32.mrf.mxu0
    %v1297 = vadd.f32 %v1124, %v1296
    %v1298 = vpop.f32.mrf.mxu0
    %1299 = vmatprep.mubr.f32.mxu0 0.0
    %v1300 = vand.u32 %v402, 4294901760
    %1301 = vmatmul.mubr.f32.gmra.mxu0 %v1300
    %v1302 = vpop.f32.mrf.mxu0
    %v1303 = vadd.f32 %v1132, %v1302
    %v1304 = vpop.f32.mrf.mxu0
    %1305 = vmatprep.mubr.f32.mxu0 0.0
    %v1306 = vand.u32 %v405, 4294901760
    %1307 = vmatmul.mubr.f32.gmra.mxu0 %v1306
    %v1308 = vpop.f32.mrf.mxu0
    %v1309 = vadd.f32 %v1140, %v1308
    %v1310 = vpop.f32.mrf.mxu0
    %1311 = vmatprep.mubr.f32.mxu0 0.0
    %v1312 = vand.u32 %v408, 4294901760
    %1313 = vmatmul.mubr.f32.gmra.mxu0 %v1312
    %v1314 = vpop.f32.mrf.mxu0
    %v1315 = vadd.f32 %v1148, %v1314
    %v1316 = vpop.f32.mrf.mxu0
    %1317 = vmatprep.mubr.f32.mxu0 0.0
    %v1318 = vand.u32 %v411, 4294901760
    %1319 = vmatmul.mubr.f32.gmra.mxu0 %v1318
    %v1320 = vpop.f32.mrf.mxu0
    %v1321 = vadd.f32 %v1156, %v1320
    %v1322 = vpop.f32.mrf.mxu0
    %1323 = vmatprep.mubr.f32.mxu0 0.0
    %v1324 = vand.u32 %v414, 4294901760
    %1325 = vmatmul.mubr.f32.gmra.mxu0 %v1324
    %v1326 = vpop.f32.mrf.mxu0
    %v1327 = vadd.f32 %v1164, %v1326
    %v1328 = vpop.f32.mrf.mxu0
    %1329 = vmatprep.mubr.f32.mxu0 0.0
    %v1330 = vand.u32 %v417, 4294901760
    %1331 = vmatmul.mubr.f32.gmra.mxu0 %v1330
    %v1332 = vpop.f32.mrf.mxu0
    %v1333 = vadd.f32 %v1172, %v1332
    %v1334 = vpop.f32.mrf.mxu0
    %1335 = vdwg.mxu0
    %1336 = vmatprep.subr.mxu0 0.0
    %1337 = vmatpush1.msra.mxu0 0.0
    %1338 = vmatprep.subr.mxu0 0.0
    %1339 = vmatpush1.msra.mxu0 0.0
    %1340 = vmatprep.subr.mxu0 0.0
    %1341 = vmatpush1.msra.mxu0 0.0
    %1342 = vmatprep.subr.mxu0 0.0
    %1343 = vmatpush1.msra.mxu0 0.0
    %1344 = vmatprep.subr.mxu0 0.0
    %1345 = vmatpush1.msra.mxu0 0.0
    %1346 = vmatprep.subr.mxu0 0.0
    %1347 = vmatpush1.msra.mxu0 0.0
    %1348 = vmatprep.subr.mxu0 0.0
    %1349 = vmatpush1.msra.mxu0 0.0
    %1350 = vmatprep.subr.mxu0 0.0
    %1351 = vmatpush1.msra.mxu0 0.0
    %1352 = vmatprep.subr.mxu0 0.0
    %1353 = vmatpush1.msra.mxu0 0.0
    %1354 = vmatprep.subr.mxu0 0.0
    %1355 = vmatpush1.msra.mxu0 0.0
    %1356 = vmatprep.subr.mxu0 0.0
    %1357 = vmatpush1.msra.mxu0 0.0
    %1358 = vmatprep.subr.mxu0 0.0
    %1359 = vmatpush1.msra.mxu0 0.0
    %1360 = vmatprep.subr.mxu0 0.0
    %1361 = vmatpush1.msra.mxu0 0.0
    %1362 = vmatprep.subr.mxu0 0.0
    %1363 = vmatpush1.msra.mxu0 0.0
    %1364 = vmatprep.subr.mxu0 0.0
    %1365 = vmatpush1.msra.mxu0 1.0
    %1366 = vmatprep.subr.mxu0 0.0
    %1367 = vmatpush1.msra.mxu0 1.0
    %1368 = vmatprep.subr.mxu0 0.0
    %1369 = vmatpush2.msra.mxu0 0.0
    %1370 = vmatprep.subr.mxu0 0.0
    %1371 = vmatpush2.msra.mxu0 0.0
    %1372 = vmatprep.subr.mxu0 0.0
    %1373 = vmatpush2.msra.mxu0 0.0
    %1374 = vmatprep.subr.mxu0 0.0
    %1375 = vmatpush2.msra.mxu0 0.0
    %1376 = vmatprep.subr.mxu0 0.0
    %1377 = vmatpush2.msra.mxu0 0.0
    %1378 = vmatprep.subr.mxu0 0.0
    %1379 = vmatpush2.msra.mxu0 0.0
    %1380 = vmatprep.subr.mxu0 0.0
    %1381 = vmatpush2.msra.mxu0 0.0
    %1382 = vmatprep.subr.mxu0 0.0
    %1383 = vmatpush2.msra.mxu0 0.0
    %1384 = vmatprep.subr.mxu0 0.0
    %1385 = vmatpush2.msra.mxu0 0.0
    %1386 = vmatprep.subr.mxu0 0.0
    %1387 = vmatpush2.msra.mxu0 0.0
    %1388 = vmatprep.subr.mxu0 0.0
    %1389 = vmatpush2.msra.mxu0 0.0
    %1390 = vmatprep.subr.mxu0 0.0
    %1391 = vmatpush2.msra.mxu0 0.0
    %1392 = vmatprep.subr.mxu0 0.0
    %1393 = vmatpush2.msra.mxu0 0.0
    %1394 = vmatprep.subr.mxu0 0.0
    %1395 = vmatpush2.msra.mxu0 0.0
    %1396 = vmatprep.subr.mxu0 0.0
    %1397 = vmatpush2.msra.mxu0 0.0
    %1398 = vmatprep.subr.mxu0 0.0
    %1399 = vmatpush2.msra.mxu0 0.0
    %1400 = vmatprep.mubr.f32.mxu0 0.0
    %v1401 = vand.u32 %v372, 4294901760
    %1402 = vmatmul.mubr.f32.gmra.mxu0 %v1401
    %v1403 = vpop.f32.mrf.mxu0
    %v1404 = vadd.f32 %v1243, %v1403
    %v1405 = vpop.f32.mrf.mxu0
    %1406 = vmatprep.mubr.f32.mxu0 0.0
    %v1407 = vand.u32 %v375, 4294901760
    %1408 = vmatmul.mubr.f32.gmra.mxu0 %v1407
    %v1409 = vpop.f32.mrf.mxu0
    %v1410 = vadd.f32 %v1249, %v1409
    %v1411 = vpop.f32.mrf.mxu0
    %1412 = vmatprep.mubr.f32.mxu0 0.0
    %v1413 = vand.u32 %v378, 4294901760
    %1414 = vmatmul.mubr.f32.gmra.mxu0 %v1413
    %v1415 = vpop.f32.mrf.mxu0
    %v1416 = vadd.f32 %v1255, %v1415
    %v1417 = vpop.f32.mrf.mxu0
    %1418 = vmatprep.mubr.f32.mxu0 0.0
    %v1419 = vand.u32 %v381, 4294901760
    %1420 = vmatmul.mubr.f32.gmra.mxu0 %v1419
    %v1421 = vpop.f32.mrf.mxu0
    %v1422 = vadd.f32 %v1261, %v1421
    %v1423 = vpop.f32.mrf.mxu0
    %1424 = vmatprep.mubr.f32.mxu0 0.0
    %v1425 = vand.u32 %v384, 4294901760
    %1426 = vmatmul.mubr.f32.gmra.mxu0 %v1425
    %v1427 = vpop.f32.mrf.mxu0
    %v1428 = vadd.f32 %v1267, %v1427
    %v1429 = vpop.f32.mrf.mxu0
    %1430 = vmatprep.mubr.f32.mxu0 0.0
    %v1431 = vand.u32 %v387, 4294901760
    %1432 = vmatmul.mubr.f32.gmra.mxu0 %v1431
    %v1433 = vpop.f32.mrf.mxu0
    %v1434 = vadd.f32 %v1273, %v1433
    %v1435 = vpop.f32.mrf.mxu0
    %1436 = vmatprep.mubr.f32.mxu0 0.0
    %v1437 = vand.u32 %v390, 4294901760
    %1438 = vmatmul.mubr.f32.gmra.mxu0 %v1437
    %v1439 = vpop.f32.mrf.mxu0
    %v1440 = vadd.f32 %v1279, %v1439
    %v1441 = vpop.f32.mrf.mxu0
    %1442 = vmatprep.mubr.f32.mxu0 0.0
    %v1443 = vand.u32 %v393, 4294901760
    %1444 = vmatmul.mubr.f32.gmra.mxu0 %v1443
    %v1445 = vpop.f32.mrf.mxu0
    %v1446 = vadd.f32 %v1285, %v1445
    %v1447 = vpop.f32.mrf.mxu0
    %1448 = vmatprep.mubr.f32.mxu0 0.0
    %v1449 = vand.u32 %v396, 4294901760
    %1450 = vmatmul.mubr.f32.gmra.mxu0 %v1449
    %v1451 = vpop.f32.mrf.mxu0
    %v1452 = vadd.f32 %v1291, %v1451
    %v1453 = vpop.f32.mrf.mxu0
    %1454 = vmatprep.mubr.f32.mxu0 0.0
    %v1455 = vand.u32 %v399, 4294901760
    %1456 = vmatmul.mubr.f32.gmra.mxu0 %v1455
    %v1457 = vpop.f32.mrf.mxu0
    %v1458 = vadd.f32 %v1297, %v1457
    %v1459 = vpop.f32.mrf.mxu0
    %1460 = vmatprep.mubr.f32.mxu0 0.0
    %v1461 = vand.u32 %v402, 4294901760
    %1462 = vmatmul.mubr.f32.gmra.mxu0 %v1461
    %v1463 = vpop.f32.mrf.mxu0
    %v1464 = vadd.f32 %v1303, %v1463
    %v1465 = vpop.f32.mrf.mxu0
    %1466 = vmatprep.mubr.f32.mxu0 0.0
    %v1467 = vand.u32 %v405, 4294901760
    %1468 = vmatmul.mubr.f32.gmra.mxu0 %v1467
    %v1469 = vpop.f32.mrf.mxu0
    %v1470 = vadd.f32 %v1309, %v1469
    %v1471 = vpop.f32.mrf.mxu0
    %1472 = vmatprep.mubr.f32.mxu0 0.0
    %v1473 = vand.u32 %v408, 4294901760
    %1474 = vmatmul.mubr.f32.gmra.mxu0 %v1473
    %v1475 = vpop.f32.mrf.mxu0
    %v1476 = vadd.f32 %v1315, %v1475
    %v1477 = vpop.f32.mrf.mxu0
    %1478 = vmatprep.mubr.f32.mxu0 0.0
    %v1479 = vand.u32 %v411, 4294901760
    %1480 = vmatmul.mubr.f32.gmra.mxu0 %v1479
    %v1481 = vpop.f32.mrf.mxu0
    %v1482 = vadd.f32 %v1321, %v1481
    %v1483 = vpop.f32.mrf.mxu0
    %1484 = vmatprep.mubr.f32.mxu0 0.0
    %v1485 = vand.u32 %v414, 4294901760
    %1486 = vmatmul.mubr.f32.gmra.mxu0 %v1485
    %v1487 = vpop.f32.mrf.mxu0
    %v1488 = vadd.f32 %v1327, %v1487
    %v1489 = vpop.f32.mrf.mxu0
    %1490 = vmatprep.mubr.f32.mxu0 0.0
    %v1491 = vand.u32 %v417, 4294901760
    %1492 = vmatmul.mubr.f32.gmra.mxu0 %v1491
    %v1493 = vpop.f32.mrf.mxu0
    %v1494 = vadd.f32 %v1333, %v1493
    %v1495 = vpop.f32.mrf.mxu0
    %1496 = vdwg.mxu0
    %v1497 = vsel %vm258, %v57, 0.0
    %v1498 = vsel %vm259, %v58, 0.0
    %v1499 = vsel %vm260, %v59, 0.0
    %v1500 = vsel %vm261, %v60, 0.0
    %v1501 = vsel %vm262, %v61, 0.0
    %v1502 = vsel %vm263, %v62, 0.0
    %v1503 = vsel %vm264, %v63, 0.0
    %v1504 = vsel %vm265, %v64, 0.0
    %v1505 = vsel %vm266, %v65, 0.0
    %v1506 = vsel %vm267, %v66, 0.0
    %v1507 = vsel %vm268, %v67, 0.0
    %v1508 = vsel %vm269, %v68, 0.0
    %v1509 = vsel %vm270, %v69, 0.0
    %v1510 = vsel %vm271, %v70, 0.0
    %v1511 = vsel %vm272, %v71, 0.0
    %v1512 = vsel %vm273, %v72, 0.0
    %v1514 = vsel %vm274, %v1497, 0
    %v1517 = vsel %vm274, %v1498, 0
    %v1520 = vsel %vm274, %v1499, 0
    %v1523 = vsel %vm274, %v1500, 0
    %v1526 = vsel %vm274, %v1501, 0
    %v1529 = vsel %vm274, %v1502, 0
    %v1532 = vsel %vm274, %v1503, 0
    %v1535 = vsel %vm274, %v1504, 0
    %v1538 = vsel %vm274, %v1505, 0
    %v1541 = vsel %vm274, %v1506, 0
    %v1544 = vsel %vm274, %v1507, 0
    %v1547 = vsel %vm274, %v1508, 0
    %v1550 = vsel %vm274, %v1509, 0
    %v1553 = vsel %vm274, %v1510, 0
    %v1556 = vsel %vm274, %v1511, 0
    %v1559 = vsel %vm274, %v1512, 0
    %1561 = vmatprep.subr.mxu0 0.0
    %1562 = vmatpush1.msra.mxu0 0.0
    %1563 = vmatprep.subr.mxu0 0.0
    %1564 = vmatpush1.msra.mxu0 0.0
    %1565 = vmatprep.subr.mxu0 0.0
    %1566 = vmatpush1.msra.mxu0 0.0
    %1567 = vmatprep.subr.mxu0 0.0
    %1568 = vmatpush1.msra.mxu0 0.0
    %1569 = vmatprep.subr.mxu0 0.0
    %1570 = vmatpush1.msra.mxu0 0.0
    %1571 = vmatprep.subr.mxu0 0.0
    %1572 = vmatpush1.msra.mxu0 0.0
    %1573 = vmatprep.subr.mxu0 0.0
    %1574 = vmatpush1.msra.mxu0 0.0
    %1575 = vmatprep.subr.mxu0 0.0
    %1576 = vmatpush1.msra.mxu0 0.0
    %1577 = vmatprep.subr.mxu0 0.0
    %1578 = vmatpush1.msra.mxu0 0.0
    %1579 = vmatprep.subr.mxu0 0.0
    %1580 = vmatpush1.msra.mxu0 0.0
    %1581 = vmatprep.subr.mxu0 0.0
    %1582 = vmatpush1.msra.mxu0 0.0
    %1583 = vmatprep.subr.mxu0 0.0
    %1584 = vmatpush1.msra.mxu0 0.0
    %1585 = vmatprep.subr.mxu0 0.0
    %1586 = vmatpush1.msra.mxu0 0.0
    %1587 = vmatprep.subr.mxu0 0.0
    %1588 = vmatpush1.msra.mxu0 0.0
    %1589 = vmatprep.subr.mxu0 0.0
    %1590 = vmatpush1.msra.mxu0 1.0
    %1591 = vmatprep.subr.mxu0 0.0
    %1592 = vmatpush1.msra.mxu0 1.0
    %1593 = vmatprep.subr.mxu0 0.0
    %1594 = vmatpush2.msra.mxu0 0.0
    %1595 = vmatprep.subr.mxu0 0.0
    %1596 = vmatpush2.msra.mxu0 0.0
    %1597 = vmatprep.subr.mxu0 0.0
    %1598 = vmatpush2.msra.mxu0 0.0
    %1599 = vmatprep.subr.mxu0 0.0
    %1600 = vmatpush2.msra.mxu0 0.0
    %1601 = vmatprep.subr.mxu0 0.0
    %1602 = vmatpush2.msra.mxu0 0.0
    %1603 = vmatprep.subr.mxu0 0.0
    %1604 = vmatpush2.msra.mxu0 0.0
    %1605 = vmatprep.subr.mxu0 0.0
    %1606 = vmatpush2.msra.mxu0 0.0
    %1607 = vmatprep.subr.mxu0 0.0
    %1608 = vmatpush2.msra.mxu0 0.0
    %1609 = vmatprep.subr.mxu0 0.0
    %1610 = vmatpush2.msra.mxu0 0.0
    %1611 = vmatprep.subr.mxu0 0.0
    %1612 = vmatpush2.msra.mxu0 0.0
    %1613 = vmatprep.subr.mxu0 0.0
    %1614 = vmatpush2.msra.mxu0 0.0
    %1615 = vmatprep.subr.mxu0 0.0
    %1616 = vmatpush2.msra.mxu0 0.0
    %1617 = vmatprep.subr.mxu0 0.0
    %1618 = vmatpush2.msra.mxu0 0.0
    %1619 = vmatprep.subr.mxu0 0.0
    %1620 = vmatpush2.msra.mxu0 0.0
    %1621 = vmatprep.subr.mxu0 0.0
    %1622 = vmatpush2.msra.mxu0 0.0
    %1623 = vmatprep.subr.mxu0 0.0
    %1624 = vmatpush2.msra.mxu0 0.0
    %1625 = vmatprep.mubr.f32.mxu0 0.0
    %v1626 = vand.u32 %v1514, 4294901760
    %v1627 = vsub.f32 %v1514, %v1626
    %v1628 = vand.u32 %v1627, 4294901760
    %v1629 = vsub.f32 %v1627, %v1628
    %v1630 = vand.u32 %v1629, 4294901760
    %1631 = vmatmul.mubr.f32.gmra.mxu0 %v1630
    %v1632 = vpop.f32.mrf.mxu0
    %v1633 = vadd.f32 0.0, %v1632
    %v1634 = vpop.f32.mrf.mxu0
    %1635 = vmatprep.mubr.f32.mxu0 0.0
    %v1636 = vand.u32 %v1517, 4294901760
    %v1637 = vsub.f32 %v1517, %v1636
    %v1638 = vand.u32 %v1637, 4294901760
    %v1639 = vsub.f32 %v1637, %v1638
    %v1640 = vand.u32 %v1639, 4294901760
    %1641 = vmatmul.mubr.f32.gmra.mxu0 %v1640
    %v1642 = vpop.f32.mrf.mxu0
    %v1643 = vadd.f32 0.0, %v1642
    %v1644 = vpop.f32.mrf.mxu0
    %1645 = vmatprep.mubr.f32.mxu0 0.0
    %v1646 = vand.u32 %v1520, 4294901760
    %v1647 = vsub.f32 %v1520, %v1646
    %v1648 = vand.u32 %v1647, 4294901760
    %v1649 = vsub.f32 %v1647, %v1648
    %v1650 = vand.u32 %v1649, 4294901760
    %1651 = vmatmul.mubr.f32.gmra.mxu0 %v1650
    %v1652 = vpop.f32.mrf.mxu0
    %v1653 = vadd.f32 0.0, %v1652
    %v1654 = vpop.f32.mrf.mxu0
    %1655 = vmatprep.mubr.f32.mxu0 0.0
    %v1656 = vand.u32 %v1523, 4294901760
    %v1657 = vsub.f32 %v1523, %v1656
    %v1658 = vand.u32 %v1657, 4294901760
    %v1659 = vsub.f32 %v1657, %v1658
    %v1660 = vand.u32 %v1659, 4294901760
    %1661 = vmatmul.mubr.f32.gmra.mxu0 %v1660
    %v1662 = vpop.f32.mrf.mxu0
    %v1663 = vadd.f32 0.0, %v1662
    %v1664 = vpop.f32.mrf.mxu0
    %1665 = vmatprep.mubr.f32.mxu0 0.0
    %v1666 = vand.u32 %v1526, 4294901760
    %v1667 = vsub.f32 %v1526, %v1666
    %v1668 = vand.u32 %v1667, 4294901760
    %v1669 = vsub.f32 %v1667, %v1668
    %v1670 = vand.u32 %v1669, 4294901760
    %1671 = vmatmul.mubr.f32.gmra.mxu0 %v1670
    %v1672 = vpop.f32.mrf.mxu0
    %v1673 = vadd.f32 0.0, %v1672
    %v1674 = vpop.f32.mrf.mxu0
    %1675 = vmatprep.mubr.f32.mxu0 0.0
    %v1676 = vand.u32 %v1529, 4294901760
    %v1677 = vsub.f32 %v1529, %v1676
    %v1678 = vand.u32 %v1677, 4294901760
    %v1679 = vsub.f32 %v1677, %v1678
    %v1680 = vand.u32 %v1679, 4294901760
    %1681 = vmatmul.mubr.f32.gmra.mxu0 %v1680
    %v1682 = vpop.f32.mrf.mxu0
    %v1683 = vadd.f32 0.0, %v1682
    %v1684 = vpop.f32.mrf.mxu0
    %1685 = vmatprep.mubr.f32.mxu0 0.0
    %v1686 = vand.u32 %v1532, 4294901760
    %v1687 = vsub.f32 %v1532, %v1686
    %v1688 = vand.u32 %v1687, 4294901760
    %v1689 = vsub.f32 %v1687, %v1688
    %v1690 = vand.u32 %v1689, 4294901760
    %1691 = vmatmul.mubr.f32.gmra.mxu0 %v1690
    %v1692 = vpop.f32.mrf.mxu0
    %v1693 = vadd.f32 0.0, %v1692
    %v1694 = vpop.f32.mrf.mxu0
    %1695 = vmatprep.mubr.f32.mxu0 0.0
    %v1696 = vand.u32 %v1535, 4294901760
    %v1697 = vsub.f32 %v1535, %v1696
    %v1698 = vand.u32 %v1697, 4294901760
    %v1699 = vsub.f32 %v1697, %v1698
    %v1700 = vand.u32 %v1699, 4294901760
    %1701 = vmatmul.mubr.f32.gmra.mxu0 %v1700
    %v1702 = vpop.f32.mrf.mxu0
    %v1703 = vadd.f32 0.0, %v1702
    %v1704 = vpop.f32.mrf.mxu0
    %1705 = vmatprep.mubr.f32.mxu0 0.0
    %v1706 = vand.u32 %v1538, 4294901760
    %v1707 = vsub.f32 %v1538, %v1706
    %v1708 = vand.u32 %v1707, 4294901760
    %v1709 = vsub.f32 %v1707, %v1708
    %v1710 = vand.u32 %v1709, 4294901760
    %1711 = vmatmul.mubr.f32.gmra.mxu0 %v1710
    %v1712 = vpop.f32.mrf.mxu0
    %v1713 = vadd.f32 0.0, %v1712
    %v1714 = vpop.f32.mrf.mxu0
    %1715 = vmatprep.mubr.f32.mxu0 0.0
    %v1716 = vand.u32 %v1541, 4294901760
    %v1717 = vsub.f32 %v1541, %v1716
    %v1718 = vand.u32 %v1717, 4294901760
    %v1719 = vsub.f32 %v1717, %v1718
    %v1720 = vand.u32 %v1719, 4294901760
    %1721 = vmatmul.mubr.f32.gmra.mxu0 %v1720
    %v1722 = vpop.f32.mrf.mxu0
    %v1723 = vadd.f32 0.0, %v1722
    %v1724 = vpop.f32.mrf.mxu0
    %1725 = vmatprep.mubr.f32.mxu0 0.0
    %v1726 = vand.u32 %v1544, 4294901760
    %v1727 = vsub.f32 %v1544, %v1726
    %v1728 = vand.u32 %v1727, 4294901760
    %v1729 = vsub.f32 %v1727, %v1728
    %v1730 = vand.u32 %v1729, 4294901760
    %1731 = vmatmul.mubr.f32.gmra.mxu0 %v1730
    %v1732 = vpop.f32.mrf.mxu0
    %v1733 = vadd.f32 0.0, %v1732
    %v1734 = vpop.f32.mrf.mxu0
    %1735 = vmatprep.mubr.f32.mxu0 0.0
    %v1736 = vand.u32 %v1547, 4294901760
    %v1737 = vsub.f32 %v1547, %v1736
    %v1738 = vand.u32 %v1737, 4294901760
    %v1739 = vsub.f32 %v1737, %v1738
    %v1740 = vand.u32 %v1739, 4294901760
    %1741 = vmatmul.mubr.f32.gmra.mxu0 %v1740
    %v1742 = vpop.f32.mrf.mxu0
    %v1743 = vadd.f32 0.0, %v1742
    %v1744 = vpop.f32.mrf.mxu0
    %1745 = vmatprep.mubr.f32.mxu0 0.0
    %v1746 = vand.u32 %v1550, 4294901760
    %v1747 = vsub.f32 %v1550, %v1746
    %v1748 = vand.u32 %v1747, 4294901760
    %v1749 = vsub.f32 %v1747, %v1748
    %v1750 = vand.u32 %v1749, 4294901760
    %1751 = vmatmul.mubr.f32.gmra.mxu0 %v1750
    %v1752 = vpop.f32.mrf.mxu0
    %v1753 = vadd.f32 0.0, %v1752
    %v1754 = vpop.f32.mrf.mxu0
    %1755 = vmatprep.mubr.f32.mxu0 0.0
    %v1756 = vand.u32 %v1553, 4294901760
    %v1757 = vsub.f32 %v1553, %v1756
    %v1758 = vand.u32 %v1757, 4294901760
    %v1759 = vsub.f32 %v1757, %v1758
    %v1760 = vand.u32 %v1759, 4294901760
    %1761 = vmatmul.mubr.f32.gmra.mxu0 %v1760
    %v1762 = vpop.f32.mrf.mxu0
    %v1763 = vadd.f32 0.0, %v1762
    %v1764 = vpop.f32.mrf.mxu0
    %1765 = vmatprep.mubr.f32.mxu0 0.0
    %v1766 = vand.u32 %v1556, 4294901760
    %v1767 = vsub.f32 %v1556, %v1766
    %v1768 = vand.u32 %v1767, 4294901760
    %v1769 = vsub.f32 %v1767, %v1768
    %v1770 = vand.u32 %v1769, 4294901760
    %1771 = vmatmul.mubr.f32.gmra.mxu0 %v1770
    %v1772 = vpop.f32.mrf.mxu0
    %v1773 = vadd.f32 0.0, %v1772
    %v1774 = vpop.f32.mrf.mxu0
    %1775 = vmatprep.mubr.f32.mxu0 0.0
    %v1776 = vand.u32 %v1559, 4294901760
    %v1777 = vsub.f32 %v1559, %v1776
    %v1778 = vand.u32 %v1777, 4294901760
    %v1779 = vsub.f32 %v1777, %v1778
    %v1780 = vand.u32 %v1779, 4294901760
    %1781 = vmatmul.mubr.f32.gmra.mxu0 %v1780
    %v1782 = vpop.f32.mrf.mxu0
    %v1783 = vadd.f32 0.0, %v1782
    %v1784 = vpop.f32.mrf.mxu0
    %1785 = vdwg.mxu0
    %1786 = vmatprep.subr.mxu0 0.0
    %1787 = vmatpush1.msra.mxu0 0.0
    %1788 = vmatprep.subr.mxu0 0.0
    %1789 = vmatpush1.msra.mxu0 0.0
    %1790 = vmatprep.subr.mxu0 0.0
    %1791 = vmatpush1.msra.mxu0 0.0
    %1792 = vmatprep.subr.mxu0 0.0
    %1793 = vmatpush1.msra.mxu0 0.0
    %1794 = vmatprep.subr.mxu0 0.0
    %1795 = vmatpush1.msra.mxu0 0.0
    %1796 = vmatprep.subr.mxu0 0.0
    %1797 = vmatpush1.msra.mxu0 0.0
    %1798 = vmatprep.subr.mxu0 0.0
    %1799 = vmatpush1.msra.mxu0 0.0
    %1800 = vmatprep.subr.mxu0 0.0
    %1801 = vmatpush1.msra.mxu0 0.0
    %1802 = vmatprep.subr.mxu0 0.0
    %1803 = vmatpush1.msra.mxu0 0.0
    %1804 = vmatprep.subr.mxu0 0.0
    %1805 = vmatpush1.msra.mxu0 0.0
    %1806 = vmatprep.subr.mxu0 0.0
    %1807 = vmatpush1.msra.mxu0 0.0
    %1808 = vmatprep.subr.mxu0 0.0
    %1809 = vmatpush1.msra.mxu0 0.0
    %1810 = vmatprep.subr.mxu0 0.0
    %1811 = vmatpush1.msra.mxu0 0.0
    %1812 = vmatprep.subr.mxu0 0.0
    %1813 = vmatpush1.msra.mxu0 0.0
    %1814 = vmatprep.subr.mxu0 0.0
    %1815 = vmatpush1.msra.mxu0 0.0
    %1816 = vmatprep.subr.mxu0 0.0
    %1817 = vmatpush1.msra.mxu0 0.0
    %1818 = vmatprep.subr.mxu0 0.0
    %1819 = vmatpush2.msra.mxu0 0.0
    %1820 = vmatprep.subr.mxu0 0.0
    %1821 = vmatpush2.msra.mxu0 0.0
    %1822 = vmatprep.subr.mxu0 0.0
    %1823 = vmatpush2.msra.mxu0 0.0
    %1824 = vmatprep.subr.mxu0 0.0
    %1825 = vmatpush2.msra.mxu0 0.0
    %1826 = vmatprep.subr.mxu0 0.0
    %1827 = vmatpush2.msra.mxu0 0.0
    %1828 = vmatprep.subr.mxu0 0.0
    %1829 = vmatpush2.msra.mxu0 0.0
    %1830 = vmatprep.subr.mxu0 0.0
    %1831 = vmatpush2.msra.mxu0 0.0
    %1832 = vmatprep.subr.mxu0 0.0
    %1833 = vmatpush2.msra.mxu0 0.0
    %1834 = vmatprep.subr.mxu0 0.0
    %1835 = vmatpush2.msra.mxu0 0.0
    %1836 = vmatprep.subr.mxu0 0.0
    %1837 = vmatpush2.msra.mxu0 0.0
    %1838 = vmatprep.subr.mxu0 0.0
    %1839 = vmatpush2.msra.mxu0 0.0
    %1840 = vmatprep.subr.mxu0 0.0
    %1841 = vmatpush2.msra.mxu0 0.0
    %1842 = vmatprep.subr.mxu0 0.0
    %1843 = vmatpush2.msra.mxu0 0.0
    %1844 = vmatprep.subr.mxu0 0.0
    %1845 = vmatpush2.msra.mxu0 0.0
    %1846 = vmatprep.subr.mxu0 0.0
    %1847 = vmatpush2.msra.mxu0 0.0
    %1848 = vmatprep.subr.mxu0 0.0
    %1849 = vmatpush2.msra.mxu0 0.0
    %1850 = vmatprep.mubr.f32.mxu0 0.0
    %v1851 = vand.u32 %v1514, 4294901760
    %1852 = vmatmul.mubr.f32.gmra.mxu0 %v1851
    %v1853 = vpop.f32.mrf.mxu0
    %v1854 = vadd.f32 %v1633, %v1853
    %v1855 = vpop.f32.mrf.mxu0
    %1856 = vmatprep.mubr.f32.mxu0 0.0
    %v1857 = vand.u32 %v1517, 4294901760
    %1858 = vmatmul.mubr.f32.gmra.mxu0 %v1857
    %v1859 = vpop.f32.mrf.mxu0
    %v1860 = vadd.f32 %v1643, %v1859
    %v1861 = vpop.f32.mrf.mxu0
    %1862 = vmatprep.mubr.f32.mxu0 0.0
    %v1863 = vand.u32 %v1520, 4294901760
    %1864 = vmatmul.mubr.f32.gmra.mxu0 %v1863
    %v1865 = vpop.f32.mrf.mxu0
    %v1866 = vadd.f32 %v1653, %v1865
    %v1867 = vpop.f32.mrf.mxu0
    %1868 = vmatprep.mubr.f32.mxu0 0.0
    %v1869 = vand.u32 %v1523, 4294901760
    %1870 = vmatmul.mubr.f32.gmra.mxu0 %v1869
    %v1871 = vpop.f32.mrf.mxu0
    %v1872 = vadd.f32 %v1663, %v1871
    %v1873 = vpop.f32.mrf.mxu0
    %1874 = vmatprep.mubr.f32.mxu0 0.0
    %v1875 = vand.u32 %v1526, 4294901760
    %1876 = vmatmul.mubr.f32.gmra.mxu0 %v1875
    %v1877 = vpop.f32.mrf.mxu0
    %v1878 = vadd.f32 %v1673, %v1877
    %v1879 = vpop.f32.mrf.mxu0
    %1880 = vmatprep.mubr.f32.mxu0 0.0
    %v1881 = vand.u32 %v1529, 4294901760
    %1882 = vmatmul.mubr.f32.gmra.mxu0 %v1881
    %v1883 = vpop.f32.mrf.mxu0
    %v1884 = vadd.f32 %v1683, %v1883
    %v1885 = vpop.f32.mrf.mxu0
    %1886 = vmatprep.mubr.f32.mxu0 0.0
    %v1887 = vand.u32 %v1532, 4294901760
    %1888 = vmatmul.mubr.f32.gmra.mxu0 %v1887
    %v1889 = vpop.f32.mrf.mxu0
    %v1890 = vadd.f32 %v1693, %v1889
    %v1891 = vpop.f32.mrf.mxu0
    %1892 = vmatprep.mubr.f32.mxu0 0.0
    %v1893 = vand.u32 %v1535, 4294901760
    %1894 = vmatmul.mubr.f32.gmra.mxu0 %v1893
    %v1895 = vpop.f32.mrf.mxu0
    %v1896 = vadd.f32 %v1703, %v1895
    %v1897 = vpop.f32.mrf.mxu0
    %1898 = vmatprep.mubr.f32.mxu0 0.0
    %v1899 = vand.u32 %v1538, 4294901760
    %1900 = vmatmul.mubr.f32.gmra.mxu0 %v1899
    %v1901 = vpop.f32.mrf.mxu0
    %v1902 = vadd.f32 %v1713, %v1901
    %v1903 = vpop.f32.mrf.mxu0
    %1904 = vmatprep.mubr.f32.mxu0 0.0
    %v1905 = vand.u32 %v1541, 4294901760
    %1906 = vmatmul.mubr.f32.gmra.mxu0 %v1905
    %v1907 = vpop.f32.mrf.mxu0
    %v1908 = vadd.f32 %v1723, %v1907
    %v1909 = vpop.f32.mrf.mxu0
    %1910 = vmatprep.mubr.f32.mxu0 0.0
    %v1911 = vand.u32 %v1544, 4294901760
    %1912 = vmatmul.mubr.f32.gmra.mxu0 %v1911
    %v1913 = vpop.f32.mrf.mxu0
    %v1914 = vadd.f32 %v1733, %v1913
    %v1915 = vpop.f32.mrf.mxu0
    %1916 = vmatprep.mubr.f32.mxu0 0.0
    %v1917 = vand.u32 %v1547, 4294901760
    %1918 = vmatmul.mubr.f32.gmra.mxu0 %v1917
    %v1919 = vpop.f32.mrf.mxu0
    %v1920 = vadd.f32 %v1743, %v1919
    %v1921 = vpop.f32.mrf.mxu0
    %1922 = vmatprep.mubr.f32.mxu0 0.0
    %v1923 = vand.u32 %v1550, 4294901760
    %1924 = vmatmul.mubr.f32.gmra.mxu0 %v1923
    %v1925 = vpop.f32.mrf.mxu0
    %v1926 = vadd.f32 %v1753, %v1925
    %v1927 = vpop.f32.mrf.mxu0
    %1928 = vmatprep.mubr.f32.mxu0 0.0
    %v1929 = vand.u32 %v1553, 4294901760
    %1930 = vmatmul.mubr.f32.gmra.mxu0 %v1929
    %v1931 = vpop.f32.mrf.mxu0
    %v1932 = vadd.f32 %v1763, %v1931
    %v1933 = vpop.f32.mrf.mxu0
    %1934 = vmatprep.mubr.f32.mxu0 0.0
    %v1935 = vand.u32 %v1556, 4294901760
    %1936 = vmatmul.mubr.f32.gmra.mxu0 %v1935
    %v1937 = vpop.f32.mrf.mxu0
    %v1938 = vadd.f32 %v1773, %v1937
    %v1939 = vpop.f32.mrf.mxu0
    %1940 = vmatprep.mubr.f32.mxu0 0.0
    %v1941 = vand.u32 %v1559, 4294901760
    %1942 = vmatmul.mubr.f32.gmra.mxu0 %v1941
    %v1943 = vpop.f32.mrf.mxu0
    %v1944 = vadd.f32 %v1783, %v1943
    %v1945 = vpop.f32.mrf.mxu0
    %1946 = vdwg.mxu0
    %1947 = vmatprep.subr.mxu0 0.0
    %1948 = vmatpush1.msra.mxu0 0.0
    %1949 = vmatprep.subr.mxu0 0.0
    %1950 = vmatpush1.msra.mxu0 0.0
    %1951 = vmatprep.subr.mxu0 0.0
    %1952 = vmatpush1.msra.mxu0 0.0
    %1953 = vmatprep.subr.mxu0 0.0
    %1954 = vmatpush1.msra.mxu0 0.0
    %1955 = vmatprep.subr.mxu0 0.0
    %1956 = vmatpush1.msra.mxu0 0.0
    %1957 = vmatprep.subr.mxu0 0.0
    %1958 = vmatpush1.msra.mxu0 0.0
    %1959 = vmatprep.subr.mxu0 0.0
    %1960 = vmatpush1.msra.mxu0 0.0
    %1961 = vmatprep.subr.mxu0 0.0
    %1962 = vmatpush1.msra.mxu0 0.0
    %1963 = vmatprep.subr.mxu0 0.0
    %1964 = vmatpush1.msra.mxu0 0.0
    %1965 = vmatprep.subr.mxu0 0.0
    %1966 = vmatpush1.msra.mxu0 0.0
    %1967 = vmatprep.subr.mxu0 0.0
    %1968 = vmatpush1.msra.mxu0 0.0
    %1969 = vmatprep.subr.mxu0 0.0
    %1970 = vmatpush1.msra.mxu0 0.0
    %1971 = vmatprep.subr.mxu0 0.0
    %1972 = vmatpush1.msra.mxu0 0.0
    %1973 = vmatprep.subr.mxu0 0.0
    %1974 = vmatpush1.msra.mxu0 0.0
    %1975 = vmatprep.subr.mxu0 0.0
    %1976 = vmatpush1.msra.mxu0 0.0
    %1977 = vmatprep.subr.mxu0 0.0
    %1978 = vmatpush1.msra.mxu0 0.0
    %1979 = vmatprep.subr.mxu0 0.0
    %1980 = vmatpush2.msra.mxu0 0.0
    %1981 = vmatprep.subr.mxu0 0.0
    %1982 = vmatpush2.msra.mxu0 0.0
    %1983 = vmatprep.subr.mxu0 0.0
    %1984 = vmatpush2.msra.mxu0 0.0
    %1985 = vmatprep.subr.mxu0 0.0
    %1986 = vmatpush2.msra.mxu0 0.0
    %1987 = vmatprep.subr.mxu0 0.0
    %1988 = vmatpush2.msra.mxu0 0.0
    %1989 = vmatprep.subr.mxu0 0.0
    %1990 = vmatpush2.msra.mxu0 0.0
    %1991 = vmatprep.subr.mxu0 0.0
    %1992 = vmatpush2.msra.mxu0 0.0
    %1993 = vmatprep.subr.mxu0 0.0
    %1994 = vmatpush2.msra.mxu0 0.0
    %1995 = vmatprep.subr.mxu0 0.0
    %1996 = vmatpush2.msra.mxu0 0.0
    %1997 = vmatprep.subr.mxu0 0.0
    %1998 = vmatpush2.msra.mxu0 0.0
    %1999 = vmatprep.subr.mxu0 0.0
    %2000 = vmatpush2.msra.mxu0 0.0
    %2001 = vmatprep.subr.mxu0 0.0
    %2002 = vmatpush2.msra.mxu0 0.0
    %2003 = vmatprep.subr.mxu0 0.0
    %2004 = vmatpush2.msra.mxu0 0.0
    %2005 = vmatprep.subr.mxu0 0.0
    %2006 = vmatpush2.msra.mxu0 0.0
    %2007 = vmatprep.subr.mxu0 0.0
    %2008 = vmatpush2.msra.mxu0 0.0
    %2009 = vmatprep.subr.mxu0 0.0
    %2010 = vmatpush2.msra.mxu0 0.0
    %2011 = vmatprep.mubr.f32.mxu0 0.0
    %v2012 = vand.u32 %v1514, 4294901760
    %v2013 = vsub.f32 %v1514, %v2012
    %2014 = vmatmul.mubr.f32.gmra.mxu0 %v2013
    %v2015 = vpop.f32.mrf.mxu0
    %v2016 = vadd.f32 %v1854, %v2015
    %v2017 = vpop.f32.mrf.mxu0
    %2018 = vmatprep.mubr.f32.mxu0 0.0
    %v2019 = vand.u32 %v1517, 4294901760
    %v2020 = vsub.f32 %v1517, %v2019
    %2021 = vmatmul.mubr.f32.gmra.mxu0 %v2020
    %v2022 = vpop.f32.mrf.mxu0
    %v2023 = vadd.f32 %v1860, %v2022
    %v2024 = vpop.f32.mrf.mxu0
    %2025 = vmatprep.mubr.f32.mxu0 0.0
    %v2026 = vand.u32 %v1520, 4294901760
    %v2027 = vsub.f32 %v1520, %v2026
    %2028 = vmatmul.mubr.f32.gmra.mxu0 %v2027
    %v2029 = vpop.f32.mrf.mxu0
    %v2030 = vadd.f32 %v1866, %v2029
    %v2031 = vpop.f32.mrf.mxu0
    %2032 = vmatprep.mubr.f32.mxu0 0.0
    %v2033 = vand.u32 %v1523, 4294901760
    %v2034 = vsub.f32 %v1523, %v2033
    %2035 = vmatmul.mubr.f32.gmra.mxu0 %v2034
    %v2036 = vpop.f32.mrf.mxu0
    %v2037 = vadd.f32 %v1872, %v2036
    %v2038 = vpop.f32.mrf.mxu0
    %2039 = vmatprep.mubr.f32.mxu0 0.0
    %v2040 = vand.u32 %v1526, 4294901760
    %v2041 = vsub.f32 %v1526, %v2040
    %2042 = vmatmul.mubr.f32.gmra.mxu0 %v2041
    %v2043 = vpop.f32.mrf.mxu0
    %v2044 = vadd.f32 %v1878, %v2043
    %v2045 = vpop.f32.mrf.mxu0
    %2046 = vmatprep.mubr.f32.mxu0 0.0
    %v2047 = vand.u32 %v1529, 4294901760
    %v2048 = vsub.f32 %v1529, %v2047
    %2049 = vmatmul.mubr.f32.gmra.mxu0 %v2048
    %v2050 = vpop.f32.mrf.mxu0
    %v2051 = vadd.f32 %v1884, %v2050
    %v2052 = vpop.f32.mrf.mxu0
    %2053 = vmatprep.mubr.f32.mxu0 0.0
    %v2054 = vand.u32 %v1532, 4294901760
    %v2055 = vsub.f32 %v1532, %v2054
    %2056 = vmatmul.mubr.f32.gmra.mxu0 %v2055
    %v2057 = vpop.f32.mrf.mxu0
    %v2058 = vadd.f32 %v1890, %v2057
    %v2059 = vpop.f32.mrf.mxu0
    %2060 = vmatprep.mubr.f32.mxu0 0.0
    %v2061 = vand.u32 %v1535, 4294901760
    %v2062 = vsub.f32 %v1535, %v2061
    %2063 = vmatmul.mubr.f32.gmra.mxu0 %v2062
    %v2064 = vpop.f32.mrf.mxu0
    %v2065 = vadd.f32 %v1896, %v2064
    %v2066 = vpop.f32.mrf.mxu0
    %2067 = vmatprep.mubr.f32.mxu0 0.0
    %v2068 = vand.u32 %v1538, 4294901760
    %v2069 = vsub.f32 %v1538, %v2068
    %2070 = vmatmul.mubr.f32.gmra.mxu0 %v2069
    %v2071 = vpop.f32.mrf.mxu0
    %v2072 = vadd.f32 %v1902, %v2071
    %v2073 = vpop.f32.mrf.mxu0
    %2074 = vmatprep.mubr.f32.mxu0 0.0
    %v2075 = vand.u32 %v1541, 4294901760
    %v2076 = vsub.f32 %v1541, %v2075
    %2077 = vmatmul.mubr.f32.gmra.mxu0 %v2076
    %v2078 = vpop.f32.mrf.mxu0
    %v2079 = vadd.f32 %v1908, %v2078
    %v2080 = vpop.f32.mrf.mxu0
    %2081 = vmatprep.mubr.f32.mxu0 0.0
    %v2082 = vand.u32 %v1544, 4294901760
    %v2083 = vsub.f32 %v1544, %v2082
    %2084 = vmatmul.mubr.f32.gmra.mxu0 %v2083
    %v2085 = vpop.f32.mrf.mxu0
    %v2086 = vadd.f32 %v1914, %v2085
    %v2087 = vpop.f32.mrf.mxu0
    %2088 = vmatprep.mubr.f32.mxu0 0.0
    %v2089 = vand.u32 %v1547, 4294901760
    %v2090 = vsub.f32 %v1547, %v2089
    %2091 = vmatmul.mubr.f32.gmra.mxu0 %v2090
    %v2092 = vpop.f32.mrf.mxu0
    %v2093 = vadd.f32 %v1920, %v2092
    %v2094 = vpop.f32.mrf.mxu0
    %2095 = vmatprep.mubr.f32.mxu0 0.0
    %v2096 = vand.u32 %v1550, 4294901760
    %v2097 = vsub.f32 %v1550, %v2096
    %2098 = vmatmul.mubr.f32.gmra.mxu0 %v2097
    %v2099 = vpop.f32.mrf.mxu0
    %v2100 = vadd.f32 %v1926, %v2099
    %v2101 = vpop.f32.mrf.mxu0
    %2102 = vmatprep.mubr.f32.mxu0 0.0
    %v2103 = vand.u32 %v1553, 4294901760
    %v2104 = vsub.f32 %v1553, %v2103
    %2105 = vmatmul.mubr.f32.gmra.mxu0 %v2104
    %v2106 = vpop.f32.mrf.mxu0
    %v2107 = vadd.f32 %v1932, %v2106
    %v2108 = vpop.f32.mrf.mxu0
    %2109 = vmatprep.mubr.f32.mxu0 0.0
    %v2110 = vand.u32 %v1556, 4294901760
    %v2111 = vsub.f32 %v1556, %v2110
    %2112 = vmatmul.mubr.f32.gmra.mxu0 %v2111
    %v2113 = vpop.f32.mrf.mxu0
    %v2114 = vadd.f32 %v1938, %v2113
    %v2115 = vpop.f32.mrf.mxu0
    %2116 = vmatprep.mubr.f32.mxu0 0.0
    %v2117 = vand.u32 %v1559, 4294901760
    %v2118 = vsub.f32 %v1559, %v2117
    %2119 = vmatmul.mubr.f32.gmra.mxu0 %v2118
    %v2120 = vpop.f32.mrf.mxu0
    %v2121 = vadd.f32 %v1944, %v2120
    %v2122 = vpop.f32.mrf.mxu0
    %2123 = vdwg.mxu0
    %2124 = vmatprep.subr.mxu0 0.0
    %2125 = vmatpush1.msra.mxu0 0.0
    %2126 = vmatprep.subr.mxu0 0.0
    %2127 = vmatpush1.msra.mxu0 0.0
    %2128 = vmatprep.subr.mxu0 0.0
    %2129 = vmatpush1.msra.mxu0 0.0
    %2130 = vmatprep.subr.mxu0 0.0
    %2131 = vmatpush1.msra.mxu0 0.0
    %2132 = vmatprep.subr.mxu0 0.0
    %2133 = vmatpush1.msra.mxu0 0.0
    %2134 = vmatprep.subr.mxu0 0.0
    %2135 = vmatpush1.msra.mxu0 0.0
    %2136 = vmatprep.subr.mxu0 0.0
    %2137 = vmatpush1.msra.mxu0 0.0
    %2138 = vmatprep.subr.mxu0 0.0
    %2139 = vmatpush1.msra.mxu0 0.0
    %2140 = vmatprep.subr.mxu0 0.0
    %2141 = vmatpush1.msra.mxu0 0.0
    %2142 = vmatprep.subr.mxu0 0.0
    %2143 = vmatpush1.msra.mxu0 0.0
    %2144 = vmatprep.subr.mxu0 0.0
    %2145 = vmatpush1.msra.mxu0 0.0
    %2146 = vmatprep.subr.mxu0 0.0
    %2147 = vmatpush1.msra.mxu0 0.0
    %2148 = vmatprep.subr.mxu0 0.0
    %2149 = vmatpush1.msra.mxu0 0.0
    %2150 = vmatprep.subr.mxu0 0.0
    %2151 = vmatpush1.msra.mxu0 0.0
    %2152 = vmatprep.subr.mxu0 0.0
    %2153 = vmatpush1.msra.mxu0 1.0
    %2154 = vmatprep.subr.mxu0 0.0
    %2155 = vmatpush1.msra.mxu0 1.0
    %2156 = vmatprep.subr.mxu0 0.0
    %2157 = vmatpush2.msra.mxu0 0.0
    %2158 = vmatprep.subr.mxu0 0.0
    %2159 = vmatpush2.msra.mxu0 0.0
    %2160 = vmatprep.subr.mxu0 0.0
    %2161 = vmatpush2.msra.mxu0 0.0
    %2162 = vmatprep.subr.mxu0 0.0
    %2163 = vmatpush2.msra.mxu0 0.0
    %2164 = vmatprep.subr.mxu0 0.0
    %2165 = vmatpush2.msra.mxu0 0.0
    %2166 = vmatprep.subr.mxu0 0.0
    %2167 = vmatpush2.msra.mxu0 0.0
    %2168 = vmatprep.subr.mxu0 0.0
    %2169 = vmatpush2.msra.mxu0 0.0
    %2170 = vmatprep.subr.mxu0 0.0
    %2171 = vmatpush2.msra.mxu0 0.0
    %2172 = vmatprep.subr.mxu0 0.0
    %2173 = vmatpush2.msra.mxu0 0.0
    %2174 = vmatprep.subr.mxu0 0.0
    %2175 = vmatpush2.msra.mxu0 0.0
    %2176 = vmatprep.subr.mxu0 0.0
    %2177 = vmatpush2.msra.mxu0 0.0
    %2178 = vmatprep.subr.mxu0 0.0
    %2179 = vmatpush2.msra.mxu0 0.0
    %2180 = vmatprep.subr.mxu0 0.0
    %2181 = vmatpush2.msra.mxu0 0.0
    %2182 = vmatprep.subr.mxu0 0.0
    %2183 = vmatpush2.msra.mxu0 0.0
    %2184 = vmatprep.subr.mxu0 0.0
    %2185 = vmatpush2.msra.mxu0 0.0
    %2186 = vmatprep.subr.mxu0 0.0
    %2187 = vmatpush2.msra.mxu0 0.0
    %2188 = vmatprep.mubr.f32.mxu0 0.0
    %v2189 = vand.u32 %v1514, 4294901760
    %v2190 = vsub.f32 %v1514, %v2189
    %v2191 = vand.u32 %v2190, 4294901760
    %2192 = vmatmul.mubr.f32.gmra.mxu0 %v2191
    %v2193 = vpop.f32.mrf.mxu0
    %v2194 = vadd.f32 %v2016, %v2193
    %v2195 = vpop.f32.mrf.mxu0
    %2196 = vmatprep.mubr.f32.mxu0 0.0
    %v2197 = vand.u32 %v1517, 4294901760
    %v2198 = vsub.f32 %v1517, %v2197
    %v2199 = vand.u32 %v2198, 4294901760
    %2200 = vmatmul.mubr.f32.gmra.mxu0 %v2199
    %v2201 = vpop.f32.mrf.mxu0
    %v2202 = vadd.f32 %v2023, %v2201
    %v2203 = vpop.f32.mrf.mxu0
    %2204 = vmatprep.mubr.f32.mxu0 0.0
    %v2205 = vand.u32 %v1520, 4294901760
    %v2206 = vsub.f32 %v1520, %v2205
    %v2207 = vand.u32 %v2206, 4294901760
    %2208 = vmatmul.mubr.f32.gmra.mxu0 %v2207
    %v2209 = vpop.f32.mrf.mxu0
    %v2210 = vadd.f32 %v2030, %v2209
    %v2211 = vpop.f32.mrf.mxu0
    %2212 = vmatprep.mubr.f32.mxu0 0.0
    %v2213 = vand.u32 %v1523, 4294901760
    %v2214 = vsub.f32 %v1523, %v2213
    %v2215 = vand.u32 %v2214, 4294901760
    %2216 = vmatmul.mubr.f32.gmra.mxu0 %v2215
    %v2217 = vpop.f32.mrf.mxu0
    %v2218 = vadd.f32 %v2037, %v2217
    %v2219 = vpop.f32.mrf.mxu0
    %2220 = vmatprep.mubr.f32.mxu0 0.0
    %v2221 = vand.u32 %v1526, 4294901760
    %v2222 = vsub.f32 %v1526, %v2221
    %v2223 = vand.u32 %v2222, 4294901760
    %2224 = vmatmul.mubr.f32.gmra.mxu0 %v2223
    %v2225 = vpop.f32.mrf.mxu0
    %v2226 = vadd.f32 %v2044, %v2225
    %v2227 = vpop.f32.mrf.mxu0
    %2228 = vmatprep.mubr.f32.mxu0 0.0
    %v2229 = vand.u32 %v1529, 4294901760
    %v2230 = vsub.f32 %v1529, %v2229
    %v2231 = vand.u32 %v2230, 4294901760
    %2232 = vmatmul.mubr.f32.gmra.mxu0 %v2231
    %v2233 = vpop.f32.mrf.mxu0
    %v2234 = vadd.f32 %v2051, %v2233
    %v2235 = vpop.f32.mrf.mxu0
    %2236 = vmatprep.mubr.f32.mxu0 0.0
    %v2237 = vand.u32 %v1532, 4294901760
    %v2238 = vsub.f32 %v1532, %v2237
    %v2239 = vand.u32 %v2238, 4294901760
    %2240 = vmatmul.mubr.f32.gmra.mxu0 %v2239
    %v2241 = vpop.f32.mrf.mxu0
    %v2242 = vadd.f32 %v2058, %v2241
    %v2243 = vpop.f32.mrf.mxu0
    %2244 = vmatprep.mubr.f32.mxu0 0.0
    %v2245 = vand.u32 %v1535, 4294901760
    %v2246 = vsub.f32 %v1535, %v2245
    %v2247 = vand.u32 %v2246, 4294901760
    %2248 = vmatmul.mubr.f32.gmra.mxu0 %v2247
    %v2249 = vpop.f32.mrf.mxu0
    %v2250 = vadd.f32 %v2065, %v2249
    %v2251 = vpop.f32.mrf.mxu0
    %2252 = vmatprep.mubr.f32.mxu0 0.0
    %v2253 = vand.u32 %v1538, 4294901760
    %v2254 = vsub.f32 %v1538, %v2253
    %v2255 = vand.u32 %v2254, 4294901760
    %2256 = vmatmul.mubr.f32.gmra.mxu0 %v2255
    %v2257 = vpop.f32.mrf.mxu0
    %v2258 = vadd.f32 %v2072, %v2257
    %v2259 = vpop.f32.mrf.mxu0
    %2260 = vmatprep.mubr.f32.mxu0 0.0
    %v2261 = vand.u32 %v1541, 4294901760
    %v2262 = vsub.f32 %v1541, %v2261
    %v2263 = vand.u32 %v2262, 4294901760
    %2264 = vmatmul.mubr.f32.gmra.mxu0 %v2263
    %v2265 = vpop.f32.mrf.mxu0
    %v2266 = vadd.f32 %v2079, %v2265
    %v2267 = vpop.f32.mrf.mxu0
    %2268 = vmatprep.mubr.f32.mxu0 0.0
    %v2269 = vand.u32 %v1544, 4294901760
    %v2270 = vsub.f32 %v1544, %v2269
    %v2271 = vand.u32 %v2270, 4294901760
    %2272 = vmatmul.mubr.f32.gmra.mxu0 %v2271
    %v2273 = vpop.f32.mrf.mxu0
    %v2274 = vadd.f32 %v2086, %v2273
    %v2275 = vpop.f32.mrf.mxu0
    %2276 = vmatprep.mubr.f32.mxu0 0.0
    %v2277 = vand.u32 %v1547, 4294901760
    %v2278 = vsub.f32 %v1547, %v2277
    %v2279 = vand.u32 %v2278, 4294901760
    %2280 = vmatmul.mubr.f32.gmra.mxu0 %v2279
    %v2281 = vpop.f32.mrf.mxu0
    %v2282 = vadd.f32 %v2093, %v2281
    %v2283 = vpop.f32.mrf.mxu0
    %2284 = vmatprep.mubr.f32.mxu0 0.0
    %v2285 = vand.u32 %v1550, 4294901760
    %v2286 = vsub.f32 %v1550, %v2285
    %v2287 = vand.u32 %v2286, 4294901760
    %2288 = vmatmul.mubr.f32.gmra.mxu0 %v2287
    %v2289 = vpop.f32.mrf.mxu0
    %v2290 = vadd.f32 %v2100, %v2289
    %v2291 = vpop.f32.mrf.mxu0
    %2292 = vmatprep.mubr.f32.mxu0 0.0
    %v2293 = vand.u32 %v1553, 4294901760
    %v2294 = vsub.f32 %v1553, %v2293
    %v2295 = vand.u32 %v2294, 4294901760
    %2296 = vmatmul.mubr.f32.gmra.mxu0 %v2295
    %v2297 = vpop.f32.mrf.mxu0
    %v2298 = vadd.f32 %v2107, %v2297
    %v2299 = vpop.f32.mrf.mxu0
    %2300 = vmatprep.mubr.f32.mxu0 0.0
    %v2301 = vand.u32 %v1556, 4294901760
    %v2302 = vsub.f32 %v1556, %v2301
    %v2303 = vand.u32 %v2302, 4294901760
    %2304 = vmatmul.mubr.f32.gmra.mxu0 %v2303
    %v2305 = vpop.f32.mrf.mxu0
    %v2306 = vadd.f32 %v2114, %v2305
    %v2307 = vpop.f32.mrf.mxu0
    %2308 = vmatprep.mubr.f32.mxu0 0.0
    %v2309 = vand.u32 %v1559, 4294901760
    %v2310 = vsub.f32 %v1559, %v2309
    %v2311 = vand.u32 %v2310, 4294901760
    %2312 = vmatmul.mubr.f32.gmra.mxu0 %v2311
    %v2313 = vpop.f32.mrf.mxu0
    %v2314 = vadd.f32 %v2121, %v2313
    %v2315 = vpop.f32.mrf.mxu0
    %2316 = vdwg.mxu0
    %2317 = vmatprep.subr.mxu0 0.0
    %2318 = vmatpush1.msra.mxu0 0.0
    %2319 = vmatprep.subr.mxu0 0.0
    %2320 = vmatpush1.msra.mxu0 0.0
    %2321 = vmatprep.subr.mxu0 0.0
    %2322 = vmatpush1.msra.mxu0 0.0
    %2323 = vmatprep.subr.mxu0 0.0
    %2324 = vmatpush1.msra.mxu0 0.0
    %2325 = vmatprep.subr.mxu0 0.0
    %2326 = vmatpush1.msra.mxu0 0.0
    %2327 = vmatprep.subr.mxu0 0.0
    %2328 = vmatpush1.msra.mxu0 0.0
    %2329 = vmatprep.subr.mxu0 0.0
    %2330 = vmatpush1.msra.mxu0 0.0
    %2331 = vmatprep.subr.mxu0 0.0
    %2332 = vmatpush1.msra.mxu0 0.0
    %2333 = vmatprep.subr.mxu0 0.0
    %2334 = vmatpush1.msra.mxu0 0.0
    %2335 = vmatprep.subr.mxu0 0.0
    %2336 = vmatpush1.msra.mxu0 0.0
    %2337 = vmatprep.subr.mxu0 0.0
    %2338 = vmatpush1.msra.mxu0 0.0
    %2339 = vmatprep.subr.mxu0 0.0
    %2340 = vmatpush1.msra.mxu0 0.0
    %2341 = vmatprep.subr.mxu0 0.0
    %2342 = vmatpush1.msra.mxu0 0.0
    %2343 = vmatprep.subr.mxu0 0.0
    %2344 = vmatpush1.msra.mxu0 0.0
    %2345 = vmatprep.subr.mxu0 0.0
    %2346 = vmatpush1.msra.mxu0 0.0
    %2347 = vmatprep.subr.mxu0 0.0
    %2348 = vmatpush1.msra.mxu0 0.0
    %2349 = vmatprep.subr.mxu0 0.0
    %2350 = vmatpush2.msra.mxu0 0.0
    %2351 = vmatprep.subr.mxu0 0.0
    %2352 = vmatpush2.msra.mxu0 0.0
    %2353 = vmatprep.subr.mxu0 0.0
    %2354 = vmatpush2.msra.mxu0 0.0
    %2355 = vmatprep.subr.mxu0 0.0
    %2356 = vmatpush2.msra.mxu0 0.0
    %2357 = vmatprep.subr.mxu0 0.0
    %2358 = vmatpush2.msra.mxu0 0.0
    %2359 = vmatprep.subr.mxu0 0.0
    %2360 = vmatpush2.msra.mxu0 0.0
    %2361 = vmatprep.subr.mxu0 0.0
    %2362 = vmatpush2.msra.mxu0 0.0
    %2363 = vmatprep.subr.mxu0 0.0
    %2364 = vmatpush2.msra.mxu0 0.0
    %2365 = vmatprep.subr.mxu0 0.0
    %2366 = vmatpush2.msra.mxu0 0.0
    %2367 = vmatprep.subr.mxu0 0.0
    %2368 = vmatpush2.msra.mxu0 0.0
    %2369 = vmatprep.subr.mxu0 0.0
    %2370 = vmatpush2.msra.mxu0 0.0
    %2371 = vmatprep.subr.mxu0 0.0
    %2372 = vmatpush2.msra.mxu0 0.0
    %2373 = vmatprep.subr.mxu0 0.0
    %2374 = vmatpush2.msra.mxu0 0.0
    %2375 = vmatprep.subr.mxu0 0.0
    %2376 = vmatpush2.msra.mxu0 0.0
    %2377 = vmatprep.subr.mxu0 0.0
    %2378 = vmatpush2.msra.mxu0 0.0
    %2379 = vmatprep.subr.mxu0 0.0
    %2380 = vmatpush2.msra.mxu0 0.0
    %2381 = vmatprep.mubr.f32.mxu0 0.0
    %v2382 = vand.u32 %v1514, 4294901760
    %2383 = vmatmul.mubr.f32.gmra.mxu0 %v2382
    %v2384 = vpop.f32.mrf.mxu0
    %v2385 = vadd.f32 %v2194, %v2384
    %v2386 = vpop.f32.mrf.mxu0
    %2387 = vmatprep.mubr.f32.mxu0 0.0
    %v2388 = vand.u32 %v1517, 4294901760
    %2389 = vmatmul.mubr.f32.gmra.mxu0 %v2388
    %v2390 = vpop.f32.mrf.mxu0
    %v2391 = vadd.f32 %v2202, %v2390
    %v2392 = vpop.f32.mrf.mxu0
    %2393 = vmatprep.mubr.f32.mxu0 0.0
    %v2394 = vand.u32 %v1520, 4294901760
    %2395 = vmatmul.mubr.f32.gmra.mxu0 %v2394
    %v2396 = vpop.f32.mrf.mxu0
    %v2397 = vadd.f32 %v2210, %v2396
    %v2398 = vpop.f32.mrf.mxu0
    %2399 = vmatprep.mubr.f32.mxu0 0.0
    %v2400 = vand.u32 %v1523, 4294901760
    %2401 = vmatmul.mubr.f32.gmra.mxu0 %v2400
    %v2402 = vpop.f32.mrf.mxu0
    %v2403 = vadd.f32 %v2218, %v2402
    %v2404 = vpop.f32.mrf.mxu0
    %2405 = vmatprep.mubr.f32.mxu0 0.0
    %v2406 = vand.u32 %v1526, 4294901760
    %2407 = vmatmul.mubr.f32.gmra.mxu0 %v2406
    %v2408 = vpop.f32.mrf.mxu0
    %v2409 = vadd.f32 %v2226, %v2408
    %v2410 = vpop.f32.mrf.mxu0
    %2411 = vmatprep.mubr.f32.mxu0 0.0
    %v2412 = vand.u32 %v1529, 4294901760
    %2413 = vmatmul.mubr.f32.gmra.mxu0 %v2412
    %v2414 = vpop.f32.mrf.mxu0
    %v2415 = vadd.f32 %v2234, %v2414
    %v2416 = vpop.f32.mrf.mxu0
    %2417 = vmatprep.mubr.f32.mxu0 0.0
    %v2418 = vand.u32 %v1532, 4294901760
    %2419 = vmatmul.mubr.f32.gmra.mxu0 %v2418
    %v2420 = vpop.f32.mrf.mxu0
    %v2421 = vadd.f32 %v2242, %v2420
    %v2422 = vpop.f32.mrf.mxu0
    %2423 = vmatprep.mubr.f32.mxu0 0.0
    %v2424 = vand.u32 %v1535, 4294901760
    %2425 = vmatmul.mubr.f32.gmra.mxu0 %v2424
    %v2426 = vpop.f32.mrf.mxu0
    %v2427 = vadd.f32 %v2250, %v2426
    %v2428 = vpop.f32.mrf.mxu0
    %2429 = vmatprep.mubr.f32.mxu0 0.0
    %v2430 = vand.u32 %v1538, 4294901760
    %2431 = vmatmul.mubr.f32.gmra.mxu0 %v2430
    %v2432 = vpop.f32.mrf.mxu0
    %v2433 = vadd.f32 %v2258, %v2432
    %v2434 = vpop.f32.mrf.mxu0
    %2435 = vmatprep.mubr.f32.mxu0 0.0
    %v2436 = vand.u32 %v1541, 4294901760
    %2437 = vmatmul.mubr.f32.gmra.mxu0 %v2436
    %v2438 = vpop.f32.mrf.mxu0
    %v2439 = vadd.f32 %v2266, %v2438
    %v2440 = vpop.f32.mrf.mxu0
    %2441 = vmatprep.mubr.f32.mxu0 0.0
    %v2442 = vand.u32 %v1544, 4294901760
    %2443 = vmatmul.mubr.f32.gmra.mxu0 %v2442
    %v2444 = vpop.f32.mrf.mxu0
    %v2445 = vadd.f32 %v2274, %v2444
    %v2446 = vpop.f32.mrf.mxu0
    %2447 = vmatprep.mubr.f32.mxu0 0.0
    %v2448 = vand.u32 %v1547, 4294901760
    %2449 = vmatmul.mubr.f32.gmra.mxu0 %v2448
    %v2450 = vpop.f32.mrf.mxu0
    %v2451 = vadd.f32 %v2282, %v2450
    %v2452 = vpop.f32.mrf.mxu0
    %2453 = vmatprep.mubr.f32.mxu0 0.0
    %v2454 = vand.u32 %v1550, 4294901760
    %2455 = vmatmul.mubr.f32.gmra.mxu0 %v2454
    %v2456 = vpop.f32.mrf.mxu0
    %v2457 = vadd.f32 %v2290, %v2456
    %v2458 = vpop.f32.mrf.mxu0
    %2459 = vmatprep.mubr.f32.mxu0 0.0
    %v2460 = vand.u32 %v1553, 4294901760
    %2461 = vmatmul.mubr.f32.gmra.mxu0 %v2460
    %v2462 = vpop.f32.mrf.mxu0
    %v2463 = vadd.f32 %v2298, %v2462
    %v2464 = vpop.f32.mrf.mxu0
    %2465 = vmatprep.mubr.f32.mxu0 0.0
    %v2466 = vand.u32 %v1556, 4294901760
    %2467 = vmatmul.mubr.f32.gmra.mxu0 %v2466
    %v2468 = vpop.f32.mrf.mxu0
    %v2469 = vadd.f32 %v2306, %v2468
    %v2470 = vpop.f32.mrf.mxu0
    %2471 = vmatprep.mubr.f32.mxu0 0.0
    %v2472 = vand.u32 %v1559, 4294901760
    %2473 = vmatmul.mubr.f32.gmra.mxu0 %v2472
    %v2474 = vpop.f32.mrf.mxu0
    %v2475 = vadd.f32 %v2314, %v2474
    %v2476 = vpop.f32.mrf.mxu0
    %2477 = vdwg.mxu0
    %2478 = vmatprep.subr.mxu0 0.0
    %2479 = vmatpush1.msra.mxu0 0.0
    %2480 = vmatprep.subr.mxu0 0.0
    %2481 = vmatpush1.msra.mxu0 0.0
    %2482 = vmatprep.subr.mxu0 0.0
    %2483 = vmatpush1.msra.mxu0 0.0
    %2484 = vmatprep.subr.mxu0 0.0
    %2485 = vmatpush1.msra.mxu0 0.0
    %2486 = vmatprep.subr.mxu0 0.0
    %2487 = vmatpush1.msra.mxu0 0.0
    %2488 = vmatprep.subr.mxu0 0.0
    %2489 = vmatpush1.msra.mxu0 0.0
    %2490 = vmatprep.subr.mxu0 0.0
    %2491 = vmatpush1.msra.mxu0 0.0
    %2492 = vmatprep.subr.mxu0 0.0
    %2493 = vmatpush1.msra.mxu0 0.0
    %2494 = vmatprep.subr.mxu0 0.0
    %2495 = vmatpush1.msra.mxu0 0.0
    %2496 = vmatprep.subr.mxu0 0.0
    %2497 = vmatpush1.msra.mxu0 0.0
    %2498 = vmatprep.subr.mxu0 0.0
    %2499 = vmatpush1.msra.mxu0 0.0
    %2500 = vmatprep.subr.mxu0 0.0
    %2501 = vmatpush1.msra.mxu0 0.0
    %2502 = vmatprep.subr.mxu0 0.0
    %2503 = vmatpush1.msra.mxu0 0.0
    %2504 = vmatprep.subr.mxu0 0.0
    %2505 = vmatpush1.msra.mxu0 0.0
    %2506 = vmatprep.subr.mxu0 0.0
    %2507 = vmatpush1.msra.mxu0 1.0
    %2508 = vmatprep.subr.mxu0 0.0
    %2509 = vmatpush1.msra.mxu0 1.0
    %2510 = vmatprep.subr.mxu0 0.0
    %2511 = vmatpush2.msra.mxu0 0.0
    %2512 = vmatprep.subr.mxu0 0.0
    %2513 = vmatpush2.msra.mxu0 0.0
    %2514 = vmatprep.subr.mxu0 0.0
    %2515 = vmatpush2.msra.mxu0 0.0
    %2516 = vmatprep.subr.mxu0 0.0
    %2517 = vmatpush2.msra.mxu0 0.0
    %2518 = vmatprep.subr.mxu0 0.0
    %2519 = vmatpush2.msra.mxu0 0.0
    %2520 = vmatprep.subr.mxu0 0.0
    %2521 = vmatpush2.msra.mxu0 0.0
    %2522 = vmatprep.subr.mxu0 0.0
    %2523 = vmatpush2.msra.mxu0 0.0
    %2524 = vmatprep.subr.mxu0 0.0
    %2525 = vmatpush2.msra.mxu0 0.0
    %2526 = vmatprep.subr.mxu0 0.0
    %2527 = vmatpush2.msra.mxu0 0.0
    %2528 = vmatprep.subr.mxu0 0.0
    %2529 = vmatpush2.msra.mxu0 0.0
    %2530 = vmatprep.subr.mxu0 0.0
    %2531 = vmatpush2.msra.mxu0 0.0
    %2532 = vmatprep.subr.mxu0 0.0
    %2533 = vmatpush2.msra.mxu0 0.0
    %2534 = vmatprep.subr.mxu0 0.0
    %2535 = vmatpush2.msra.mxu0 0.0
    %2536 = vmatprep.subr.mxu0 0.0
    %2537 = vmatpush2.msra.mxu0 0.0
    %2538 = vmatprep.subr.mxu0 0.0
    %2539 = vmatpush2.msra.mxu0 0.0
    %2540 = vmatprep.subr.mxu0 0.0
    %2541 = vmatpush2.msra.mxu0 0.0
    %2542 = vmatprep.mubr.f32.mxu0 0.0
    %v2543 = vand.u32 %v1514, 4294901760
    %2544 = vmatmul.mubr.f32.gmra.mxu0 %v2543
    %v2545 = vpop.f32.mrf.mxu0
    %v2546 = vadd.f32 %v2385, %v2545
    %v2547 = vpop.f32.mrf.mxu0
    %2548 = vmatprep.mubr.f32.mxu0 0.0
    %v2549 = vand.u32 %v1517, 4294901760
    %2550 = vmatmul.mubr.f32.gmra.mxu0 %v2549
    %v2551 = vpop.f32.mrf.mxu0
    %v2552 = vadd.f32 %v2391, %v2551
    %v2553 = vpop.f32.mrf.mxu0
    %2554 = vmatprep.mubr.f32.mxu0 0.0
    %v2555 = vand.u32 %v1520, 4294901760
    %2556 = vmatmul.mubr.f32.gmra.mxu0 %v2555
    %v2557 = vpop.f32.mrf.mxu0
    %v2558 = vadd.f32 %v2397, %v2557
    %v2559 = vpop.f32.mrf.mxu0
    %2560 = vmatprep.mubr.f32.mxu0 0.0
    %v2561 = vand.u32 %v1523, 4294901760
    %2562 = vmatmul.mubr.f32.gmra.mxu0 %v2561
    %v2563 = vpop.f32.mrf.mxu0
    %v2564 = vadd.f32 %v2403, %v2563
    %v2565 = vpop.f32.mrf.mxu0
    %2566 = vmatprep.mubr.f32.mxu0 0.0
    %v2567 = vand.u32 %v1526, 4294901760
    %2568 = vmatmul.mubr.f32.gmra.mxu0 %v2567
    %v2569 = vpop.f32.mrf.mxu0
    %v2570 = vadd.f32 %v2409, %v2569
    %v2571 = vpop.f32.mrf.mxu0
    %2572 = vmatprep.mubr.f32.mxu0 0.0
    %v2573 = vand.u32 %v1529, 4294901760
    %2574 = vmatmul.mubr.f32.gmra.mxu0 %v2573
    %v2575 = vpop.f32.mrf.mxu0
    %v2576 = vadd.f32 %v2415, %v2575
    %v2577 = vpop.f32.mrf.mxu0
    %2578 = vmatprep.mubr.f32.mxu0 0.0
    %v2579 = vand.u32 %v1532, 4294901760
    %2580 = vmatmul.mubr.f32.gmra.mxu0 %v2579
    %v2581 = vpop.f32.mrf.mxu0
    %v2582 = vadd.f32 %v2421, %v2581
    %v2583 = vpop.f32.mrf.mxu0
    %2584 = vmatprep.mubr.f32.mxu0 0.0
    %v2585 = vand.u32 %v1535, 4294901760
    %2586 = vmatmul.mubr.f32.gmra.mxu0 %v2585
    %v2587 = vpop.f32.mrf.mxu0
    %v2588 = vadd.f32 %v2427, %v2587
    %v2589 = vpop.f32.mrf.mxu0
    %2590 = vmatprep.mubr.f32.mxu0 0.0
    %v2591 = vand.u32 %v1538, 4294901760
    %2592 = vmatmul.mubr.f32.gmra.mxu0 %v2591
    %v2593 = vpop.f32.mrf.mxu0
    %v2594 = vadd.f32 %v2433, %v2593
    %v2595 = vpop.f32.mrf.mxu0
    %2596 = vmatprep.mubr.f32.mxu0 0.0
    %v2597 = vand.u32 %v1541, 4294901760
    %2598 = vmatmul.mubr.f32.gmra.mxu0 %v2597
    %v2599 = vpop.f32.mrf.mxu0
    %v2600 = vadd.f32 %v2439, %v2599
    %v2601 = vpop.f32.mrf.mxu0
    %2602 = vmatprep.mubr.f32.mxu0 0.0
    %v2603 = vand.u32 %v1544, 4294901760
    %2604 = vmatmul.mubr.f32.gmra.mxu0 %v2603
    %v2605 = vpop.f32.mrf.mxu0
    %v2606 = vadd.f32 %v2445, %v2605
    %v2607 = vpop.f32.mrf.mxu0
    %2608 = vmatprep.mubr.f32.mxu0 0.0
    %v2609 = vand.u32 %v1547, 4294901760
    %2610 = vmatmul.mubr.f32.gmra.mxu0 %v2609
    %v2611 = vpop.f32.mrf.mxu0
    %v2612 = vadd.f32 %v2451, %v2611
    %v2613 = vpop.f32.mrf.mxu0
    %2614 = vmatprep.mubr.f32.mxu0 0.0
    %v2615 = vand.u32 %v1550, 4294901760
    %2616 = vmatmul.mubr.f32.gmra.mxu0 %v2615
    %v2617 = vpop.f32.mrf.mxu0
    %v2618 = vadd.f32 %v2457, %v2617
    %v2619 = vpop.f32.mrf.mxu0
    %2620 = vmatprep.mubr.f32.mxu0 0.0
    %v2621 = vand.u32 %v1553, 4294901760
    %2622 = vmatmul.mubr.f32.gmra.mxu0 %v2621
    %v2623 = vpop.f32.mrf.mxu0
    %v2624 = vadd.f32 %v2463, %v2623
    %v2625 = vpop.f32.mrf.mxu0
    %2626 = vmatprep.mubr.f32.mxu0 0.0
    %v2627 = vand.u32 %v1556, 4294901760
    %2628 = vmatmul.mubr.f32.gmra.mxu0 %v2627
    %v2629 = vpop.f32.mrf.mxu0
    %v2630 = vadd.f32 %v2469, %v2629
    %v2631 = vpop.f32.mrf.mxu0
    %2632 = vmatprep.mubr.f32.mxu0 0.0
    %v2633 = vand.u32 %v1559, 4294901760
    %2634 = vmatmul.mubr.f32.gmra.mxu0 %v2633
    %v2635 = vpop.f32.mrf.mxu0
    %v2636 = vadd.f32 %v2475, %v2635
    %v2637 = vpop.f32.mrf.mxu0
    %2638 = vdwg.mxu0
    %v2639 = vsel %vm258, 0.0, %v340
    %v2640 = vsel %vm259, 0.0, %v342
    %v2641 = vsel %vm260, 0.0, %v344
    %v2642 = vsel %vm261, 0.0, %v346
    %v2643 = vsel %vm262, 0.0, %v348
    %v2644 = vsel %vm263, 0.0, %v350
    %v2645 = vsel %vm264, 0.0, %v352
    %v2646 = vsel %vm265, 0.0, %v354
    %v2647 = vsel %vm266, 0.0, %v356
    %v2648 = vsel %vm267, 0.0, %v358
    %v2649 = vsel %vm268, 0.0, %v360
    %v2650 = vsel %vm269, 0.0, %v362
    %v2651 = vsel %vm270, 0.0, %v364
    %v2652 = vsel %vm271, 0.0, %v366
    %v2653 = vsel %vm272, 0.0, %v368
    %v2654 = vsel %vm273, 0.0, %v370
    %v2655 = vmul.f32 %v2639, %v2639
    %v2656 = vmul.f32 %v2640, %v2640
    %v2657 = vmul.f32 %v2641, %v2641
    %v2658 = vmul.f32 %v2642, %v2642
    %v2659 = vmul.f32 %v2643, %v2643
    %v2660 = vmul.f32 %v2644, %v2644
    %v2661 = vmul.f32 %v2645, %v2645
    %v2662 = vmul.f32 %v2646, %v2646
    %v2663 = vmul.f32 %v2647, %v2647
    %v2664 = vmul.f32 %v2648, %v2648
    %v2665 = vmul.f32 %v2649, %v2649
    %v2666 = vmul.f32 %v2650, %v2650
    %v2667 = vmul.f32 %v2651, %v2651
    %v2668 = vmul.f32 %v2652, %v2652
    %v2669 = vmul.f32 %v2653, %v2653
    %v2670 = vmul.f32 %v2654, %v2654
    %v2672 = vsel %vm274, %v2655, 0
    %v2675 = vsel %vm274, %v2656, 0
    %v2678 = vsel %vm274, %v2657, 0
    %v2681 = vsel %vm274, %v2658, 0
    %v2684 = vsel %vm274, %v2659, 0
    %v2687 = vsel %vm274, %v2660, 0
    %v2690 = vsel %vm274, %v2661, 0
    %v2693 = vsel %vm274, %v2662, 0
    %v2696 = vsel %vm274, %v2663, 0
    %v2699 = vsel %vm274, %v2664, 0
    %v2702 = vsel %vm274, %v2665, 0
    %v2705 = vsel %vm274, %v2666, 0
    %v2708 = vsel %vm274, %v2667, 0
    %v2711 = vsel %vm274, %v2668, 0
    %v2714 = vsel %vm274, %v2669, 0
    %v2717 = vsel %vm274, %v2670, 0
    %2719 = vmatprep.subr.mxu0 0.0
    %2720 = vmatpush1.msra.mxu0 0.0
    %2721 = vmatprep.subr.mxu0 0.0
    %2722 = vmatpush1.msra.mxu0 0.0
    %2723 = vmatprep.subr.mxu0 0.0
    %2724 = vmatpush1.msra.mxu0 0.0
    %2725 = vmatprep.subr.mxu0 0.0
    %2726 = vmatpush1.msra.mxu0 0.0
    %2727 = vmatprep.subr.mxu0 0.0
    %2728 = vmatpush1.msra.mxu0 0.0
    %2729 = vmatprep.subr.mxu0 0.0
    %2730 = vmatpush1.msra.mxu0 0.0
    %2731 = vmatprep.subr.mxu0 0.0
    %2732 = vmatpush1.msra.mxu0 0.0
    %2733 = vmatprep.subr.mxu0 0.0
    %2734 = vmatpush1.msra.mxu0 0.0
    %2735 = vmatprep.subr.mxu0 0.0
    %2736 = vmatpush1.msra.mxu0 0.0
    %2737 = vmatprep.subr.mxu0 0.0
    %2738 = vmatpush1.msra.mxu0 0.0
    %2739 = vmatprep.subr.mxu0 0.0
    %2740 = vmatpush1.msra.mxu0 0.0
    %2741 = vmatprep.subr.mxu0 0.0
    %2742 = vmatpush1.msra.mxu0 0.0
    %2743 = vmatprep.subr.mxu0 0.0
    %2744 = vmatpush1.msra.mxu0 0.0
    %2745 = vmatprep.subr.mxu0 0.0
    %2746 = vmatpush1.msra.mxu0 0.0
    %2747 = vmatprep.subr.mxu0 0.0
    %2748 = vmatpush1.msra.mxu0 1.0
    %2749 = vmatprep.subr.mxu0 0.0
    %2750 = vmatpush1.msra.mxu0 1.0
    %2751 = vmatprep.subr.mxu0 0.0
    %2752 = vmatpush2.msra.mxu0 0.0
    %2753 = vmatprep.subr.mxu0 0.0
    %2754 = vmatpush2.msra.mxu0 0.0
    %2755 = vmatprep.subr.mxu0 0.0
    %2756 = vmatpush2.msra.mxu0 0.0
    %2757 = vmatprep.subr.mxu0 0.0
    %2758 = vmatpush2.msra.mxu0 0.0
    %2759 = vmatprep.subr.mxu0 0.0
    %2760 = vmatpush2.msra.mxu0 0.0
    %2761 = vmatprep.subr.mxu0 0.0
    %2762 = vmatpush2.msra.mxu0 0.0
    %2763 = vmatprep.subr.mxu0 0.0
    %2764 = vmatpush2.msra.mxu0 0.0
    %2765 = vmatprep.subr.mxu0 0.0
    %2766 = vmatpush2.msra.mxu0 0.0
    %2767 = vmatprep.subr.mxu0 0.0
    %2768 = vmatpush2.msra.mxu0 0.0
    %2769 = vmatprep.subr.mxu0 0.0
    %2770 = vmatpush2.msra.mxu0 0.0
    %2771 = vmatprep.subr.mxu0 0.0
    %2772 = vmatpush2.msra.mxu0 0.0
    %2773 = vmatprep.subr.mxu0 0.0
    %2774 = vmatpush2.msra.mxu0 0.0
    %2775 = vmatprep.subr.mxu0 0.0
    %2776 = vmatpush2.msra.mxu0 0.0
    %2777 = vmatprep.subr.mxu0 0.0
    %2778 = vmatpush2.msra.mxu0 0.0
    %2779 = vmatprep.subr.mxu0 0.0
    %2780 = vmatpush2.msra.mxu0 0.0
    %2781 = vmatprep.subr.mxu0 0.0
    %2782 = vmatpush2.msra.mxu0 0.0
    %2783 = vmatprep.mubr.f32.mxu0 0.0
    %v2784 = vand.u32 %v2672, 4294901760
    %v2785 = vsub.f32 %v2672, %v2784
    %v2786 = vand.u32 %v2785, 4294901760
    %v2787 = vsub.f32 %v2785, %v2786
    %v2788 = vand.u32 %v2787, 4294901760
    %2789 = vmatmul.mubr.f32.gmra.mxu0 %v2788
    %v2790 = vpop.f32.mrf.mxu0
    %v2791 = vadd.f32 0.0, %v2790
    %v2792 = vpop.f32.mrf.mxu0
    %2793 = vmatprep.mubr.f32.mxu0 0.0
    %v2794 = vand.u32 %v2675, 4294901760
    %v2795 = vsub.f32 %v2675, %v2794
    %v2796 = vand.u32 %v2795, 4294901760
    %v2797 = vsub.f32 %v2795, %v2796
    %v2798 = vand.u32 %v2797, 4294901760
    %2799 = vmatmul.mubr.f32.gmra.mxu0 %v2798
    %v2800 = vpop.f32.mrf.mxu0
    %v2801 = vadd.f32 0.0, %v2800
    %v2802 = vpop.f32.mrf.mxu0
    %2803 = vmatprep.mubr.f32.mxu0 0.0
    %v2804 = vand.u32 %v2678, 4294901760
    %v2805 = vsub.f32 %v2678, %v2804
    %v2806 = vand.u32 %v2805, 4294901760
    %v2807 = vsub.f32 %v2805, %v2806
    %v2808 = vand.u32 %v2807, 4294901760
    %2809 = vmatmul.mubr.f32.gmra.mxu0 %v2808
    %v2810 = vpop.f32.mrf.mxu0
    %v2811 = vadd.f32 0.0, %v2810
    %v2812 = vpop.f32.mrf.mxu0
    %2813 = vmatprep.mubr.f32.mxu0 0.0
    %v2814 = vand.u32 %v2681, 4294901760
    %v2815 = vsub.f32 %v2681, %v2814
    %v2816 = vand.u32 %v2815, 4294901760
    %v2817 = vsub.f32 %v2815, %v2816
    %v2818 = vand.u32 %v2817, 4294901760
    %2819 = vmatmul.mubr.f32.gmra.mxu0 %v2818
    %v2820 = vpop.f32.mrf.mxu0
    %v2821 = vadd.f32 0.0, %v2820
    %v2822 = vpop.f32.mrf.mxu0
    %2823 = vmatprep.mubr.f32.mxu0 0.0
    %v2824 = vand.u32 %v2684, 4294901760
    %v2825 = vsub.f32 %v2684, %v2824
    %v2826 = vand.u32 %v2825, 4294901760
    %v2827 = vsub.f32 %v2825, %v2826
    %v2828 = vand.u32 %v2827, 4294901760
    %2829 = vmatmul.mubr.f32.gmra.mxu0 %v2828
    %v2830 = vpop.f32.mrf.mxu0
    %v2831 = vadd.f32 0.0, %v2830
    %v2832 = vpop.f32.mrf.mxu0
    %2833 = vmatprep.mubr.f32.mxu0 0.0
    %v2834 = vand.u32 %v2687, 4294901760
    %v2835 = vsub.f32 %v2687, %v2834
    %v2836 = vand.u32 %v2835, 4294901760
    %v2837 = vsub.f32 %v2835, %v2836
    %v2838 = vand.u32 %v2837, 4294901760
    %2839 = vmatmul.mubr.f32.gmra.mxu0 %v2838
    %v2840 = vpop.f32.mrf.mxu0
    %v2841 = vadd.f32 0.0, %v2840
    %v2842 = vpop.f32.mrf.mxu0
    %2843 = vmatprep.mubr.f32.mxu0 0.0
    %v2844 = vand.u32 %v2690, 4294901760
    %v2845 = vsub.f32 %v2690, %v2844
    %v2846 = vand.u32 %v2845, 4294901760
    %v2847 = vsub.f32 %v2845, %v2846
    %v2848 = vand.u32 %v2847, 4294901760
    %2849 = vmatmul.mubr.f32.gmra.mxu0 %v2848
    %v2850 = vpop.f32.mrf.mxu0
    %v2851 = vadd.f32 0.0, %v2850
    %v2852 = vpop.f32.mrf.mxu0
    %2853 = vmatprep.mubr.f32.mxu0 0.0
    %v2854 = vand.u32 %v2693, 4294901760
    %v2855 = vsub.f32 %v2693, %v2854
    %v2856 = vand.u32 %v2855, 4294901760
    %v2857 = vsub.f32 %v2855, %v2856
    %v2858 = vand.u32 %v2857, 4294901760
    %2859 = vmatmul.mubr.f32.gmra.mxu0 %v2858
    %v2860 = vpop.f32.mrf.mxu0
    %v2861 = vadd.f32 0.0, %v2860
    %v2862 = vpop.f32.mrf.mxu0
    %2863 = vmatprep.mubr.f32.mxu0 0.0
    %v2864 = vand.u32 %v2696, 4294901760
    %v2865 = vsub.f32 %v2696, %v2864
    %v2866 = vand.u32 %v2865, 4294901760
    %v2867 = vsub.f32 %v2865, %v2866
    %v2868 = vand.u32 %v2867, 4294901760
    %2869 = vmatmul.mubr.f32.gmra.mxu0 %v2868
    %v2870 = vpop.f32.mrf.mxu0
    %v2871 = vadd.f32 0.0, %v2870
    %v2872 = vpop.f32.mrf.mxu0
    %2873 = vmatprep.mubr.f32.mxu0 0.0
    %v2874 = vand.u32 %v2699, 4294901760
    %v2875 = vsub.f32 %v2699, %v2874
    %v2876 = vand.u32 %v2875, 4294901760
    %v2877 = vsub.f32 %v2875, %v2876
    %v2878 = vand.u32 %v2877, 4294901760
    %2879 = vmatmul.mubr.f32.gmra.mxu0 %v2878
    %v2880 = vpop.f32.mrf.mxu0
    %v2881 = vadd.f32 0.0, %v2880
    %v2882 = vpop.f32.mrf.mxu0
    %2883 = vmatprep.mubr.f32.mxu0 0.0
    %v2884 = vand.u32 %v2702, 4294901760
    %v2885 = vsub.f32 %v2702, %v2884
    %v2886 = vand.u32 %v2885, 4294901760
    %v2887 = vsub.f32 %v2885, %v2886
    %v2888 = vand.u32 %v2887, 4294901760
    %2889 = vmatmul.mubr.f32.gmra.mxu0 %v2888
    %v2890 = vpop.f32.mrf.mxu0
    %v2891 = vadd.f32 0.0, %v2890
    %v2892 = vpop.f32.mrf.mxu0
    %2893 = vmatprep.mubr.f32.mxu0 0.0
    %v2894 = vand.u32 %v2705, 4294901760
    %v2895 = vsub.f32 %v2705, %v2894
    %v2896 = vand.u32 %v2895, 4294901760
    %v2897 = vsub.f32 %v2895, %v2896
    %v2898 = vand.u32 %v2897, 4294901760
    %2899 = vmatmul.mubr.f32.gmra.mxu0 %v2898
    %v2900 = vpop.f32.mrf.mxu0
    %v2901 = vadd.f32 0.0, %v2900
    %v2902 = vpop.f32.mrf.mxu0
    %2903 = vmatprep.mubr.f32.mxu0 0.0
    %v2904 = vand.u32 %v2708, 4294901760
    %v2905 = vsub.f32 %v2708, %v2904
    %v2906 = vand.u32 %v2905, 4294901760
    %v2907 = vsub.f32 %v2905, %v2906
    %v2908 = vand.u32 %v2907, 4294901760
    %2909 = vmatmul.mubr.f32.gmra.mxu0 %v2908
    %v2910 = vpop.f32.mrf.mxu0
    %v2911 = vadd.f32 0.0, %v2910
    %v2912 = vpop.f32.mrf.mxu0
    %2913 = vmatprep.mubr.f32.mxu0 0.0
    %v2914 = vand.u32 %v2711, 4294901760
    %v2915 = vsub.f32 %v2711, %v2914
    %v2916 = vand.u32 %v2915, 4294901760
    %v2917 = vsub.f32 %v2915, %v2916
    %v2918 = vand.u32 %v2917, 4294901760
    %2919 = vmatmul.mubr.f32.gmra.mxu0 %v2918
    %v2920 = vpop.f32.mrf.mxu0
    %v2921 = vadd.f32 0.0, %v2920
    %v2922 = vpop.f32.mrf.mxu0
    %2923 = vmatprep.mubr.f32.mxu0 0.0
    %v2924 = vand.u32 %v2714, 4294901760
    %v2925 = vsub.f32 %v2714, %v2924
    %v2926 = vand.u32 %v2925, 4294901760
    %v2927 = vsub.f32 %v2925, %v2926
    %v2928 = vand.u32 %v2927, 4294901760
    %2929 = vmatmul.mubr.f32.gmra.mxu0 %v2928
    %v2930 = vpop.f32.mrf.mxu0
    %v2931 = vadd.f32 0.0, %v2930
    %v2932 = vpop.f32.mrf.mxu0
    %2933 = vmatprep.mubr.f32.mxu0 0.0
    %v2934 = vand.u32 %v2717, 4294901760
    %v2935 = vsub.f32 %v2717, %v2934
    %v2936 = vand.u32 %v2935, 4294901760
    %v2937 = vsub.f32 %v2935, %v2936
    %v2938 = vand.u32 %v2937, 4294901760
    %2939 = vmatmul.mubr.f32.gmra.mxu0 %v2938
    %v2940 = vpop.f32.mrf.mxu0
    %v2941 = vadd.f32 0.0, %v2940
    %v2942 = vpop.f32.mrf.mxu0
    %2943 = vdwg.mxu0
    %2944 = vmatprep.subr.mxu0 0.0
    %2945 = vmatpush1.msra.mxu0 0.0
    %2946 = vmatprep.subr.mxu0 0.0
    %2947 = vmatpush1.msra.mxu0 0.0
    %2948 = vmatprep.subr.mxu0 0.0
    %2949 = vmatpush1.msra.mxu0 0.0
    %2950 = vmatprep.subr.mxu0 0.0
    %2951 = vmatpush1.msra.mxu0 0.0
    %2952 = vmatprep.subr.mxu0 0.0
    %2953 = vmatpush1.msra.mxu0 0.0
    %2954 = vmatprep.subr.mxu0 0.0
    %2955 = vmatpush1.msra.mxu0 0.0
    %2956 = vmatprep.subr.mxu0 0.0
    %2957 = vmatpush1.msra.mxu0 0.0
    %2958 = vmatprep.subr.mxu0 0.0
    %2959 = vmatpush1.msra.mxu0 0.0
    %2960 = vmatprep.subr.mxu0 0.0
    %2961 = vmatpush1.msra.mxu0 0.0
    %2962 = vmatprep.subr.mxu0 0.0
    %2963 = vmatpush1.msra.mxu0 0.0
    %2964 = vmatprep.subr.mxu0 0.0
    %2965 = vmatpush1.msra.mxu0 0.0
    %2966 = vmatprep.subr.mxu0 0.0
    %2967 = vmatpush1.msra.mxu0 0.0
    %2968 = vmatprep.subr.mxu0 0.0
    %2969 = vmatpush1.msra.mxu0 0.0
    %2970 = vmatprep.subr.mxu0 0.0
    %2971 = vmatpush1.msra.mxu0 0.0
    %2972 = vmatprep.subr.mxu0 0.0
    %2973 = vmatpush1.msra.mxu0 0.0
    %2974 = vmatprep.subr.mxu0 0.0
    %2975 = vmatpush1.msra.mxu0 0.0
    %2976 = vmatprep.subr.mxu0 0.0
    %2977 = vmatpush2.msra.mxu0 0.0
    %2978 = vmatprep.subr.mxu0 0.0
    %2979 = vmatpush2.msra.mxu0 0.0
    %2980 = vmatprep.subr.mxu0 0.0
    %2981 = vmatpush2.msra.mxu0 0.0
    %2982 = vmatprep.subr.mxu0 0.0
    %2983 = vmatpush2.msra.mxu0 0.0
    %2984 = vmatprep.subr.mxu0 0.0
    %2985 = vmatpush2.msra.mxu0 0.0
    %2986 = vmatprep.subr.mxu0 0.0
    %2987 = vmatpush2.msra.mxu0 0.0
    %2988 = vmatprep.subr.mxu0 0.0
    %2989 = vmatpush2.msra.mxu0 0.0
    %2990 = vmatprep.subr.mxu0 0.0
    %2991 = vmatpush2.msra.mxu0 0.0
    %2992 = vmatprep.subr.mxu0 0.0
    %2993 = vmatpush2.msra.mxu0 0.0
    %2994 = vmatprep.subr.mxu0 0.0
    %2995 = vmatpush2.msra.mxu0 0.0
    %2996 = vmatprep.subr.mxu0 0.0
    %2997 = vmatpush2.msra.mxu0 0.0
    %2998 = vmatprep.subr.mxu0 0.0
    %2999 = vmatpush2.msra.mxu0 0.0
    %3000 = vmatprep.subr.mxu0 0.0
    %3001 = vmatpush2.msra.mxu0 0.0
    %3002 = vmatprep.subr.mxu0 0.0
    %3003 = vmatpush2.msra.mxu0 0.0
    %3004 = vmatprep.subr.mxu0 0.0
    %3005 = vmatpush2.msra.mxu0 0.0
    %3006 = vmatprep.subr.mxu0 0.0
    %3007 = vmatpush2.msra.mxu0 0.0
    %3008 = vmatprep.mubr.f32.mxu0 0.0
    %v3009 = vand.u32 %v2672, 4294901760
    %3010 = vmatmul.mubr.f32.gmra.mxu0 %v3009
    %v3011 = vpop.f32.mrf.mxu0
    %v3012 = vadd.f32 %v2791, %v3011
    %v3013 = vpop.f32.mrf.mxu0
    %3014 = vmatprep.mubr.f32.mxu0 0.0
    %v3015 = vand.u32 %v2675, 4294901760
    %3016 = vmatmul.mubr.f32.gmra.mxu0 %v3015
    %v3017 = vpop.f32.mrf.mxu0
    %v3018 = vadd.f32 %v2801, %v3017
    %v3019 = vpop.f32.mrf.mxu0
    %3020 = vmatprep.mubr.f32.mxu0 0.0
    %v3021 = vand.u32 %v2678, 4294901760
    %3022 = vmatmul.mubr.f32.gmra.mxu0 %v3021
    %v3023 = vpop.f32.mrf.mxu0
    %v3024 = vadd.f32 %v2811, %v3023
    %v3025 = vpop.f32.mrf.mxu0
    %3026 = vmatprep.mubr.f32.mxu0 0.0
    %v3027 = vand.u32 %v2681, 4294901760
    %3028 = vmatmul.mubr.f32.gmra.mxu0 %v3027
    %v3029 = vpop.f32.mrf.mxu0
    %v3030 = vadd.f32 %v2821, %v3029
    %v3031 = vpop.f32.mrf.mxu0
    %3032 = vmatprep.mubr.f32.mxu0 0.0
    %v3033 = vand.u32 %v2684, 4294901760
    %3034 = vmatmul.mubr.f32.gmra.mxu0 %v3033
    %v3035 = vpop.f32.mrf.mxu0
    %v3036 = vadd.f32 %v2831, %v3035
    %v3037 = vpop.f32.mrf.mxu0
    %3038 = vmatprep.mubr.f32.mxu0 0.0
    %v3039 = vand.u32 %v2687, 4294901760
    %3040 = vmatmul.mubr.f32.gmra.mxu0 %v3039
    %v3041 = vpop.f32.mrf.mxu0
    %v3042 = vadd.f32 %v2841, %v3041
    %v3043 = vpop.f32.mrf.mxu0
    %3044 = vmatprep.mubr.f32.mxu0 0.0
    %v3045 = vand.u32 %v2690, 4294901760
    %3046 = vmatmul.mubr.f32.gmra.mxu0 %v3045
    %v3047 = vpop.f32.mrf.mxu0
    %v3048 = vadd.f32 %v2851, %v3047
    %v3049 = vpop.f32.mrf.mxu0
    %3050 = vmatprep.mubr.f32.mxu0 0.0
    %v3051 = vand.u32 %v2693, 4294901760
    %3052 = vmatmul.mubr.f32.gmra.mxu0 %v3051
    %v3053 = vpop.f32.mrf.mxu0
    %v3054 = vadd.f32 %v2861, %v3053
    %v3055 = vpop.f32.mrf.mxu0
    %3056 = vmatprep.mubr.f32.mxu0 0.0
    %v3057 = vand.u32 %v2696, 4294901760
    %3058 = vmatmul.mubr.f32.gmra.mxu0 %v3057
    %v3059 = vpop.f32.mrf.mxu0
    %v3060 = vadd.f32 %v2871, %v3059
    %v3061 = vpop.f32.mrf.mxu0
    %3062 = vmatprep.mubr.f32.mxu0 0.0
    %v3063 = vand.u32 %v2699, 4294901760
    %3064 = vmatmul.mubr.f32.gmra.mxu0 %v3063
    %v3065 = vpop.f32.mrf.mxu0
    %v3066 = vadd.f32 %v2881, %v3065
    %v3067 = vpop.f32.mrf.mxu0
    %3068 = vmatprep.mubr.f32.mxu0 0.0
    %v3069 = vand.u32 %v2702, 4294901760
    %3070 = vmatmul.mubr.f32.gmra.mxu0 %v3069
    %v3071 = vpop.f32.mrf.mxu0
    %v3072 = vadd.f32 %v2891, %v3071
    %v3073 = vpop.f32.mrf.mxu0
    %3074 = vmatprep.mubr.f32.mxu0 0.0
    %v3075 = vand.u32 %v2705, 4294901760
    %3076 = vmatmul.mubr.f32.gmra.mxu0 %v3075
    %v3077 = vpop.f32.mrf.mxu0
    %v3078 = vadd.f32 %v2901, %v3077
    %v3079 = vpop.f32.mrf.mxu0
    %3080 = vmatprep.mubr.f32.mxu0 0.0
    %v3081 = vand.u32 %v2708, 4294901760
    %3082 = vmatmul.mubr.f32.gmra.mxu0 %v3081
    %v3083 = vpop.f32.mrf.mxu0
    %v3084 = vadd.f32 %v2911, %v3083
    %v3085 = vpop.f32.mrf.mxu0
    %3086 = vmatprep.mubr.f32.mxu0 0.0
    %v3087 = vand.u32 %v2711, 4294901760
    %3088 = vmatmul.mubr.f32.gmra.mxu0 %v3087
    %v3089 = vpop.f32.mrf.mxu0
    %v3090 = vadd.f32 %v2921, %v3089
    %v3091 = vpop.f32.mrf.mxu0
    %3092 = vmatprep.mubr.f32.mxu0 0.0
    %v3093 = vand.u32 %v2714, 4294901760
    %3094 = vmatmul.mubr.f32.gmra.mxu0 %v3093
    %v3095 = vpop.f32.mrf.mxu0
    %v3096 = vadd.f32 %v2931, %v3095
    %v3097 = vpop.f32.mrf.mxu0
    %3098 = vmatprep.mubr.f32.mxu0 0.0
    %v3099 = vand.u32 %v2717, 4294901760
    %3100 = vmatmul.mubr.f32.gmra.mxu0 %v3099
    %v3101 = vpop.f32.mrf.mxu0
    %v3102 = vadd.f32 %v2941, %v3101
    %v3103 = vpop.f32.mrf.mxu0
    %3104 = vdwg.mxu0
    %3105 = vmatprep.subr.mxu0 0.0
    %3106 = vmatpush1.msra.mxu0 0.0
    %3107 = vmatprep.subr.mxu0 0.0
    %3108 = vmatpush1.msra.mxu0 0.0
    %3109 = vmatprep.subr.mxu0 0.0
    %3110 = vmatpush1.msra.mxu0 0.0
    %3111 = vmatprep.subr.mxu0 0.0
    %3112 = vmatpush1.msra.mxu0 0.0
    %3113 = vmatprep.subr.mxu0 0.0
    %3114 = vmatpush1.msra.mxu0 0.0
    %3115 = vmatprep.subr.mxu0 0.0
    %3116 = vmatpush1.msra.mxu0 0.0
    %3117 = vmatprep.subr.mxu0 0.0
    %3118 = vmatpush1.msra.mxu0 0.0
    %3119 = vmatprep.subr.mxu0 0.0
    %3120 = vmatpush1.msra.mxu0 0.0
    %3121 = vmatprep.subr.mxu0 0.0
    %3122 = vmatpush1.msra.mxu0 0.0
    %3123 = vmatprep.subr.mxu0 0.0
    %3124 = vmatpush1.msra.mxu0 0.0
    %3125 = vmatprep.subr.mxu0 0.0
    %3126 = vmatpush1.msra.mxu0 0.0
    %3127 = vmatprep.subr.mxu0 0.0
    %3128 = vmatpush1.msra.mxu0 0.0
    %3129 = vmatprep.subr.mxu0 0.0
    %3130 = vmatpush1.msra.mxu0 0.0
    %3131 = vmatprep.subr.mxu0 0.0
    %3132 = vmatpush1.msra.mxu0 0.0
    %3133 = vmatprep.subr.mxu0 0.0
    %3134 = vmatpush1.msra.mxu0 0.0
    %3135 = vmatprep.subr.mxu0 0.0
    %3136 = vmatpush1.msra.mxu0 0.0
    %3137 = vmatprep.subr.mxu0 0.0
    %3138 = vmatpush2.msra.mxu0 0.0
    %3139 = vmatprep.subr.mxu0 0.0
    %3140 = vmatpush2.msra.mxu0 0.0
    %3141 = vmatprep.subr.mxu0 0.0
    %3142 = vmatpush2.msra.mxu0 0.0
    %3143 = vmatprep.subr.mxu0 0.0
    %3144 = vmatpush2.msra.mxu0 0.0
    %3145 = vmatprep.subr.mxu0 0.0
    %3146 = vmatpush2.msra.mxu0 0.0
    %3147 = vmatprep.subr.mxu0 0.0
    %3148 = vmatpush2.msra.mxu0 0.0
    %3149 = vmatprep.subr.mxu0 0.0
    %3150 = vmatpush2.msra.mxu0 0.0
    %3151 = vmatprep.subr.mxu0 0.0
    %3152 = vmatpush2.msra.mxu0 0.0
    %3153 = vmatprep.subr.mxu0 0.0
    %3154 = vmatpush2.msra.mxu0 0.0
    %3155 = vmatprep.subr.mxu0 0.0
    %3156 = vmatpush2.msra.mxu0 0.0
    %3157 = vmatprep.subr.mxu0 0.0
    %3158 = vmatpush2.msra.mxu0 0.0
    %3159 = vmatprep.subr.mxu0 0.0
    %3160 = vmatpush2.msra.mxu0 0.0
    %3161 = vmatprep.subr.mxu0 0.0
    %3162 = vmatpush2.msra.mxu0 0.0
    %3163 = vmatprep.subr.mxu0 0.0
    %3164 = vmatpush2.msra.mxu0 0.0
    %3165 = vmatprep.subr.mxu0 0.0
    %3166 = vmatpush2.msra.mxu0 0.0
    %3167 = vmatprep.subr.mxu0 0.0
    %3168 = vmatpush2.msra.mxu0 0.0
    %3169 = vmatprep.mubr.f32.mxu0 0.0
    %v3170 = vand.u32 %v2672, 4294901760
    %v3171 = vsub.f32 %v2672, %v3170
    %3172 = vmatmul.mubr.f32.gmra.mxu0 %v3171
    %v3173 = vpop.f32.mrf.mxu0
    %v3174 = vadd.f32 %v3012, %v3173
    %v3175 = vpop.f32.mrf.mxu0
    %3176 = vmatprep.mubr.f32.mxu0 0.0
    %v3177 = vand.u32 %v2675, 4294901760
    %v3178 = vsub.f32 %v2675, %v3177
    %3179 = vmatmul.mubr.f32.gmra.mxu0 %v3178
    %v3180 = vpop.f32.mrf.mxu0
    %v3181 = vadd.f32 %v3018, %v3180
    %v3182 = vpop.f32.mrf.mxu0
    %3183 = vmatprep.mubr.f32.mxu0 0.0
    %v3184 = vand.u32 %v2678, 4294901760
    %v3185 = vsub.f32 %v2678, %v3184
    %3186 = vmatmul.mubr.f32.gmra.mxu0 %v3185
    %v3187 = vpop.f32.mrf.mxu0
    %v3188 = vadd.f32 %v3024, %v3187
    %v3189 = vpop.f32.mrf.mxu0
    %3190 = vmatprep.mubr.f32.mxu0 0.0
    %v3191 = vand.u32 %v2681, 4294901760
    %v3192 = vsub.f32 %v2681, %v3191
    %3193 = vmatmul.mubr.f32.gmra.mxu0 %v3192
    %v3194 = vpop.f32.mrf.mxu0
    %v3195 = vadd.f32 %v3030, %v3194
    %v3196 = vpop.f32.mrf.mxu0
    %3197 = vmatprep.mubr.f32.mxu0 0.0
    %v3198 = vand.u32 %v2684, 4294901760
    %v3199 = vsub.f32 %v2684, %v3198
    %3200 = vmatmul.mubr.f32.gmra.mxu0 %v3199
    %v3201 = vpop.f32.mrf.mxu0
    %v3202 = vadd.f32 %v3036, %v3201
    %v3203 = vpop.f32.mrf.mxu0
    %3204 = vmatprep.mubr.f32.mxu0 0.0
    %v3205 = vand.u32 %v2687, 4294901760
    %v3206 = vsub.f32 %v2687, %v3205
    %3207 = vmatmul.mubr.f32.gmra.mxu0 %v3206
    %v3208 = vpop.f32.mrf.mxu0
    %v3209 = vadd.f32 %v3042, %v3208
    %v3210 = vpop.f32.mrf.mxu0
    %3211 = vmatprep.mubr.f32.mxu0 0.0
    %v3212 = vand.u32 %v2690, 4294901760
    %v3213 = vsub.f32 %v2690, %v3212
    %3214 = vmatmul.mubr.f32.gmra.mxu0 %v3213
    %v3215 = vpop.f32.mrf.mxu0
    %v3216 = vadd.f32 %v3048, %v3215
    %v3217 = vpop.f32.mrf.mxu0
    %3218 = vmatprep.mubr.f32.mxu0 0.0
    %v3219 = vand.u32 %v2693, 4294901760
    %v3220 = vsub.f32 %v2693, %v3219
    %3221 = vmatmul.mubr.f32.gmra.mxu0 %v3220
    %v3222 = vpop.f32.mrf.mxu0
    %v3223 = vadd.f32 %v3054, %v3222
    %v3224 = vpop.f32.mrf.mxu0
    %3225 = vmatprep.mubr.f32.mxu0 0.0
    %v3226 = vand.u32 %v2696, 4294901760
    %v3227 = vsub.f32 %v2696, %v3226
    %3228 = vmatmul.mubr.f32.gmra.mxu0 %v3227
    %v3229 = vpop.f32.mrf.mxu0
    %v3230 = vadd.f32 %v3060, %v3229
    %v3231 = vpop.f32.mrf.mxu0
    %3232 = vmatprep.mubr.f32.mxu0 0.0
    %v3233 = vand.u32 %v2699, 4294901760
    %v3234 = vsub.f32 %v2699, %v3233
    %3235 = vmatmul.mubr.f32.gmra.mxu0 %v3234
    %v3236 = vpop.f32.mrf.mxu0
    %v3237 = vadd.f32 %v3066, %v3236
    %v3238 = vpop.f32.mrf.mxu0
    %3239 = vmatprep.mubr.f32.mxu0 0.0
    %v3240 = vand.u32 %v2702, 4294901760
    %v3241 = vsub.f32 %v2702, %v3240
    %3242 = vmatmul.mubr.f32.gmra.mxu0 %v3241
    %v3243 = vpop.f32.mrf.mxu0
    %v3244 = vadd.f32 %v3072, %v3243
    %v3245 = vpop.f32.mrf.mxu0
    %3246 = vmatprep.mubr.f32.mxu0 0.0
    %v3247 = vand.u32 %v2705, 4294901760
    %v3248 = vsub.f32 %v2705, %v3247
    %3249 = vmatmul.mubr.f32.gmra.mxu0 %v3248
    %v3250 = vpop.f32.mrf.mxu0
    %v3251 = vadd.f32 %v3078, %v3250
    %v3252 = vpop.f32.mrf.mxu0
    %3253 = vmatprep.mubr.f32.mxu0 0.0
    %v3254 = vand.u32 %v2708, 4294901760
    %v3255 = vsub.f32 %v2708, %v3254
    %3256 = vmatmul.mubr.f32.gmra.mxu0 %v3255
    %v3257 = vpop.f32.mrf.mxu0
    %v3258 = vadd.f32 %v3084, %v3257
    %v3259 = vpop.f32.mrf.mxu0
    %3260 = vmatprep.mubr.f32.mxu0 0.0
    %v3261 = vand.u32 %v2711, 4294901760
    %v3262 = vsub.f32 %v2711, %v3261
    %3263 = vmatmul.mubr.f32.gmra.mxu0 %v3262
    %v3264 = vpop.f32.mrf.mxu0
    %v3265 = vadd.f32 %v3090, %v3264
    %v3266 = vpop.f32.mrf.mxu0
    %3267 = vmatprep.mubr.f32.mxu0 0.0
    %v3268 = vand.u32 %v2714, 4294901760
    %v3269 = vsub.f32 %v2714, %v3268
    %3270 = vmatmul.mubr.f32.gmra.mxu0 %v3269
    %v3271 = vpop.f32.mrf.mxu0
    %v3272 = vadd.f32 %v3096, %v3271
    %v3273 = vpop.f32.mrf.mxu0
    %3274 = vmatprep.mubr.f32.mxu0 0.0
    %v3275 = vand.u32 %v2717, 4294901760
    %v3276 = vsub.f32 %v2717, %v3275
    %3277 = vmatmul.mubr.f32.gmra.mxu0 %v3276
    %v3278 = vpop.f32.mrf.mxu0
    %v3279 = vadd.f32 %v3102, %v3278
    %v3280 = vpop.f32.mrf.mxu0
    %3281 = vdwg.mxu0
    %3282 = vmatprep.subr.mxu0 0.0
    %3283 = vmatpush1.msra.mxu0 0.0
    %3284 = vmatprep.subr.mxu0 0.0
    %3285 = vmatpush1.msra.mxu0 0.0
    %3286 = vmatprep.subr.mxu0 0.0
    %3287 = vmatpush1.msra.mxu0 0.0
    %3288 = vmatprep.subr.mxu0 0.0
    %3289 = vmatpush1.msra.mxu0 0.0
    %3290 = vmatprep.subr.mxu0 0.0
    %3291 = vmatpush1.msra.mxu0 0.0
    %3292 = vmatprep.subr.mxu0 0.0
    %3293 = vmatpush1.msra.mxu0 0.0
    %3294 = vmatprep.subr.mxu0 0.0
    %3295 = vmatpush1.msra.mxu0 0.0
    %3296 = vmatprep.subr.mxu0 0.0
    %3297 = vmatpush1.msra.mxu0 0.0
    %3298 = vmatprep.subr.mxu0 0.0
    %3299 = vmatpush1.msra.mxu0 0.0
    %3300 = vmatprep.subr.mxu0 0.0
    %3301 = vmatpush1.msra.mxu0 0.0
    %3302 = vmatprep.subr.mxu0 0.0
    %3303 = vmatpush1.msra.mxu0 0.0
    %3304 = vmatprep.subr.mxu0 0.0
    %3305 = vmatpush1.msra.mxu0 0.0
    %3306 = vmatprep.subr.mxu0 0.0
    %3307 = vmatpush1.msra.mxu0 0.0
    %3308 = vmatprep.subr.mxu0 0.0
    %3309 = vmatpush1.msra.mxu0 0.0
    %3310 = vmatprep.subr.mxu0 0.0
    %3311 = vmatpush1.msra.mxu0 1.0
    %3312 = vmatprep.subr.mxu0 0.0
    %3313 = vmatpush1.msra.mxu0 1.0
    %3314 = vmatprep.subr.mxu0 0.0
    %3315 = vmatpush2.msra.mxu0 0.0
    %3316 = vmatprep.subr.mxu0 0.0
    %3317 = vmatpush2.msra.mxu0 0.0
    %3318 = vmatprep.subr.mxu0 0.0
    %3319 = vmatpush2.msra.mxu0 0.0
    %3320 = vmatprep.subr.mxu0 0.0
    %3321 = vmatpush2.msra.mxu0 0.0
    %3322 = vmatprep.subr.mxu0 0.0
    %3323 = vmatpush2.msra.mxu0 0.0
    %3324 = vmatprep.subr.mxu0 0.0
    %3325 = vmatpush2.msra.mxu0 0.0
    %3326 = vmatprep.subr.mxu0 0.0
    %3327 = vmatpush2.msra.mxu0 0.0
    %3328 = vmatprep.subr.mxu0 0.0
    %3329 = vmatpush2.msra.mxu0 0.0
    %3330 = vmatprep.subr.mxu0 0.0
    %3331 = vmatpush2.msra.mxu0 0.0
    %3332 = vmatprep.subr.mxu0 0.0
    %3333 = vmatpush2.msra.mxu0 0.0
    %3334 = vmatprep.subr.mxu0 0.0
    %3335 = vmatpush2.msra.mxu0 0.0
    %3336 = vmatprep.subr.mxu0 0.0
    %3337 = vmatpush2.msra.mxu0 0.0
    %3338 = vmatprep.subr.mxu0 0.0
    %3339 = vmatpush2.msra.mxu0 0.0
    %3340 = vmatprep.subr.mxu0 0.0
    %3341 = vmatpush2.msra.mxu0 0.0
    %3342 = vmatprep.subr.mxu0 0.0
    %3343 = vmatpush2.msra.mxu0 0.0
    %3344 = vmatprep.subr.mxu0 0.0
    %3345 = vmatpush2.msra.mxu0 0.0
    %3346 = vmatprep.mubr.f32.mxu0 0.0
    %v3347 = vand.u32 %v2672, 4294901760
    %v3348 = vsub.f32 %v2672, %v3347
    %v3349 = vand.u32 %v3348, 4294901760
    %3350 = vmatmul.mubr.f32.gmra.mxu0 %v3349
    %v3351 = vpop.f32.mrf.mxu0
    %v3352 = vadd.f32 %v3174, %v3351
    %v3353 = vpop.f32.mrf.mxu0
    %3354 = vmatprep.mubr.f32.mxu0 0.0
    %v3355 = vand.u32 %v2675, 4294901760
    %v3356 = vsub.f32 %v2675, %v3355
    %v3357 = vand.u32 %v3356, 4294901760
    %3358 = vmatmul.mubr.f32.gmra.mxu0 %v3357
    %v3359 = vpop.f32.mrf.mxu0
    %v3360 = vadd.f32 %v3181, %v3359
    %v3361 = vpop.f32.mrf.mxu0
    %3362 = vmatprep.mubr.f32.mxu0 0.0
    %v3363 = vand.u32 %v2678, 4294901760
    %v3364 = vsub.f32 %v2678, %v3363
    %v3365 = vand.u32 %v3364, 4294901760
    %3366 = vmatmul.mubr.f32.gmra.mxu0 %v3365
    %v3367 = vpop.f32.mrf.mxu0
    %v3368 = vadd.f32 %v3188, %v3367
    %v3369 = vpop.f32.mrf.mxu0
    %3370 = vmatprep.mubr.f32.mxu0 0.0
    %v3371 = vand.u32 %v2681, 4294901760
    %v3372 = vsub.f32 %v2681, %v3371
    %v3373 = vand.u32 %v3372, 4294901760
    %3374 = vmatmul.mubr.f32.gmra.mxu0 %v3373
    %v3375 = vpop.f32.mrf.mxu0
    %v3376 = vadd.f32 %v3195, %v3375
    %v3377 = vpop.f32.mrf.mxu0
    %3378 = vmatprep.mubr.f32.mxu0 0.0
    %v3379 = vand.u32 %v2684, 4294901760
    %v3380 = vsub.f32 %v2684, %v3379
    %v3381 = vand.u32 %v3380, 4294901760
    %3382 = vmatmul.mubr.f32.gmra.mxu0 %v3381
    %v3383 = vpop.f32.mrf.mxu0
    %v3384 = vadd.f32 %v3202, %v3383
    %v3385 = vpop.f32.mrf.mxu0
    %3386 = vmatprep.mubr.f32.mxu0 0.0
    %v3387 = vand.u32 %v2687, 4294901760
    %v3388 = vsub.f32 %v2687, %v3387
    %v3389 = vand.u32 %v3388, 4294901760
    %3390 = vmatmul.mubr.f32.gmra.mxu0 %v3389
    %v3391 = vpop.f32.mrf.mxu0
    %v3392 = vadd.f32 %v3209, %v3391
    %v3393 = vpop.f32.mrf.mxu0
    %3394 = vmatprep.mubr.f32.mxu0 0.0
    %v3395 = vand.u32 %v2690, 4294901760
    %v3396 = vsub.f32 %v2690, %v3395
    %v3397 = vand.u32 %v3396, 4294901760
    %3398 = vmatmul.mubr.f32.gmra.mxu0 %v3397
    %v3399 = vpop.f32.mrf.mxu0
    %v3400 = vadd.f32 %v3216, %v3399
    %v3401 = vpop.f32.mrf.mxu0
    %3402 = vmatprep.mubr.f32.mxu0 0.0
    %v3403 = vand.u32 %v2693, 4294901760
    %v3404 = vsub.f32 %v2693, %v3403
    %v3405 = vand.u32 %v3404, 4294901760
    %3406 = vmatmul.mubr.f32.gmra.mxu0 %v3405
    %v3407 = vpop.f32.mrf.mxu0
    %v3408 = vadd.f32 %v3223, %v3407
    %v3409 = vpop.f32.mrf.mxu0
    %3410 = vmatprep.mubr.f32.mxu0 0.0
    %v3411 = vand.u32 %v2696, 4294901760
    %v3412 = vsub.f32 %v2696, %v3411
    %v3413 = vand.u32 %v3412, 4294901760
    %3414 = vmatmul.mubr.f32.gmra.mxu0 %v3413
    %v3415 = vpop.f32.mrf.mxu0
    %v3416 = vadd.f32 %v3230, %v3415
    %v3417 = vpop.f32.mrf.mxu0
    %3418 = vmatprep.mubr.f32.mxu0 0.0
    %v3419 = vand.u32 %v2699, 4294901760
    %v3420 = vsub.f32 %v2699, %v3419
    %v3421 = vand.u32 %v3420, 4294901760
    %3422 = vmatmul.mubr.f32.gmra.mxu0 %v3421
    %v3423 = vpop.f32.mrf.mxu0
    %v3424 = vadd.f32 %v3237, %v3423
    %v3425 = vpop.f32.mrf.mxu0
    %3426 = vmatprep.mubr.f32.mxu0 0.0
    %v3427 = vand.u32 %v2702, 4294901760
    %v3428 = vsub.f32 %v2702, %v3427
    %v3429 = vand.u32 %v3428, 4294901760
    %3430 = vmatmul.mubr.f32.gmra.mxu0 %v3429
    %v3431 = vpop.f32.mrf.mxu0
    %v3432 = vadd.f32 %v3244, %v3431
    %v3433 = vpop.f32.mrf.mxu0
    %3434 = vmatprep.mubr.f32.mxu0 0.0
    %v3435 = vand.u32 %v2705, 4294901760
    %v3436 = vsub.f32 %v2705, %v3435
    %v3437 = vand.u32 %v3436, 4294901760
    %3438 = vmatmul.mubr.f32.gmra.mxu0 %v3437
    %v3439 = vpop.f32.mrf.mxu0
    %v3440 = vadd.f32 %v3251, %v3439
    %v3441 = vpop.f32.mrf.mxu0
    %3442 = vmatprep.mubr.f32.mxu0 0.0
    %v3443 = vand.u32 %v2708, 4294901760
    %v3444 = vsub.f32 %v2708, %v3443
    %v3445 = vand.u32 %v3444, 4294901760
    %3446 = vmatmul.mubr.f32.gmra.mxu0 %v3445
    %v3447 = vpop.f32.mrf.mxu0
    %v3448 = vadd.f32 %v3258, %v3447
    %v3449 = vpop.f32.mrf.mxu0
    %3450 = vmatprep.mubr.f32.mxu0 0.0
    %v3451 = vand.u32 %v2711, 4294901760
    %v3452 = vsub.f32 %v2711, %v3451
    %v3453 = vand.u32 %v3452, 4294901760
    %3454 = vmatmul.mubr.f32.gmra.mxu0 %v3453
    %v3455 = vpop.f32.mrf.mxu0
    %v3456 = vadd.f32 %v3265, %v3455
    %v3457 = vpop.f32.mrf.mxu0
    %3458 = vmatprep.mubr.f32.mxu0 0.0
    %v3459 = vand.u32 %v2714, 4294901760
    %v3460 = vsub.f32 %v2714, %v3459
    %v3461 = vand.u32 %v3460, 4294901760
    %3462 = vmatmul.mubr.f32.gmra.mxu0 %v3461
    %v3463 = vpop.f32.mrf.mxu0
    %v3464 = vadd.f32 %v3272, %v3463
    %v3465 = vpop.f32.mrf.mxu0
    %3466 = vmatprep.mubr.f32.mxu0 0.0
    %v3467 = vand.u32 %v2717, 4294901760
    %v3468 = vsub.f32 %v2717, %v3467
    %v3469 = vand.u32 %v3468, 4294901760
    %3470 = vmatmul.mubr.f32.gmra.mxu0 %v3469
    %v3471 = vpop.f32.mrf.mxu0
    %v3472 = vadd.f32 %v3279, %v3471
    %v3473 = vpop.f32.mrf.mxu0
    %3474 = vdwg.mxu0
    %3475 = vmatprep.subr.mxu0 0.0
    %3476 = vmatpush1.msra.mxu0 0.0
    %3477 = vmatprep.subr.mxu0 0.0
    %3478 = vmatpush1.msra.mxu0 0.0
    %3479 = vmatprep.subr.mxu0 0.0
    %3480 = vmatpush1.msra.mxu0 0.0
    %3481 = vmatprep.subr.mxu0 0.0
    %3482 = vmatpush1.msra.mxu0 0.0
    %3483 = vmatprep.subr.mxu0 0.0
    %3484 = vmatpush1.msra.mxu0 0.0
    %3485 = vmatprep.subr.mxu0 0.0
    %3486 = vmatpush1.msra.mxu0 0.0
    %3487 = vmatprep.subr.mxu0 0.0
    %3488 = vmatpush1.msra.mxu0 0.0
    %3489 = vmatprep.subr.mxu0 0.0
    %3490 = vmatpush1.msra.mxu0 0.0
    %3491 = vmatprep.subr.mxu0 0.0
    %3492 = vmatpush1.msra.mxu0 0.0
    %3493 = vmatprep.subr.mxu0 0.0
    %3494 = vmatpush1.msra.mxu0 0.0
    %3495 = vmatprep.subr.mxu0 0.0
    %3496 = vmatpush1.msra.mxu0 0.0
    %3497 = vmatprep.subr.mxu0 0.0
    %3498 = vmatpush1.msra.mxu0 0.0
    %3499 = vmatprep.subr.mxu0 0.0
    %3500 = vmatpush1.msra.mxu0 0.0
    %3501 = vmatprep.subr.mxu0 0.0
    %3502 = vmatpush1.msra.mxu0 0.0
    %3503 = vmatprep.subr.mxu0 0.0
    %3504 = vmatpush1.msra.mxu0 0.0
    %3505 = vmatprep.subr.mxu0 0.0
    %3506 = vmatpush1.msra.mxu0 0.0
    %3507 = vmatprep.subr.mxu0 0.0
    %3508 = vmatpush2.msra.mxu0 0.0
    %3509 = vmatprep.subr.mxu0 0.0
    %3510 = vmatpush2.msra.mxu0 0.0
    %3511 = vmatprep.subr.mxu0 0.0
    %3512 = vmatpush2.msra.mxu0 0.0
    %3513 = vmatprep.subr.mxu0 0.0
    %3514 = vmatpush2.msra.mxu0 0.0
    %3515 = vmatprep.subr.mxu0 0.0
    %3516 = vmatpush2.msra.mxu0 0.0
    %3517 = vmatprep.subr.mxu0 0.0
    %3518 = vmatpush2.msra.mxu0 0.0
    %3519 = vmatprep.subr.mxu0 0.0
    %3520 = vmatpush2.msra.mxu0 0.0
    %3521 = vmatprep.subr.mxu0 0.0
    %3522 = vmatpush2.msra.mxu0 0.0
    %3523 = vmatprep.subr.mxu0 0.0
    %3524 = vmatpush2.msra.mxu0 0.0
    %3525 = vmatprep.subr.mxu0 0.0
    %3526 = vmatpush2.msra.mxu0 0.0
    %3527 = vmatprep.subr.mxu0 0.0
    %3528 = vmatpush2.msra.mxu0 0.0
    %3529 = vmatprep.subr.mxu0 0.0
    %3530 = vmatpush2.msra.mxu0 0.0
    %3531 = vmatprep.subr.mxu0 0.0
    %3532 = vmatpush2.msra.mxu0 0.0
    %3533 = vmatprep.subr.mxu0 0.0
    %3534 = vmatpush2.msra.mxu0 0.0
    %3535 = vmatprep.subr.mxu0 0.0
    %3536 = vmatpush2.msra.mxu0 0.0
    %3537 = vmatprep.subr.mxu0 0.0
    %3538 = vmatpush2.msra.mxu0 0.0
    %3539 = vmatprep.mubr.f32.mxu0 0.0
    %v3540 = vand.u32 %v2672, 4294901760
    %3541 = vmatmul.mubr.f32.gmra.mxu0 %v3540
    %v3542 = vpop.f32.mrf.mxu0
    %v3543 = vadd.f32 %v3352, %v3542
    %v3544 = vpop.f32.mrf.mxu0
    %3545 = vmatprep.mubr.f32.mxu0 0.0
    %v3546 = vand.u32 %v2675, 4294901760
    %3547 = vmatmul.mubr.f32.gmra.mxu0 %v3546
    %v3548 = vpop.f32.mrf.mxu0
    %v3549 = vadd.f32 %v3360, %v3548
    %v3550 = vpop.f32.mrf.mxu0
    %3551 = vmatprep.mubr.f32.mxu0 0.0
    %v3552 = vand.u32 %v2678, 4294901760
    %3553 = vmatmul.mubr.f32.gmra.mxu0 %v3552
    %v3554 = vpop.f32.mrf.mxu0
    %v3555 = vadd.f32 %v3368, %v3554
    %v3556 = vpop.f32.mrf.mxu0
    %3557 = vmatprep.mubr.f32.mxu0 0.0
    %v3558 = vand.u32 %v2681, 4294901760
    %3559 = vmatmul.mubr.f32.gmra.mxu0 %v3558
    %v3560 = vpop.f32.mrf.mxu0
    %v3561 = vadd.f32 %v3376, %v3560
    %v3562 = vpop.f32.mrf.mxu0
    %3563 = vmatprep.mubr.f32.mxu0 0.0
    %v3564 = vand.u32 %v2684, 4294901760
    %3565 = vmatmul.mubr.f32.gmra.mxu0 %v3564
    %v3566 = vpop.f32.mrf.mxu0
    %v3567 = vadd.f32 %v3384, %v3566
    %v3568 = vpop.f32.mrf.mxu0
    %3569 = vmatprep.mubr.f32.mxu0 0.0
    %v3570 = vand.u32 %v2687, 4294901760
    %3571 = vmatmul.mubr.f32.gmra.mxu0 %v3570
    %v3572 = vpop.f32.mrf.mxu0
    %v3573 = vadd.f32 %v3392, %v3572
    %v3574 = vpop.f32.mrf.mxu0
    %3575 = vmatprep.mubr.f32.mxu0 0.0
    %v3576 = vand.u32 %v2690, 4294901760
    %3577 = vmatmul.mubr.f32.gmra.mxu0 %v3576
    %v3578 = vpop.f32.mrf.mxu0
    %v3579 = vadd.f32 %v3400, %v3578
    %v3580 = vpop.f32.mrf.mxu0
    %3581 = vmatprep.mubr.f32.mxu0 0.0
    %v3582 = vand.u32 %v2693, 4294901760
    %3583 = vmatmul.mubr.f32.gmra.mxu0 %v3582
    %v3584 = vpop.f32.mrf.mxu0
    %v3585 = vadd.f32 %v3408, %v3584
    %v3586 = vpop.f32.mrf.mxu0
    %3587 = vmatprep.mubr.f32.mxu0 0.0
    %v3588 = vand.u32 %v2696, 4294901760
    %3589 = vmatmul.mubr.f32.gmra.mxu0 %v3588
    %v3590 = vpop.f32.mrf.mxu0
    %v3591 = vadd.f32 %v3416, %v3590
    %v3592 = vpop.f32.mrf.mxu0
    %3593 = vmatprep.mubr.f32.mxu0 0.0
    %v3594 = vand.u32 %v2699, 4294901760
    %3595 = vmatmul.mubr.f32.gmra.mxu0 %v3594
    %v3596 = vpop.f32.mrf.mxu0
    %v3597 = vadd.f32 %v3424, %v3596
    %v3598 = vpop.f32.mrf.mxu0
    %3599 = vmatprep.mubr.f32.mxu0 0.0
    %v3600 = vand.u32 %v2702, 4294901760
    %3601 = vmatmul.mubr.f32.gmra.mxu0 %v3600
    %v3602 = vpop.f32.mrf.mxu0
    %v3603 = vadd.f32 %v3432, %v3602
    %v3604 = vpop.f32.mrf.mxu0
    %3605 = vmatprep.mubr.f32.mxu0 0.0
    %v3606 = vand.u32 %v2705, 4294901760
    %3607 = vmatmul.mubr.f32.gmra.mxu0 %v3606
    %v3608 = vpop.f32.mrf.mxu0
    %v3609 = vadd.f32 %v3440, %v3608
    %v3610 = vpop.f32.mrf.mxu0
    %3611 = vmatprep.mubr.f32.mxu0 0.0
    %v3612 = vand.u32 %v2708, 4294901760
    %3613 = vmatmul.mubr.f32.gmra.mxu0 %v3612
    %v3614 = vpop.f32.mrf.mxu0
    %v3615 = vadd.f32 %v3448, %v3614
    %v3616 = vpop.f32.mrf.mxu0
    %3617 = vmatprep.mubr.f32.mxu0 0.0
    %v3618 = vand.u32 %v2711, 4294901760
    %3619 = vmatmul.mubr.f32.gmra.mxu0 %v3618
    %v3620 = vpop.f32.mrf.mxu0
    %v3621 = vadd.f32 %v3456, %v3620
    %v3622 = vpop.f32.mrf.mxu0
    %3623 = vmatprep.mubr.f32.mxu0 0.0
    %v3624 = vand.u32 %v2714, 4294901760
    %3625 = vmatmul.mubr.f32.gmra.mxu0 %v3624
    %v3626 = vpop.f32.mrf.mxu0
    %v3627 = vadd.f32 %v3464, %v3626
    %v3628 = vpop.f32.mrf.mxu0
    %3629 = vmatprep.mubr.f32.mxu0 0.0
    %v3630 = vand.u32 %v2717, 4294901760
    %3631 = vmatmul.mubr.f32.gmra.mxu0 %v3630
    %v3632 = vpop.f32.mrf.mxu0
    %v3633 = vadd.f32 %v3472, %v3632
    %v3634 = vpop.f32.mrf.mxu0
    %3635 = vdwg.mxu0
    %3636 = vmatprep.subr.mxu0 0.0
    %3637 = vmatpush1.msra.mxu0 0.0
    %3638 = vmatprep.subr.mxu0 0.0
    %3639 = vmatpush1.msra.mxu0 0.0
    %3640 = vmatprep.subr.mxu0 0.0
    %3641 = vmatpush1.msra.mxu0 0.0
    %3642 = vmatprep.subr.mxu0 0.0
    %3643 = vmatpush1.msra.mxu0 0.0
    %3644 = vmatprep.subr.mxu0 0.0
    %3645 = vmatpush1.msra.mxu0 0.0
    %3646 = vmatprep.subr.mxu0 0.0
    %3647 = vmatpush1.msra.mxu0 0.0
    %3648 = vmatprep.subr.mxu0 0.0
    %3649 = vmatpush1.msra.mxu0 0.0
    %3650 = vmatprep.subr.mxu0 0.0
    %3651 = vmatpush1.msra.mxu0 0.0
    %3652 = vmatprep.subr.mxu0 0.0
    %3653 = vmatpush1.msra.mxu0 0.0
    %3654 = vmatprep.subr.mxu0 0.0
    %3655 = vmatpush1.msra.mxu0 0.0
    %3656 = vmatprep.subr.mxu0 0.0
    %3657 = vmatpush1.msra.mxu0 0.0
    %3658 = vmatprep.subr.mxu0 0.0
    %3659 = vmatpush1.msra.mxu0 0.0
    %3660 = vmatprep.subr.mxu0 0.0
    %3661 = vmatpush1.msra.mxu0 0.0
    %3662 = vmatprep.subr.mxu0 0.0
    %3663 = vmatpush1.msra.mxu0 0.0
    %3664 = vmatprep.subr.mxu0 0.0
    %3665 = vmatpush1.msra.mxu0 1.0
    %3666 = vmatprep.subr.mxu0 0.0
    %3667 = vmatpush1.msra.mxu0 1.0
    %3668 = vmatprep.subr.mxu0 0.0
    %3669 = vmatpush2.msra.mxu0 0.0
    %3670 = vmatprep.subr.mxu0 0.0
    %3671 = vmatpush2.msra.mxu0 0.0
    %3672 = vmatprep.subr.mxu0 0.0
    %3673 = vmatpush2.msra.mxu0 0.0
    %3674 = vmatprep.subr.mxu0 0.0
    %3675 = vmatpush2.msra.mxu0 0.0
    %3676 = vmatprep.subr.mxu0 0.0
    %3677 = vmatpush2.msra.mxu0 0.0
    %3678 = vmatprep.subr.mxu0 0.0
    %3679 = vmatpush2.msra.mxu0 0.0
    %3680 = vmatprep.subr.mxu0 0.0
    %3681 = vmatpush2.msra.mxu0 0.0
    %3682 = vmatprep.subr.mxu0 0.0
    %3683 = vmatpush2.msra.mxu0 0.0
    %3684 = vmatprep.subr.mxu0 0.0
    %3685 = vmatpush2.msra.mxu0 0.0
    %3686 = vmatprep.subr.mxu0 0.0
    %3687 = vmatpush2.msra.mxu0 0.0
    %3688 = vmatprep.subr.mxu0 0.0
    %3689 = vmatpush2.msra.mxu0 0.0
    %3690 = vmatprep.subr.mxu0 0.0
    %3691 = vmatpush2.msra.mxu0 0.0
    %3692 = vmatprep.subr.mxu0 0.0
    %3693 = vmatpush2.msra.mxu0 0.0
    %3694 = vmatprep.subr.mxu0 0.0
    %3695 = vmatpush2.msra.mxu0 0.0
    %3696 = vmatprep.subr.mxu0 0.0
    %3697 = vmatpush2.msra.mxu0 0.0
    %3698 = vmatprep.subr.mxu0 0.0
    %3699 = vmatpush2.msra.mxu0 0.0
    %3700 = vmatprep.mubr.f32.mxu0 0.0
    %v3701 = vand.u32 %v2672, 4294901760
    %3702 = vmatmul.mubr.f32.gmra.mxu0 %v3701
    %v3703 = vpop.f32.mrf.mxu0
    %v3704 = vadd.f32 %v3543, %v3703
    %v3705 = vpop.f32.mrf.mxu0
    %3706 = vmatprep.mubr.f32.mxu0 0.0
    %v3707 = vand.u32 %v2675, 4294901760
    %3708 = vmatmul.mubr.f32.gmra.mxu0 %v3707
    %v3709 = vpop.f32.mrf.mxu0
    %v3710 = vadd.f32 %v3549, %v3709
    %v3711 = vpop.f32.mrf.mxu0
    %3712 = vmatprep.mubr.f32.mxu0 0.0
    %v3713 = vand.u32 %v2678, 4294901760
    %3714 = vmatmul.mubr.f32.gmra.mxu0 %v3713
    %v3715 = vpop.f32.mrf.mxu0
    %v3716 = vadd.f32 %v3555, %v3715
    %v3717 = vpop.f32.mrf.mxu0
    %3718 = vmatprep.mubr.f32.mxu0 0.0
    %v3719 = vand.u32 %v2681, 4294901760
    %3720 = vmatmul.mubr.f32.gmra.mxu0 %v3719
    %v3721 = vpop.f32.mrf.mxu0
    %v3722 = vadd.f32 %v3561, %v3721
    %v3723 = vpop.f32.mrf.mxu0
    %3724 = vmatprep.mubr.f32.mxu0 0.0
    %v3725 = vand.u32 %v2684, 4294901760
    %3726 = vmatmul.mubr.f32.gmra.mxu0 %v3725
    %v3727 = vpop.f32.mrf.mxu0
    %v3728 = vadd.f32 %v3567, %v3727
    %v3729 = vpop.f32.mrf.mxu0
    %3730 = vmatprep.mubr.f32.mxu0 0.0
    %v3731 = vand.u32 %v2687, 4294901760
    %3732 = vmatmul.mubr.f32.gmra.mxu0 %v3731
    %v3733 = vpop.f32.mrf.mxu0
    %v3734 = vadd.f32 %v3573, %v3733
    %v3735 = vpop.f32.mrf.mxu0
    %3736 = vmatprep.mubr.f32.mxu0 0.0
    %v3737 = vand.u32 %v2690, 4294901760
    %3738 = vmatmul.mubr.f32.gmra.mxu0 %v3737
    %v3739 = vpop.f32.mrf.mxu0
    %v3740 = vadd.f32 %v3579, %v3739
    %v3741 = vpop.f32.mrf.mxu0
    %3742 = vmatprep.mubr.f32.mxu0 0.0
    %v3743 = vand.u32 %v2693, 4294901760
    %3744 = vmatmul.mubr.f32.gmra.mxu0 %v3743
    %v3745 = vpop.f32.mrf.mxu0
    %v3746 = vadd.f32 %v3585, %v3745
    %v3747 = vpop.f32.mrf.mxu0
    %3748 = vmatprep.mubr.f32.mxu0 0.0
    %v3749 = vand.u32 %v2696, 4294901760
    %3750 = vmatmul.mubr.f32.gmra.mxu0 %v3749
    %v3751 = vpop.f32.mrf.mxu0
    %v3752 = vadd.f32 %v3591, %v3751
    %v3753 = vpop.f32.mrf.mxu0
    %3754 = vmatprep.mubr.f32.mxu0 0.0
    %v3755 = vand.u32 %v2699, 4294901760
    %3756 = vmatmul.mubr.f32.gmra.mxu0 %v3755
    %v3757 = vpop.f32.mrf.mxu0
    %v3758 = vadd.f32 %v3597, %v3757
    %v3759 = vpop.f32.mrf.mxu0
    %3760 = vmatprep.mubr.f32.mxu0 0.0
    %v3761 = vand.u32 %v2702, 4294901760
    %3762 = vmatmul.mubr.f32.gmra.mxu0 %v3761
    %v3763 = vpop.f32.mrf.mxu0
    %v3764 = vadd.f32 %v3603, %v3763
    %v3765 = vpop.f32.mrf.mxu0
    %3766 = vmatprep.mubr.f32.mxu0 0.0
    %v3767 = vand.u32 %v2705, 4294901760
    %3768 = vmatmul.mubr.f32.gmra.mxu0 %v3767
    %v3769 = vpop.f32.mrf.mxu0
    %v3770 = vadd.f32 %v3609, %v3769
    %v3771 = vpop.f32.mrf.mxu0
    %3772 = vmatprep.mubr.f32.mxu0 0.0
    %v3773 = vand.u32 %v2708, 4294901760
    %3774 = vmatmul.mubr.f32.gmra.mxu0 %v3773
    %v3775 = vpop.f32.mrf.mxu0
    %v3776 = vadd.f32 %v3615, %v3775
    %v3777 = vpop.f32.mrf.mxu0
    %3778 = vmatprep.mubr.f32.mxu0 0.0
    %v3779 = vand.u32 %v2711, 4294901760
    %3780 = vmatmul.mubr.f32.gmra.mxu0 %v3779
    %v3781 = vpop.f32.mrf.mxu0
    %v3782 = vadd.f32 %v3621, %v3781
    %v3783 = vpop.f32.mrf.mxu0
    %3784 = vmatprep.mubr.f32.mxu0 0.0
    %v3785 = vand.u32 %v2714, 4294901760
    %3786 = vmatmul.mubr.f32.gmra.mxu0 %v3785
    %v3787 = vpop.f32.mrf.mxu0
    %v3788 = vadd.f32 %v3627, %v3787
    %v3789 = vpop.f32.mrf.mxu0
    %3790 = vmatprep.mubr.f32.mxu0 0.0
    %v3791 = vand.u32 %v2717, 4294901760
    %3792 = vmatmul.mubr.f32.gmra.mxu0 %v3791
    %v3793 = vpop.f32.mrf.mxu0
    %v3794 = vadd.f32 %v3633, %v3793
    %v3795 = vpop.f32.mrf.mxu0
    %3796 = vdwg.mxu0
    %v3797 = vrcp.pop %v1404
    %v3798 = vrcp.pop %v1410
    %v3799 = vrcp.pop %v1416
    %v3800 = vrcp.pop %v1422
    %v3801 = vrcp.pop %v1428
    %v3802 = vrcp.pop %v1434
    %v3803 = vrcp.pop %v1440
    %v3804 = vrcp.pop %v1446
    %v3805 = vrcp.pop %v1452
    %v3806 = vrcp.pop %v1458
    %v3807 = vrcp.pop %v1464
    %v3808 = vrcp.pop %v1470
    %v3809 = vrcp.pop %v1476
    %v3810 = vrcp.pop %v1482
    %v3811 = vrcp.pop %v1488
    %v3812 = vrcp.pop %v1494
    %v3813 = vlog2.pop %v1404
    %v3814 = vmul.f32 %v3813, 0.6931472
    %v3815 = vlog2.pop %v1410
    %v3816 = vmul.f32 %v3815, 0.6931472
    %v3817 = vlog2.pop %v1416
    %v3818 = vmul.f32 %v3817, 0.6931472
    %v3819 = vlog2.pop %v1422
    %v3820 = vmul.f32 %v3819, 0.6931472
    %v3821 = vlog2.pop %v1428
    %v3822 = vmul.f32 %v3821, 0.6931472
    %v3823 = vlog2.pop %v1434
    %v3824 = vmul.f32 %v3823, 0.6931472
    %v3825 = vlog2.pop %v1440
    %v3826 = vmul.f32 %v3825, 0.6931472
    %v3827 = vlog2.pop %v1446
    %v3828 = vmul.f32 %v3827, 0.6931472
    %v3829 = vlog2.pop %v1452
    %v3830 = vmul.f32 %v3829, 0.6931472
    %v3831 = vlog2.pop %v1458
    %v3832 = vmul.f32 %v3831, 0.6931472
    %v3833 = vlog2.pop %v1464
    %v3834 = vmul.f32 %v3833, 0.6931472
    %v3835 = vlog2.pop %v1470
    %v3836 = vmul.f32 %v3835, 0.6931472
    %v3837 = vlog2.pop %v1476
    %v3838 = vmul.f32 %v3837, 0.6931472
    %v3839 = vlog2.pop %v1482
    %v3840 = vmul.f32 %v3839, 0.6931472
    %v3841 = vlog2.pop %v1488
    %v3842 = vmul.f32 %v3841, 0.6931472
    %v3843 = vlog2.pop %v1494
    %v3844 = vmul.f32 %v3843, 0.6931472
    %v3845 = vadd.f32 %v277, %v3814
    %v3846 = vadd.f32 %v280, %v3816
    %v3847 = vadd.f32 %v283, %v3818
    %v3848 = vadd.f32 %v286, %v3820
    %v3849 = vadd.f32 %v289, %v3822
    %v3850 = vadd.f32 %v292, %v3824
    %v3851 = vadd.f32 %v295, %v3826
    %v3852 = vadd.f32 %v298, %v3828
    %v3853 = vadd.f32 %v301, %v3830
    %v3854 = vadd.f32 %v304, %v3832
    %v3855 = vadd.f32 %v307, %v3834
    %v3856 = vadd.f32 %v310, %v3836
    %v3857 = vadd.f32 %v313, %v3838
    %v3858 = vadd.f32 %v316, %v3840
    %v3859 = vadd.f32 %v319, %v3842
    %v3860 = vadd.f32 %v322, %v3844
    %v3861 = vsub.f32 %v3845, %v2546
    %v3862 = vsub.f32 %v3846, %v2552
    %v3863 = vsub.f32 %v3847, %v2558
    %v3864 = vsub.f32 %v3848, %v2564
    %v3865 = vsub.f32 %v3849, %v2570
    %v3866 = vsub.f32 %v3850, %v2576
    %v3867 = vsub.f32 %v3851, %v2582
    %v3868 = vsub.f32 %v3852, %v2588
    %v3869 = vsub.f32 %v3853, %v2594
    %v3870 = vsub.f32 %v3854, %v2600
    %v3871 = vsub.f32 %v3855, %v2606
    %v3872 = vsub.f32 %v3856, %v2612
    %v3873 = vsub.f32 %v3857, %v2618
    %v3874 = vsub.f32 %v3858, %v2624
    %v3875 = vsub.f32 %v3859, %v2630
    %v3876 = vsub.f32 %v3860, %v2636
    %v3877 = vsub.f32 %v2546, %v277
    %v3878 = vsub.f32 %v2552, %v280
    %v3879 = vsub.f32 %v2558, %v283
    %v3880 = vsub.f32 %v2564, %v286
    %v3881 = vsub.f32 %v2570, %v289
    %v3882 = vsub.f32 %v2576, %v292
    %v3883 = vsub.f32 %v2582, %v295
    %v3884 = vsub.f32 %v2588, %v298
    %v3885 = vsub.f32 %v2594, %v301
    %v3886 = vsub.f32 %v2600, %v304
    %v3887 = vsub.f32 %v2606, %v307
    %v3888 = vsub.f32 %v2612, %v310
    %v3889 = vsub.f32 %v2618, %v313
    %v3890 = vsub.f32 %v2624, %v316
    %v3891 = vsub.f32 %v2630, %v319
    %v3892 = vsub.f32 %v2636, %v322
    %v3893 = vmul.f32 %v3877, 1.442695
    %v3894 = vpow.pop %v3893
    %v3895 = vmul.f32 %v3878, 1.442695
    %v3896 = vpow.pop %v3895
    %v3897 = vmul.f32 %v3879, 1.442695
    %v3898 = vpow.pop %v3897
    %v3899 = vmul.f32 %v3880, 1.442695
    %v3900 = vpow.pop %v3899
    %v3901 = vmul.f32 %v3881, 1.442695
    %v3902 = vpow.pop %v3901
    %v3903 = vmul.f32 %v3882, 1.442695
    %v3904 = vpow.pop %v3903
    %v3905 = vmul.f32 %v3883, 1.442695
    %v3906 = vpow.pop %v3905
    %v3907 = vmul.f32 %v3884, 1.442695
    %v3908 = vpow.pop %v3907
    %v3909 = vmul.f32 %v3885, 1.442695
    %v3910 = vpow.pop %v3909
    %v3911 = vmul.f32 %v3886, 1.442695
    %v3912 = vpow.pop %v3911
    %v3913 = vmul.f32 %v3887, 1.442695
    %v3914 = vpow.pop %v3913
    %v3915 = vmul.f32 %v3888, 1.442695
    %v3916 = vpow.pop %v3915
    %v3917 = vmul.f32 %v3889, 1.442695
    %v3918 = vpow.pop %v3917
    %v3919 = vmul.f32 %v3890, 1.442695
    %v3920 = vpow.pop %v3919
    %v3921 = vmul.f32 %v3891, 1.442695
    %v3922 = vpow.pop %v3921
    %v3923 = vmul.f32 %v3892, 1.442695
    %v3924 = vpow.pop %v3923
    %v3925 = vmul.f32 %v3894, %v3797
    %v3926 = vmul.f32 %v3896, %v3798
    %v3927 = vmul.f32 %v3898, %v3799
    %v3928 = vmul.f32 %v3900, %v3800
    %v3929 = vmul.f32 %v3902, %v3801
    %v3930 = vmul.f32 %v3904, %v3802
    %v3931 = vmul.f32 %v3906, %v3803
    %v3932 = vmul.f32 %v3908, %v3804
    %v3933 = vmul.f32 %v3910, %v3805
    %v3934 = vmul.f32 %v3912, %v3806
    %v3935 = vmul.f32 %v3914, %v3807
    %v3936 = vmul.f32 %v3916, %v3808
    %v3937 = vmul.f32 %v3918, %v3809
    %v3938 = vmul.f32 %v3920, %v3810
    %v3939 = vmul.f32 %v3922, %v3811
    %v3940 = vmul.f32 %v3924, %v3812
    %v3941 = vmul.f32 %v92, 2.0
    %v3942 = vmul.f32 %v93, 2.0
    %v3943 = vmul.f32 %v94, 2.0
    %v3944 = vmul.f32 %v95, 2.0
    %v3945 = vmul.f32 %v96, 2.0
    %v3946 = vmul.f32 %v97, 2.0
    %v3947 = vmul.f32 %v98, 2.0
    %v3948 = vmul.f32 %v99, 2.0
    %v3949 = vmul.f32 %v100, 2.0
    %v3950 = vmul.f32 %v101, 2.0
    %v3951 = vmul.f32 %v102, 2.0
    %v3952 = vmul.f32 %v103, 2.0
    %v3953 = vmul.f32 %v104, 2.0
    %v3954 = vmul.f32 %v105, 2.0
    %v3955 = vmul.f32 %v106, 2.0
    %v3956 = vmul.f32 %v107, 2.0
    %3973 = vrot.lane.b32.xlu0 %v3925, 1
    %v3974 = vpop.permute.xlu0 %3973
    %3975 = vrot.lane.b32.xlu0 %v3926, 1
    %v3976 = vpop.permute.xlu0 %3975
    %3977 = vrot.lane.b32.xlu0 %v3927, 1
    %v3978 = vpop.permute.xlu0 %3977
    %3979 = vrot.lane.b32.xlu0 %v3928, 1
    %v3980 = vpop.permute.xlu0 %3979
    %3981 = vrot.lane.b32.xlu0 %v3929, 1
    %v3982 = vpop.permute.xlu0 %3981
    %3983 = vrot.lane.b32.xlu0 %v3930, 1
    %v3984 = vpop.permute.xlu0 %3983
    %3985 = vrot.lane.b32.xlu0 %v3931, 1
    %v3986 = vpop.permute.xlu0 %3985
    %3987 = vrot.lane.b32.xlu0 %v3932, 1
    %v3988 = vpop.permute.xlu0 %3987
    %3989 = vrot.lane.b32.xlu0 %v3933, 1
    %v3990 = vpop.permute.xlu0 %3989
    %3991 = vrot.lane.b32.xlu0 %v3934, 1
    %v3992 = vpop.permute.xlu0 %3991
    %3993 = vrot.lane.b32.xlu0 %v3935, 1
    %v3994 = vpop.permute.xlu0 %3993
    %3995 = vrot.lane.b32.xlu0 %v3936, 1
    %v3996 = vpop.permute.xlu0 %3995
    %3997 = vrot.lane.b32.xlu0 %v3937, 1
    %v3998 = vpop.permute.xlu0 %3997
    %3999 = vrot.lane.b32.xlu0 %v3938, 1
    %v4000 = vpop.permute.xlu0 %3999
    %4001 = vrot.lane.b32.xlu0 %v3939, 1
    %v4002 = vpop.permute.xlu0 %4001
    %4003 = vrot.lane.b32.xlu0 %v3940, 1
    %v4004 = vpop.permute.xlu0 %4003
    %v4021 = vmul.f32 %v3941, %v3974
    %v4022 = vmul.f32 %v3942, %v3976
    %v4023 = vmul.f32 %v3943, %v3978
    %v4024 = vmul.f32 %v3944, %v3980
    %v4025 = vmul.f32 %v3945, %v3982
    %v4026 = vmul.f32 %v3946, %v3984
    %v4027 = vmul.f32 %v3947, %v3986
    %v4028 = vmul.f32 %v3948, %v3988
    %v4029 = vmul.f32 %v3949, %v3990
    %v4030 = vmul.f32 %v3950, %v3992
    %v4031 = vmul.f32 %v3951, %v3994
    %v4032 = vmul.f32 %v3952, %v3996
    %v4033 = vmul.f32 %v3953, %v3998
    %v4034 = vmul.f32 %v3954, %v4000
    %v4035 = vmul.f32 %v3955, %v4002
    %v4036 = vmul.f32 %v3956, %v4004
    %4053 = vrot.lane.b32.xlu0 %v4021, 127
    %v4054 = vpop.permute.xlu0 %4053
    %4055 = vrot.lane.b32.xlu0 %v4022, 127
    %v4056 = vpop.permute.xlu0 %4055
    %4057 = vrot.lane.b32.xlu0 %v4023, 127
    %v4058 = vpop.permute.xlu0 %4057
    %4059 = vrot.lane.b32.xlu0 %v4024, 127
    %v4060 = vpop.permute.xlu0 %4059
    %4061 = vrot.lane.b32.xlu0 %v4025, 127
    %v4062 = vpop.permute.xlu0 %4061
    %4063 = vrot.lane.b32.xlu0 %v4026, 127
    %v4064 = vpop.permute.xlu0 %4063
    %4065 = vrot.lane.b32.xlu0 %v4027, 127
    %v4066 = vpop.permute.xlu0 %4065
    %4067 = vrot.lane.b32.xlu0 %v4028, 127
    %v4068 = vpop.permute.xlu0 %4067
    %4069 = vrot.lane.b32.xlu0 %v4029, 127
    %v4070 = vpop.permute.xlu0 %4069
    %4071 = vrot.lane.b32.xlu0 %v4030, 127
    %v4072 = vpop.permute.xlu0 %4071
    %4073 = vrot.lane.b32.xlu0 %v4031, 127
    %v4074 = vpop.permute.xlu0 %4073
    %4075 = vrot.lane.b32.xlu0 %v4032, 127
    %v4076 = vpop.permute.xlu0 %4075
    %4077 = vrot.lane.b32.xlu0 %v4033, 127
    %v4078 = vpop.permute.xlu0 %4077
    %4079 = vrot.lane.b32.xlu0 %v4034, 127
    %v4080 = vpop.permute.xlu0 %4079
    %4081 = vrot.lane.b32.xlu0 %v4035, 127
    %v4082 = vpop.permute.xlu0 %4081
    %4083 = vrot.lane.b32.xlu0 %v4036, 127
    %v4084 = vpop.permute.xlu0 %4083
    %v4101 = vadd.f32 %v3861, %v4054
    %v4102 = vadd.f32 %v3862, %v4056
    %v4103 = vadd.f32 %v3863, %v4058
    %v4104 = vadd.f32 %v3864, %v4060
    %v4105 = vadd.f32 %v3865, %v4062
    %v4106 = vadd.f32 %v3866, %v4064
    %v4107 = vadd.f32 %v3867, %v4066
    %v4108 = vadd.f32 %v3868, %v4068
    %v4109 = vadd.f32 %v3869, %v4070
    %v4110 = vadd.f32 %v3870, %v4072
    %v4111 = vadd.f32 %v3871, %v4074
    %v4112 = vadd.f32 %v3872, %v4076
    %v4113 = vadd.f32 %v3873, %v4078
    %v4114 = vadd.f32 %v3874, %v4080
    %v4115 = vadd.f32 %v3875, %v4082
    %v4116 = vadd.f32 %v3876, %v4084
    %4133 = vrot.lane.b32.xlu0 %v92, 127
    %v4134 = vpop.permute.xlu0 %4133
    %4135 = vrot.lane.b32.xlu0 %v93, 127
    %v4136 = vpop.permute.xlu0 %4135
    %4137 = vrot.lane.b32.xlu0 %v94, 127
    %v4138 = vpop.permute.xlu0 %4137
    %4139 = vrot.lane.b32.xlu0 %v95, 127
    %v4140 = vpop.permute.xlu0 %4139
    %4141 = vrot.lane.b32.xlu0 %v96, 127
    %v4142 = vpop.permute.xlu0 %4141
    %4143 = vrot.lane.b32.xlu0 %v97, 127
    %v4144 = vpop.permute.xlu0 %4143
    %4145 = vrot.lane.b32.xlu0 %v98, 127
    %v4146 = vpop.permute.xlu0 %4145
    %4147 = vrot.lane.b32.xlu0 %v99, 127
    %v4148 = vpop.permute.xlu0 %4147
    %4149 = vrot.lane.b32.xlu0 %v100, 127
    %v4150 = vpop.permute.xlu0 %4149
    %4151 = vrot.lane.b32.xlu0 %v101, 127
    %v4152 = vpop.permute.xlu0 %4151
    %4153 = vrot.lane.b32.xlu0 %v102, 127
    %v4154 = vpop.permute.xlu0 %4153
    %4155 = vrot.lane.b32.xlu0 %v103, 127
    %v4156 = vpop.permute.xlu0 %4155
    %4157 = vrot.lane.b32.xlu0 %v104, 127
    %v4158 = vpop.permute.xlu0 %4157
    %4159 = vrot.lane.b32.xlu0 %v105, 127
    %v4160 = vpop.permute.xlu0 %4159
    %4161 = vrot.lane.b32.xlu0 %v106, 127
    %v4162 = vpop.permute.xlu0 %4161
    %4163 = vrot.lane.b32.xlu0 %v107, 127
    %v4164 = vpop.permute.xlu0 %4163
    %v4181 = vadd.f32 %v3925, %v4134
    %v4182 = vadd.f32 %v3926, %v4136
    %v4183 = vadd.f32 %v3927, %v4138
    %v4184 = vadd.f32 %v3928, %v4140
    %v4185 = vadd.f32 %v3929, %v4142
    %v4186 = vadd.f32 %v3930, %v4144
    %v4187 = vadd.f32 %v3931, %v4146
    %v4188 = vadd.f32 %v3932, %v4148
    %v4189 = vadd.f32 %v3933, %v4150
    %v4190 = vadd.f32 %v3934, %v4152
    %v4191 = vadd.f32 %v3935, %v4154
    %v4192 = vadd.f32 %v3936, %v4156
    %v4193 = vadd.f32 %v3937, %v4158
    %v4194 = vadd.f32 %v3938, %v4160
    %v4195 = vadd.f32 %v3939, %v4162
    %v4196 = vadd.f32 %v3940, %v4164
    %v4197 = vsub.f32 %v4181, 1.0
    %v4198 = vsub.f32 %v4182, 1.0
    %v4199 = vsub.f32 %v4183, 1.0
    %v4200 = vsub.f32 %v4184, 1.0
    %v4201 = vsub.f32 %v4185, 1.0
    %v4202 = vsub.f32 %v4186, 1.0
    %v4203 = vsub.f32 %v4187, 1.0
    %v4204 = vsub.f32 %v4188, 1.0
    %v4205 = vsub.f32 %v4189, 1.0
    %v4206 = vsub.f32 %v4190, 1.0
    %v4207 = vsub.f32 %v4191, 1.0
    %v4208 = vsub.f32 %v4192, 1.0
    %v4209 = vsub.f32 %v4193, 1.0
    %v4210 = vsub.f32 %v4194, 1.0
    %v4211 = vsub.f32 %v4195, 1.0
    %v4212 = vsub.f32 %v4196, 1.0
    %v4213 = vmul.f32 %v3797, %v3797
    %v4214 = vmul.f32 %v3798, %v3798
    %v4215 = vmul.f32 %v3799, %v3799
    %v4216 = vmul.f32 %v3800, %v3800
    %v4217 = vmul.f32 %v3801, %v3801
    %v4218 = vmul.f32 %v3802, %v3802
    %v4219 = vmul.f32 %v3803, %v3803
    %v4220 = vmul.f32 %v3804, %v3804
    %v4221 = vmul.f32 %v3805, %v3805
    %v4222 = vmul.f32 %v3806, %v3806
    %v4223 = vmul.f32 %v3807, %v3807
    %v4224 = vmul.f32 %v3808, %v3808
    %v4225 = vmul.f32 %v3809, %v3809
    %v4226 = vmul.f32 %v3810, %v3810
    %v4227 = vmul.f32 %v3811, %v3811
    %v4228 = vmul.f32 %v3812, %v3812
    %v4229 = vmul.f32 %v3704, %v4213
    %v4230 = vmul.f32 %v3710, %v4214
    %v4231 = vmul.f32 %v3716, %v4215
    %v4232 = vmul.f32 %v3722, %v4216
    %v4233 = vmul.f32 %v3728, %v4217
    %v4234 = vmul.f32 %v3734, %v4218
    %v4235 = vmul.f32 %v3740, %v4219
    %v4236 = vmul.f32 %v3746, %v4220
    %v4237 = vmul.f32 %v3752, %v4221
    %v4238 = vmul.f32 %v3758, %v4222
    %v4239 = vmul.f32 %v3764, %v4223
    %v4240 = vmul.f32 %v3770, %v4224
    %v4241 = vmul.f32 %v3776, %v4225
    %v4242 = vmul.f32 %v3782, %v4226
    %v4243 = vmul.f32 %v3788, %v4227
    %v4244 = vmul.f32 %v3794, %v4228
    %v4245 = vmul.f32 %v4197, %v4197
    %v4246 = vmul.f32 %v4198, %v4198
    %v4247 = vmul.f32 %v4199, %v4199
    %v4248 = vmul.f32 %v4200, %v4200
    %v4249 = vmul.f32 %v4201, %v4201
    %v4250 = vmul.f32 %v4202, %v4202
    %v4251 = vmul.f32 %v4203, %v4203
    %v4252 = vmul.f32 %v4204, %v4204
    %v4253 = vmul.f32 %v4205, %v4205
    %v4254 = vmul.f32 %v4206, %v4206
    %v4255 = vmul.f32 %v4207, %v4207
    %v4256 = vmul.f32 %v4208, %v4208
    %v4257 = vmul.f32 %v4209, %v4209
    %v4258 = vmul.f32 %v4210, %v4210
    %v4259 = vmul.f32 %v4211, %v4211
    %v4260 = vmul.f32 %v4212, %v4212
    %v4261 = vadd.f32 %v4229, %v4245
    %v4262 = vadd.f32 %v4230, %v4246
    %v4263 = vadd.f32 %v4231, %v4247
    %v4264 = vadd.f32 %v4232, %v4248
    %v4265 = vadd.f32 %v4233, %v4249
    %v4266 = vadd.f32 %v4234, %v4250
    %v4267 = vadd.f32 %v4235, %v4251
    %v4268 = vadd.f32 %v4236, %v4252
    %v4269 = vadd.f32 %v4237, %v4253
    %v4270 = vadd.f32 %v4238, %v4254
    %v4271 = vadd.f32 %v4239, %v4255
    %v4272 = vadd.f32 %v4240, %v4256
    %v4273 = vadd.f32 %v4241, %v4257
    %v4274 = vadd.f32 %v4242, %v4258
    %v4275 = vadd.f32 %v4243, %v4259
    %v4276 = vadd.f32 %v4244, %v4260
    %v4277 = vadd.f32 %v92, 1.0
    %v4278 = vadd.f32 %v93, 1.0
    %v4279 = vadd.f32 %v94, 1.0
    %v4280 = vadd.f32 %v95, 1.0
    %v4281 = vadd.f32 %v96, 1.0
    %v4282 = vadd.f32 %v97, 1.0
    %v4283 = vadd.f32 %v98, 1.0
    %v4284 = vadd.f32 %v99, 1.0
    %v4285 = vadd.f32 %v100, 1.0
    %v4286 = vadd.f32 %v101, 1.0
    %v4287 = vadd.f32 %v102, 1.0
    %v4288 = vadd.f32 %v103, 1.0
    %v4289 = vadd.f32 %v104, 1.0
    %v4290 = vadd.f32 %v105, 1.0
    %v4291 = vadd.f32 %v106, 1.0
    %v4292 = vadd.f32 %v107, 1.0
    %v4293 = vadd.f32 %v4277, 1e-08
    %v4294 = vadd.f32 %v4278, 1e-08
    %v4295 = vadd.f32 %v4279, 1e-08
    %v4296 = vadd.f32 %v4280, 1e-08
    %v4297 = vadd.f32 %v4281, 1e-08
    %v4298 = vadd.f32 %v4282, 1e-08
    %v4299 = vadd.f32 %v4283, 1e-08
    %v4300 = vadd.f32 %v4284, 1e-08
    %v4301 = vadd.f32 %v4285, 1e-08
    %v4302 = vadd.f32 %v4286, 1e-08
    %v4303 = vadd.f32 %v4287, 1e-08
    %v4304 = vadd.f32 %v4288, 1e-08
    %v4305 = vadd.f32 %v4289, 1e-08
    %v4306 = vadd.f32 %v4290, 1e-08
    %v4307 = vadd.f32 %v4291, 1e-08
    %v4308 = vadd.f32 %v4292, 1e-08
    %v4309 = vrcp.pop %v4293
    %v4310 = vrcp.pop %v4294
    %v4311 = vrcp.pop %v4295
    %v4312 = vrcp.pop %v4296
    %v4313 = vrcp.pop %v4297
    %v4314 = vrcp.pop %v4298
    %v4315 = vrcp.pop %v4299
    %v4316 = vrcp.pop %v4300
    %v4317 = vrcp.pop %v4301
    %v4318 = vrcp.pop %v4302
    %v4319 = vrcp.pop %v4303
    %v4320 = vrcp.pop %v4304
    %v4321 = vrcp.pop %v4305
    %v4322 = vrcp.pop %v4306
    %v4323 = vrcp.pop %v4307
    %v4324 = vrcp.pop %v4308
    %v4325 = vlog2.pop %v4293
    %v4326 = vmul.f32 %v4325, 0.6931472
    %v4327 = vlog2.pop %v4294
    %v4328 = vmul.f32 %v4327, 0.6931472
    %v4329 = vlog2.pop %v4295
    %v4330 = vmul.f32 %v4329, 0.6931472
    %v4331 = vlog2.pop %v4296
    %v4332 = vmul.f32 %v4331, 0.6931472
    %v4333 = vlog2.pop %v4297
    %v4334 = vmul.f32 %v4333, 0.6931472
    %v4335 = vlog2.pop %v4298
    %v4336 = vmul.f32 %v4335, 0.6931472
    %v4337 = vlog2.pop %v4299
    %v4338 = vmul.f32 %v4337, 0.6931472
    %v4339 = vlog2.pop %v4300
    %v4340 = vmul.f32 %v4339, 0.6931472
    %v4341 = vlog2.pop %v4301
    %v4342 = vmul.f32 %v4341, 0.6931472
    %v4343 = vlog2.pop %v4302
    %v4344 = vmul.f32 %v4343, 0.6931472
    %v4345 = vlog2.pop %v4303
    %v4346 = vmul.f32 %v4345, 0.6931472
    %v4347 = vlog2.pop %v4304
    %v4348 = vmul.f32 %v4347, 0.6931472
    %v4349 = vlog2.pop %v4305
    %v4350 = vmul.f32 %v4349, 0.6931472
    %v4351 = vlog2.pop %v4306
    %v4352 = vmul.f32 %v4351, 0.6931472
    %v4353 = vlog2.pop %v4307
    %v4354 = vmul.f32 %v4353, 0.6931472
    %v4355 = vlog2.pop %v4308
    %v4356 = vmul.f32 %v4355, 0.6931472
    %v4357 = vsub.f32 0.0, %v4326
    %v4358 = vsub.f32 0.0, %v4328
    %v4359 = vsub.f32 0.0, %v4330
    %v4360 = vsub.f32 0.0, %v4332
    %v4361 = vsub.f32 0.0, %v4334
    %v4362 = vsub.f32 0.0, %v4336
    %v4363 = vsub.f32 0.0, %v4338
    %v4364 = vsub.f32 0.0, %v4340
    %v4365 = vsub.f32 0.0, %v4342
    %v4366 = vsub.f32 0.0, %v4344
    %v4367 = vsub.f32 0.0, %v4346
    %v4368 = vsub.f32 0.0, %v4348
    %v4369 = vsub.f32 0.0, %v4350
    %v4370 = vsub.f32 0.0, %v4352
    %v4371 = vsub.f32 0.0, %v4354
    %v4372 = vsub.f32 0.0, %v4356
    %v4373 = vsub.f32 0.0, %v2546
    %v4374 = vsub.f32 0.0, %v2552
    %v4375 = vsub.f32 0.0, %v2558
    %v4376 = vsub.f32 0.0, %v2564
    %v4377 = vsub.f32 0.0, %v2570
    %v4378 = vsub.f32 0.0, %v2576
    %v4379 = vsub.f32 0.0, %v2582
    %v4380 = vsub.f32 0.0, %v2588
    %v4381 = vsub.f32 0.0, %v2594
    %v4382 = vsub.f32 0.0, %v2600
    %v4383 = vsub.f32 0.0, %v2606
    %v4384 = vsub.f32 0.0, %v2612
    %v4385 = vsub.f32 0.0, %v2618
    %v4386 = vsub.f32 0.0, %v2624
    %v4387 = vsub.f32 0.0, %v2630
    %v4388 = vsub.f32 0.0, %v2636
    %v4389 = vmax.f32 %v4373, 0.0
    %v4390 = vmax.f32 %v4374, 0.0
    %v4391 = vmax.f32 %v4375, 0.0
    %v4392 = vmax.f32 %v4376, 0.0
    %v4393 = vmax.f32 %v4377, 0.0
    %v4394 = vmax.f32 %v4378, 0.0
    %v4395 = vmax.f32 %v4379, 0.0
    %v4396 = vmax.f32 %v4380, 0.0
    %v4397 = vmax.f32 %v4381, 0.0
    %v4398 = vmax.f32 %v4382, 0.0
    %v4399 = vmax.f32 %v4383, 0.0
    %v4400 = vmax.f32 %v4384, 0.0
    %v4401 = vmax.f32 %v4385, 0.0
    %v4402 = vmax.f32 %v4386, 0.0
    %v4403 = vmax.f32 %v4387, 0.0
    %v4404 = vmax.f32 %v4388, 0.0
    %vm4405 = vcmp.ne.f32.partialorder %v4373, %v4373
    %vm4406 = vcmp.ne.f32.partialorder %v4374, %v4374
    %vm4407 = vcmp.ne.f32.partialorder %v4375, %v4375
    %vm4408 = vcmp.ne.f32.partialorder %v4376, %v4376
    %vm4409 = vcmp.ne.f32.partialorder %v4377, %v4377
    %vm4410 = vcmp.ne.f32.partialorder %v4378, %v4378
    %vm4411 = vcmp.ne.f32.partialorder %v4379, %v4379
    %vm4412 = vcmp.ne.f32.partialorder %v4380, %v4380
    %vm4413 = vcmp.ne.f32.partialorder %v4381, %v4381
    %vm4414 = vcmp.ne.f32.partialorder %v4382, %v4382
    %vm4415 = vcmp.ne.f32.partialorder %v4383, %v4383
    %vm4416 = vcmp.ne.f32.partialorder %v4384, %v4384
    %vm4417 = vcmp.ne.f32.partialorder %v4385, %v4385
    %vm4418 = vcmp.ne.f32.partialorder %v4386, %v4386
    %vm4419 = vcmp.ne.f32.partialorder %v4387, %v4387
    %vm4420 = vcmp.ne.f32.partialorder %v4388, %v4388
    %v4421 = vadd.f32 %v4373, 0.0
    %v4422 = vadd.f32 %v4374, 0.0
    %v4423 = vadd.f32 %v4375, 0.0
    %v4424 = vadd.f32 %v4376, 0.0
    %v4425 = vadd.f32 %v4377, 0.0
    %v4426 = vadd.f32 %v4378, 0.0
    %v4427 = vadd.f32 %v4379, 0.0
    %v4428 = vadd.f32 %v4380, 0.0
    %v4429 = vadd.f32 %v4381, 0.0
    %v4430 = vadd.f32 %v4382, 0.0
    %v4431 = vadd.f32 %v4383, 0.0
    %v4432 = vadd.f32 %v4384, 0.0
    %v4433 = vadd.f32 %v4385, 0.0
    %v4434 = vadd.f32 %v4386, 0.0
    %v4435 = vadd.f32 %v4387, 0.0
    %v4436 = vadd.f32 %v4388, 0.0
    %v4437 = vand.u32 2147483647, %v4373
    %v4438 = vand.u32 2147483647, %v4374
    %v4439 = vand.u32 2147483647, %v4375
    %v4440 = vand.u32 2147483647, %v4376
    %v4441 = vand.u32 2147483647, %v4377
    %v4442 = vand.u32 2147483647, %v4378
    %v4443 = vand.u32 2147483647, %v4379
    %v4444 = vand.u32 2147483647, %v4380
    %v4445 = vand.u32 2147483647, %v4381
    %v4446 = vand.u32 2147483647, %v4382
    %v4447 = vand.u32 2147483647, %v4383
    %v4448 = vand.u32 2147483647, %v4384
    %v4449 = vand.u32 2147483647, %v4385
    %v4450 = vand.u32 2147483647, %v4386
    %v4451 = vand.u32 2147483647, %v4387
    %v4452 = vand.u32 2147483647, %v4388
    %v4453 = vsub.f32 0.0, %v4437
    %v4454 = vsub.f32 0.0, %v4438
    %v4455 = vsub.f32 0.0, %v4439
    %v4456 = vsub.f32 0.0, %v4440
    %v4457 = vsub.f32 0.0, %v4441
    %v4458 = vsub.f32 0.0, %v4442
    %v4459 = vsub.f32 0.0, %v4443
    %v4460 = vsub.f32 0.0, %v4444
    %v4461 = vsub.f32 0.0, %v4445
    %v4462 = vsub.f32 0.0, %v4446
    %v4463 = vsub.f32 0.0, %v4447
    %v4464 = vsub.f32 0.0, %v4448
    %v4465 = vsub.f32 0.0, %v4449
    %v4466 = vsub.f32 0.0, %v4450
    %v4467 = vsub.f32 0.0, %v4451
    %v4468 = vsub.f32 0.0, %v4452
    %v4469 = vmul.f32 %v4453, 1.442695
    %v4470 = vpow.pop %v4469
    %v4471 = vmul.f32 %v4454, 1.442695
    %v4472 = vpow.pop %v4471
    %v4473 = vmul.f32 %v4455, 1.442695
    %v4474 = vpow.pop %v4473
    %v4475 = vmul.f32 %v4456, 1.442695
    %v4476 = vpow.pop %v4475
    %v4477 = vmul.f32 %v4457, 1.442695
    %v4478 = vpow.pop %v4477
    %v4479 = vmul.f32 %v4458, 1.442695
    %v4480 = vpow.pop %v4479
    %v4481 = vmul.f32 %v4459, 1.442695
    %v4482 = vpow.pop %v4481
    %v4483 = vmul.f32 %v4460, 1.442695
    %v4484 = vpow.pop %v4483
    %v4485 = vmul.f32 %v4461, 1.442695
    %v4486 = vpow.pop %v4485
    %v4487 = vmul.f32 %v4462, 1.442695
    %v4488 = vpow.pop %v4487
    %v4489 = vmul.f32 %v4463, 1.442695
    %v4490 = vpow.pop %v4489
    %v4491 = vmul.f32 %v4464, 1.442695
    %v4492 = vpow.pop %v4491
    %v4493 = vmul.f32 %v4465, 1.442695
    %v4494 = vpow.pop %v4493
    %v4495 = vmul.f32 %v4466, 1.442695
    %v4496 = vpow.pop %v4495
    %v4497 = vmul.f32 %v4467, 1.442695
    %v4498 = vpow.pop %v4497
    %v4499 = vmul.f32 %v4468, 1.442695
    %v4500 = vpow.pop %v4499
    %v4501 = vadd.f32 %v4470, 1.0
    %v4502 = vlog2.pop %v4501
    %v4503 = vmul.f32 %v4502, 0.6931472
    %v4504 = vmul.f32 -0.5, %v4470
    %v4505 = vadd.f32 %v4504, 1.0
    %v4506 = vmul.f32 %v4505, %v4470
    %v4507 = vand.u32 2147483647, %v4470
    %vm4508 = vcmp.lt.f32.partialorder %v4507, 0.0004427343
    %v4509 = vsel %vm4508, %v4506, %v4503
    %v4510 = vadd.f32 %v4472, 1.0
    %v4511 = vlog2.pop %v4510
    %v4512 = vmul.f32 %v4511, 0.6931472
    %v4513 = vmul.f32 -0.5, %v4472
    %v4514 = vadd.f32 %v4513, 1.0
    %v4515 = vmul.f32 %v4514, %v4472
    %v4516 = vand.u32 2147483647, %v4472
    %vm4517 = vcmp.lt.f32.partialorder %v4516, 0.0004427343
    %v4518 = vsel %vm4517, %v4515, %v4512
    %v4519 = vadd.f32 %v4474, 1.0
    %v4520 = vlog2.pop %v4519
    %v4521 = vmul.f32 %v4520, 0.6931472
    %v4522 = vmul.f32 -0.5, %v4474
    %v4523 = vadd.f32 %v4522, 1.0
    %v4524 = vmul.f32 %v4523, %v4474
    %v4525 = vand.u32 2147483647, %v4474
    %vm4526 = vcmp.lt.f32.partialorder %v4525, 0.0004427343
    %v4527 = vsel %vm4526, %v4524, %v4521
    %v4528 = vadd.f32 %v4476, 1.0
    %v4529 = vlog2.pop %v4528
    %v4530 = vmul.f32 %v4529, 0.6931472
    %v4531 = vmul.f32 -0.5, %v4476
    %v4532 = vadd.f32 %v4531, 1.0
    %v4533 = vmul.f32 %v4532, %v4476
    %v4534 = vand.u32 2147483647, %v4476
    %vm4535 = vcmp.lt.f32.partialorder %v4534, 0.0004427343
    %v4536 = vsel %vm4535, %v4533, %v4530
    %v4537 = vadd.f32 %v4478, 1.0
    %v4538 = vlog2.pop %v4537
    %v4539 = vmul.f32 %v4538, 0.6931472
    %v4540 = vmul.f32 -0.5, %v4478
    %v4541 = vadd.f32 %v4540, 1.0
    %v4542 = vmul.f32 %v4541, %v4478
    %v4543 = vand.u32 2147483647, %v4478
    %vm4544 = vcmp.lt.f32.partialorder %v4543, 0.0004427343
    %v4545 = vsel %vm4544, %v4542, %v4539
    %v4546 = vadd.f32 %v4480, 1.0
    %v4547 = vlog2.pop %v4546
    %v4548 = vmul.f32 %v4547, 0.6931472
    %v4549 = vmul.f32 -0.5, %v4480
    %v4550 = vadd.f32 %v4549, 1.0
    %v4551 = vmul.f32 %v4550, %v4480
    %v4552 = vand.u32 2147483647, %v4480
    %vm4553 = vcmp.lt.f32.partialorder %v4552, 0.0004427343
    %v4554 = vsel %vm4553, %v4551, %v4548
    %v4555 = vadd.f32 %v4482, 1.0
    %v4556 = vlog2.pop %v4555
    %v4557 = vmul.f32 %v4556, 0.6931472
    %v4558 = vmul.f32 -0.5, %v4482
    %v4559 = vadd.f32 %v4558, 1.0
    %v4560 = vmul.f32 %v4559, %v4482
    %v4561 = vand.u32 2147483647, %v4482
    %vm4562 = vcmp.lt.f32.partialorder %v4561, 0.0004427343
    %v4563 = vsel %vm4562, %v4560, %v4557
    %v4564 = vadd.f32 %v4484, 1.0
    %v4565 = vlog2.pop %v4564
    %v4566 = vmul.f32 %v4565, 0.6931472
    %v4567 = vmul.f32 -0.5, %v4484
    %v4568 = vadd.f32 %v4567, 1.0
    %v4569 = vmul.f32 %v4568, %v4484
    %v4570 = vand.u32 2147483647, %v4484
    %vm4571 = vcmp.lt.f32.partialorder %v4570, 0.0004427343
    %v4572 = vsel %vm4571, %v4569, %v4566
    %v4573 = vadd.f32 %v4486, 1.0
    %v4574 = vlog2.pop %v4573
    %v4575 = vmul.f32 %v4574, 0.6931472
    %v4576 = vmul.f32 -0.5, %v4486
    %v4577 = vadd.f32 %v4576, 1.0
    %v4578 = vmul.f32 %v4577, %v4486
    %v4579 = vand.u32 2147483647, %v4486
    %vm4580 = vcmp.lt.f32.partialorder %v4579, 0.0004427343
    %v4581 = vsel %vm4580, %v4578, %v4575
    %v4582 = vadd.f32 %v4488, 1.0
    %v4583 = vlog2.pop %v4582
    %v4584 = vmul.f32 %v4583, 0.6931472
    %v4585 = vmul.f32 -0.5, %v4488
    %v4586 = vadd.f32 %v4585, 1.0
    %v4587 = vmul.f32 %v4586, %v4488
    %v4588 = vand.u32 2147483647, %v4488
    %vm4589 = vcmp.lt.f32.partialorder %v4588, 0.0004427343
    %v4590 = vsel %vm4589, %v4587, %v4584
    %v4591 = vadd.f32 %v4490, 1.0
    %v4592 = vlog2.pop %v4591
    %v4593 = vmul.f32 %v4592, 0.6931472
    %v4594 = vmul.f32 -0.5, %v4490
    %v4595 = vadd.f32 %v4594, 1.0
    %v4596 = vmul.f32 %v4595, %v4490
    %v4597 = vand.u32 2147483647, %v4490
    %vm4598 = vcmp.lt.f32.partialorder %v4597, 0.0004427343
    %v4599 = vsel %vm4598, %v4596, %v4593
    %v4600 = vadd.f32 %v4492, 1.0
    %v4601 = vlog2.pop %v4600
    %v4602 = vmul.f32 %v4601, 0.6931472
    %v4603 = vmul.f32 -0.5, %v4492
    %v4604 = vadd.f32 %v4603, 1.0
    %v4605 = vmul.f32 %v4604, %v4492
    %v4606 = vand.u32 2147483647, %v4492
    %vm4607 = vcmp.lt.f32.partialorder %v4606, 0.0004427343
    %v4608 = vsel %vm4607, %v4605, %v4602
    %v4609 = vadd.f32 %v4494, 1.0
    %v4610 = vlog2.pop %v4609
    %v4611 = vmul.f32 %v4610, 0.6931472
    %v4612 = vmul.f32 -0.5, %v4494
    %v4613 = vadd.f32 %v4612, 1.0
    %v4614 = vmul.f32 %v4613, %v4494
    %v4615 = vand.u32 2147483647, %v4494
    %vm4616 = vcmp.lt.f32.partialorder %v4615, 0.0004427343
    %v4617 = vsel %vm4616, %v4614, %v4611
    %v4618 = vadd.f32 %v4496, 1.0
    %v4619 = vlog2.pop %v4618
    %v4620 = vmul.f32 %v4619, 0.6931472
    %v4621 = vmul.f32 -0.5, %v4496
    %v4622 = vadd.f32 %v4621, 1.0
    %v4623 = vmul.f32 %v4622, %v4496
    %v4624 = vand.u32 2147483647, %v4496
    %vm4625 = vcmp.lt.f32.partialorder %v4624, 0.0004427343
    %v4626 = vsel %vm4625, %v4623, %v4620
    %v4627 = vadd.f32 %v4498, 1.0
    %v4628 = vlog2.pop %v4627
    %v4629 = vmul.f32 %v4628, 0.6931472
    %v4630 = vmul.f32 -0.5, %v4498
    %v4631 = vadd.f32 %v4630, 1.0
    %v4632 = vmul.f32 %v4631, %v4498
    %v4633 = vand.u32 2147483647, %v4498
    %vm4634 = vcmp.lt.f32.partialorder %v4633, 0.0004427343
    %v4635 = vsel %vm4634, %v4632, %v4629
    %v4636 = vadd.f32 %v4500, 1.0
    %v4637 = vlog2.pop %v4636
    %v4638 = vmul.f32 %v4637, 0.6931472
    %v4639 = vmul.f32 -0.5, %v4500
    %v4640 = vadd.f32 %v4639, 1.0
    %v4641 = vmul.f32 %v4640, %v4500
    %v4642 = vand.u32 2147483647, %v4500
    %vm4643 = vcmp.lt.f32.partialorder %v4642, 0.0004427343
    %v4644 = vsel %vm4643, %v4641, %v4638
    %v4645 = vadd.f32 %v4389, %v4509
    %v4646 = vadd.f32 %v4390, %v4518
    %v4647 = vadd.f32 %v4391, %v4527
    %v4648 = vadd.f32 %v4392, %v4536
    %v4649 = vadd.f32 %v4393, %v4545
    %v4650 = vadd.f32 %v4394, %v4554
    %v4651 = vadd.f32 %v4395, %v4563
    %v4652 = vadd.f32 %v4396, %v4572
    %v4653 = vadd.f32 %v4397, %v4581
    %v4654 = vadd.f32 %v4398, %v4590
    %v4655 = vadd.f32 %v4399, %v4599
    %v4656 = vadd.f32 %v4400, %v4608
    %v4657 = vadd.f32 %v4401, %v4617
    %v4658 = vadd.f32 %v4402, %v4626
    %v4659 = vadd.f32 %v4403, %v4635
    %v4660 = vadd.f32 %v4404, %v4644
    %v4661 = vsel %vm4405, %v4421, %v4645
    %v4662 = vsel %vm4406, %v4422, %v4646
    %v4663 = vsel %vm4407, %v4423, %v4647
    %v4664 = vsel %vm4408, %v4424, %v4648
    %v4665 = vsel %vm4409, %v4425, %v4649
    %v4666 = vsel %vm4410, %v4426, %v4650
    %v4667 = vsel %vm4411, %v4427, %v4651
    %v4668 = vsel %vm4412, %v4428, %v4652
    %v4669 = vsel %vm4413, %v4429, %v4653
    %v4670 = vsel %vm4414, %v4430, %v4654
    %v4671 = vsel %vm4415, %v4431, %v4655
    %v4672 = vsel %vm4416, %v4432, %v4656
    %v4673 = vsel %vm4417, %v4433, %v4657
    %v4674 = vsel %vm4418, %v4434, %v4658
    %v4675 = vsel %vm4419, %v4435, %v4659
    %v4676 = vsel %vm4420, %v4436, %v4660
    %v4677 = vsub.f32 0.0, %v4661
    %v4678 = vsub.f32 0.0, %v4662
    %v4679 = vsub.f32 0.0, %v4663
    %v4680 = vsub.f32 0.0, %v4664
    %v4681 = vsub.f32 0.0, %v4665
    %v4682 = vsub.f32 0.0, %v4666
    %v4683 = vsub.f32 0.0, %v4667
    %v4684 = vsub.f32 0.0, %v4668
    %v4685 = vsub.f32 0.0, %v4669
    %v4686 = vsub.f32 0.0, %v4670
    %v4687 = vsub.f32 0.0, %v4671
    %v4688 = vsub.f32 0.0, %v4672
    %v4689 = vsub.f32 0.0, %v4673
    %v4690 = vsub.f32 0.0, %v4674
    %v4691 = vsub.f32 0.0, %v4675
    %v4692 = vsub.f32 0.0, %v4676
    %4709 = vrot.lane.b32.xlu0 %v4677, 1
    %v4710 = vpop.permute.xlu0 %4709
    %4711 = vrot.lane.b32.xlu0 %v4678, 1
    %v4712 = vpop.permute.xlu0 %4711
    %4713 = vrot.lane.b32.xlu0 %v4679, 1
    %v4714 = vpop.permute.xlu0 %4713
    %4715 = vrot.lane.b32.xlu0 %v4680, 1
    %v4716 = vpop.permute.xlu0 %4715
    %4717 = vrot.lane.b32.xlu0 %v4681, 1
    %v4718 = vpop.permute.xlu0 %4717
    %4719 = vrot.lane.b32.xlu0 %v4682, 1
    %v4720 = vpop.permute.xlu0 %4719
    %4721 = vrot.lane.b32.xlu0 %v4683, 1
    %v4722 = vpop.permute.xlu0 %4721
    %4723 = vrot.lane.b32.xlu0 %v4684, 1
    %v4724 = vpop.permute.xlu0 %4723
    %4725 = vrot.lane.b32.xlu0 %v4685, 1
    %v4726 = vpop.permute.xlu0 %4725
    %4727 = vrot.lane.b32.xlu0 %v4686, 1
    %v4728 = vpop.permute.xlu0 %4727
    %4729 = vrot.lane.b32.xlu0 %v4687, 1
    %v4730 = vpop.permute.xlu0 %4729
    %4731 = vrot.lane.b32.xlu0 %v4688, 1
    %v4732 = vpop.permute.xlu0 %4731
    %4733 = vrot.lane.b32.xlu0 %v4689, 1
    %v4734 = vpop.permute.xlu0 %4733
    %4735 = vrot.lane.b32.xlu0 %v4690, 1
    %v4736 = vpop.permute.xlu0 %4735
    %4737 = vrot.lane.b32.xlu0 %v4691, 1
    %v4738 = vpop.permute.xlu0 %4737
    %4739 = vrot.lane.b32.xlu0 %v4692, 1
    %v4740 = vpop.permute.xlu0 %4739
    %v4757 = vsub.f32 %v4357, %v4710
    %v4758 = vsub.f32 %v4358, %v4712
    %v4759 = vsub.f32 %v4359, %v4714
    %v4760 = vsub.f32 %v4360, %v4716
    %v4761 = vsub.f32 %v4361, %v4718
    %v4762 = vsub.f32 %v4362, %v4720
    %v4763 = vsub.f32 %v4363, %v4722
    %v4764 = vsub.f32 %v4364, %v4724
    %v4765 = vsub.f32 %v4365, %v4726
    %v4766 = vsub.f32 %v4366, %v4728
    %v4767 = vsub.f32 %v4367, %v4730
    %v4768 = vsub.f32 %v4368, %v4732
    %v4769 = vsub.f32 %v4369, %v4734
    %v4770 = vsub.f32 %v4370, %v4736
    %v4771 = vsub.f32 %v4371, %v4738
    %v4772 = vsub.f32 %v4372, %v4740
    %v4773 = vmul.f32 %v4309, %v4757
    %v4774 = vmul.f32 %v4310, %v4758
    %v4775 = vmul.f32 %v4311, %v4759
    %v4776 = vmul.f32 %v4312, %v4760
    %v4777 = vmul.f32 %v4313, %v4761
    %v4778 = vmul.f32 %v4314, %v4762
    %v4779 = vmul.f32 %v4315, %v4763
    %v4780 = vmul.f32 %v4316, %v4764
    %v4781 = vmul.f32 %v4317, %v4765
    %v4782 = vmul.f32 %v4318, %v4766
    %v4783 = vmul.f32 %v4319, %v4767
    %v4784 = vmul.f32 %v4320, %v4768
    %v4785 = vmul.f32 %v4321, %v4769
    %v4786 = vmul.f32 %v4322, %v4770
    %v4787 = vmul.f32 %v4323, %v4771
    %v4788 = vmul.f32 %v4324, %v4772
    %4805 = vrot.lane.b32.xlu0 %v4261, 1
    %v4806 = vpop.permute.xlu0 %4805
    %4807 = vrot.lane.b32.xlu0 %v4262, 1
    %v4808 = vpop.permute.xlu0 %4807
    %4809 = vrot.lane.b32.xlu0 %v4263, 1
    %v4810 = vpop.permute.xlu0 %4809
    %4811 = vrot.lane.b32.xlu0 %v4264, 1
    %v4812 = vpop.permute.xlu0 %4811
    %4813 = vrot.lane.b32.xlu0 %v4265, 1
    %v4814 = vpop.permute.xlu0 %4813
    %4815 = vrot.lane.b32.xlu0 %v4266, 1
    %v4816 = vpop.permute.xlu0 %4815
    %4817 = vrot.lane.b32.xlu0 %v4267, 1
    %v4818 = vpop.permute.xlu0 %4817
    %4819 = vrot.lane.b32.xlu0 %v4268, 1
    %v4820 = vpop.permute.xlu0 %4819
    %4821 = vrot.lane.b32.xlu0 %v4269, 1
    %v4822 = vpop.permute.xlu0 %4821
    %4823 = vrot.lane.b32.xlu0 %v4270, 1
    %v4824 = vpop.permute.xlu0 %4823
    %4825 = vrot.lane.b32.xlu0 %v4271, 1
    %v4826 = vpop.permute.xlu0 %4825
    %4827 = vrot.lane.b32.xlu0 %v4272, 1
    %v4828 = vpop.permute.xlu0 %4827
    %4829 = vrot.lane.b32.xlu0 %v4273, 1
    %v4830 = vpop.permute.xlu0 %4829
    %4831 = vrot.lane.b32.xlu0 %v4274, 1
    %v4832 = vpop.permute.xlu0 %4831
    %4833 = vrot.lane.b32.xlu0 %v4275, 1
    %v4834 = vpop.permute.xlu0 %4833
    %4835 = vrot.lane.b32.xlu0 %v4276, 1
    %v4836 = vpop.permute.xlu0 %4835
    %4869 = vrot.lane.b32.xlu0 %v4773, 1
    %v4870 = vpop.permute.xlu0 %4869
    %4871 = vrot.lane.b32.xlu0 %v4774, 1
    %v4872 = vpop.permute.xlu0 %4871
    %4873 = vrot.lane.b32.xlu0 %v4775, 1
    %v4874 = vpop.permute.xlu0 %4873
    %4875 = vrot.lane.b32.xlu0 %v4776, 1
    %v4876 = vpop.permute.xlu0 %4875
    %4877 = vrot.lane.b32.xlu0 %v4777, 1
    %v4878 = vpop.permute.xlu0 %4877
    %4879 = vrot.lane.b32.xlu0 %v4778, 1
    %v4880 = vpop.permute.xlu0 %4879
    %4881 = vrot.lane.b32.xlu0 %v4779, 1
    %v4882 = vpop.permute.xlu0 %4881
    %4883 = vrot.lane.b32.xlu0 %v4780, 1
    %v4884 = vpop.permute.xlu0 %4883
    %4885 = vrot.lane.b32.xlu0 %v4781, 1
    %v4886 = vpop.permute.xlu0 %4885
    %4887 = vrot.lane.b32.xlu0 %v4782, 1
    %v4888 = vpop.permute.xlu0 %4887
    %4889 = vrot.lane.b32.xlu0 %v4783, 1
    %v4890 = vpop.permute.xlu0 %4889
    %4891 = vrot.lane.b32.xlu0 %v4784, 1
    %v4892 = vpop.permute.xlu0 %4891
    %4893 = vrot.lane.b32.xlu0 %v4785, 1
    %v4894 = vpop.permute.xlu0 %4893
    %4895 = vrot.lane.b32.xlu0 %v4786, 1
    %v4896 = vpop.permute.xlu0 %4895
    %4897 = vrot.lane.b32.xlu0 %v4787, 1
    %v4898 = vpop.permute.xlu0 %4897
    %4899 = vrot.lane.b32.xlu0 %v4788, 1
    %v4900 = vpop.permute.xlu0 %4899
    %vm4917 = vcmask 7168
    %v4918 = vsel %vm4917, %v4101, %v4806
    %v4919 = vsel %vm4917, %v4102, %v4808
    %v4920 = vsel %vm4917, %v4103, %v4810
    %v4921 = vsel %vm4917, %v4104, %v4812
    %v4922 = vsel %vm4917, %v4105, %v4814
    %v4923 = vsel %vm4917, %v4106, %v4816
    %v4924 = vsel %vm4917, %v4107, %v4818
    %v4925 = vsel %vm4917, %v4108, %v4820
    %v4926 = vsel %vm4917, %v4109, %v4822
    %v4927 = vsel %vm4917, %v4110, %v4824
    %v4928 = vsel %vm4917, %v4111, %v4826
    %v4929 = vsel %vm4917, %v4112, %v4828
    %v4930 = vsel %vm4917, %v4113, %v4830
    %v4931 = vsel %vm4917, %v4114, %v4832
    %v4932 = vsel %vm4917, %v4115, %v4834
    %v4933 = vsel %vm4917, %v4116, %v4836
    %vm4934 = vcmask 15360
    %v4935 = vsel %vm4934, %v4918, %v4870
    %v4936 = vsel %vm4934, %v4919, %v4872
    %v4937 = vsel %vm4934, %v4920, %v4874
    %v4938 = vsel %vm4934, %v4921, %v4876
    %v4939 = vsel %vm4934, %v4922, %v4878
    %v4940 = vsel %vm4934, %v4923, %v4880
    %v4941 = vsel %vm4934, %v4924, %v4882
    %v4942 = vsel %vm4934, %v4925, %v4884
    %v4943 = vsel %vm4934, %v4926, %v4886
    %v4944 = vsel %vm4934, %v4927, %v4888
    %v4945 = vsel %vm4934, %v4928, %v4890
    %v4946 = vsel %vm4934, %v4929, %v4892
    %v4947 = vsel %vm4934, %v4930, %v4894
    %v4948 = vsel %vm4934, %v4931, %v4896
    %v4949 = vsel %vm4934, %v4932, %v4898
    %v4950 = vsel %vm4934, %v4933, %v4900
    %v4951 = vmul.f32 %v4935, %v192
    %v4952 = vmul.f32 %v4936, %v193
    %v4953 = vmul.f32 %v4937, %v194
    %v4954 = vmul.f32 %v4938, %v195
    %v4955 = vmul.f32 %v4939, %v196
    %v4956 = vmul.f32 %v4940, %v197
    %v4957 = vmul.f32 %v4941, %v198
    %v4958 = vmul.f32 %v4942, %v199
    %v4959 = vmul.f32 %v4943, %v200
    %v4960 = vmul.f32 %v4944, %v201
    %v4961 = vmul.f32 %v4945, %v202
    %v4962 = vmul.f32 %v4946, %v203
    %v4963 = vmul.f32 %v4947, %v204
    %v4964 = vmul.f32 %v4948, %v205
    %v4965 = vmul.f32 %v4949, %v206
    %v4966 = vmul.f32 %v4950, %v207
    %v4967 = vld [vmem:[#allocation2] sm:$0x1]
    %vm4968 = vcmask 23552
    %v4969 = vsel %vm4968, %v4951, 0.0
    %v4970 = vsel %vm4968, %v4952, 0.0
    %v4971 = vadd.f32 %v4969, %v4970
    %v4972 = vsel %vm4968, %v4953, 0.0
    %v4973 = vadd.f32 %v4971, %v4972
    %v4974 = vsel %vm4968, %v4954, 0.0
    %v4975 = vadd.f32 %v4973, %v4974
    %v4976 = vsel %vm4968, %v4955, 0.0
    %v4977 = vadd.f32 %v4975, %v4976
    %v4978 = vsel %vm4968, %v4956, 0.0
    %v4979 = vadd.f32 %v4977, %v4978
    %v4980 = vsel %vm4968, %v4957, 0.0
    %v4981 = vadd.f32 %v4979, %v4980
    %v4982 = vsel %vm4968, %v4958, 0.0
    %v4983 = vadd.f32 %v4981, %v4982
    %v4984 = vsel %vm4968, %v4959, 0.0
    %v4985 = vadd.f32 %v4983, %v4984
    %v4986 = vsel %vm4968, %v4960, 0.0
    %v4987 = vadd.f32 %v4985, %v4986
    %v4988 = vsel %vm4968, %v4961, 0.0
    %v4989 = vadd.f32 %v4987, %v4988
    %v4990 = vsel %vm4968, %v4962, 0.0
    %v4991 = vadd.f32 %v4989, %v4990
    %v4992 = vsel %vm4968, %v4963, 0.0
    %v4993 = vadd.f32 %v4991, %v4992
    %v4994 = vsel %vm4968, %v4964, 0.0
    %v4995 = vadd.f32 %v4993, %v4994
    %v4996 = vsel %vm4968, %v4965, 0.0
    %v4997 = vadd.f32 %v4995, %v4996
    %v4998 = vsel %vm4968, %v4966, 0.0
    %v4999 = vadd.f32 %v4997, %v4998
    %v5000 = vrot.slane %v4999, 4
    %v5001 = vadd.f32 %v4999, %v5000
    %v5002 = vrot.slane %v5001, 2
    %v5003 = vadd.f32 %v5001, %v5002
    %v5004 = vrot.slane %v5003, 1
    %v5005 = vadd.f32 %v5003, %v5004
    %v5006 = vadd.f32 %v4967, %v5005
    %vm5007 = vcmask 16384
    %5008 = vst.msk [vmem:[#allocation2] sm:$0x1] %vm5007, %v5006
    // Predicated region
    $region14: #{tpu_custom_call.1} parent=1 // pred_check
      %p5009 = pneg %p51
    $region15: #{tpu_custom_call.1} parent=1 // pred_check_branch
      %5011 = sbr.rel (%p5009) target = $region17
    $region16: #{tpu_custom_call.1} parent=1 // pred_region
      %v5012 = vld [vmem:[#allocation2] sm:$0x1]
      %vm5013 = vcmp.eq.s32.totalorder %v209, 0
      %v5015 = vlaneseq
      %v5016 = vshrl.u32 %v5015, 7
      %v5017 = vsub.s32 0, %v5016
      %v5018 = vrot.slane %v5012, %v5017
      %5019 = vset.pattern.permute.xlu0 0
      %5020 = vperm.xlu0 %5019, %v5018
      %v5021 = vpop.permute.xlu0 %5020
      %v5023 = vsel %vm5013, %v5021, 0.0
      %vm5024 = vcmp.eq.s32.totalorder %v209, 1
      %5025 = vset.pattern.permute.xlu0 1
      %5026 = vperm.xlu0 %5025, %v5018
      %v5027 = vpop.permute.xlu0 %5026
      %v5029 = vsel %vm5024, %v5027, 0.0
      %v5030 = vadd.f32 %v5023, %v5029
      %vm5031 = vcmp.eq.s32.totalorder %v209, 2
      %5032 = vset.pattern.permute.xlu0 2
      %5033 = vperm.xlu0 %5032, %v5018
      %v5034 = vpop.permute.xlu0 %5033
      %v5036 = vsel %vm5031, %v5034, 0.0
      %v5037 = vadd.f32 %v5030, %v5036
      %5038 = vst [vmem:[#allocation3] sm:$0xff] %v5037
    $region17: #{tpu_custom_call.1} parent=1 // pred_fallthru
      _
    // Predicated region
    $region18: #{tpu_custom_call.1} parent=1 // pred_check
      _
    $region19: #{tpu_custom_call.1} parent=1 // pred_check_branch
      %5040 = sbr.rel (0) target = $region21
    $region20: #{tpu_custom_call.1} parent=1 // pred_region
      %s5042 = ssub.s32 128, 128
      %5043 = vsyncadd [#allocation4], %s5042
      %s5045 = sshll.u32 [#allocation3], 4
      %s5046 = int_to_ptr.vmem [resolvable:$true] %s5045
      %5048 = dma.vmem_to_hbm [thread:$0]  %s5046, 128, %s2, [#allocation4]
    $region21: #{tpu_custom_call.1} parent=1 // pred_fallthru
      _
    // Predicated region
    $region22: #{tpu_custom_call.1} parent=1 // pred_check
      _
    $region23: #{tpu_custom_call.1} parent=1 // pred_check_branch
      %5050 = sbr.rel (0) target = $region25
    $region24: #{tpu_custom_call.1} parent=1 // pred_region
      %5051 = dma.done [#allocation4], 128
    $region25: #{tpu_custom_call.1} parent=1 // pred_fallthru
      _
    %5052 = vsyncpa [#allocation4], 1

</llo_original>
